<compile_context>
chip_gen: v7x
topology: tpu7x:2x2x1
jax: 0.10.0
libtpu: 0.0.40
codegen_flags: <defaults>
</compile_context>

<pallas_src>
import functools

import jax
import jax.numpy as jnp
from jax import lax
from jax.experimental import pallas as pl
from jax.experimental.pallas import tpu as pltpu

_LANES = 128
_SUBLANES = 8
_DEFAULT_IN_BUFFER_BUDGET_BYTES = 8 * 1024 * 1024   # per (double-buffered) input block
_DEFAULT_MIN_PALLAS_BYTES = 1024 * 1024              # below this, plain XLA is faster


def _round_up(x, m):
    return ((x + m - 1) // m) * m


def _apply_power(x, power):
    """x ** power, keeping small positive integer powers on the VPU multiply path."""
    if isinstance(power, (int, float)) and float(power).is_integer() and power >= 1:
        p = x
        for _ in range(int(power) - 1):
            p = p * x
        return p
    # TODO(synk): non-integer power falls back to generic pow (EUP exp/log);
    # NaN for negative inputs, matching torch semantics.
    return x ** power


def _emb_margin_kernel(sel_ref, x_ref, o_ref, *, power, row_tile, n_rows, n_inner):
    """Process one (row_tile, C) tile; o_ref is a tiny (1, 1, 128) accumulator."""
    o = pl.program_id(0)
    i = pl.program_id(1)

    @pl.when(i == 0)
    def _():
        o_ref[...] = jnp.zeros_like(o_ref)

    x = x_ref[...].astype(jnp.float32)                       # (T, C)
    p = _apply_power(x, power)

    # Segmented per-row lane sum on the MXU: sel is (C, 128) with zero padding
    # past the real groups, so norms/relu are lane-dense 128-wide.
    norms = jnp.dot(p, sel_ref[...], preferred_element_type=jnp.float32)  # (T, 128)
    relu = jnp.maximum(norms - 1.0, 0.0)

    # Grid-position (not block-index) based range check: covers both the
    # partial tail tile and duplicated (clamped) blocks of the 2-way split.
    t_lin = o * n_inner + i
    fully_in = (t_lin + 1) * row_tile <= n_rows

    @pl.when(fully_in)
    def _():
        o_ref[...] += jnp.sum(relu, axis=0, keepdims=True)[None]

    @pl.when(jnp.logical_not(fully_in))
    def _():
        row0 = t_lin * row_tile
        rows = lax.broadcasted_iota(jnp.int32, relu.shape, 0) + row0
        masked = jnp.where(rows < n_rows, relu, 0.0)          # select, NOT multiply
        o_ref[...] += jnp.sum(masked, axis=0, keepdims=True)[None]


def _make_selector(c, g):
    """(C, 128) f32 selector: sel[l, j] = 1 iff lane l belongs to row-group j."""
    d_group = c // g
    lane = jnp.arange(c, dtype=jnp.int32)[:, None]
    col = jnp.arange(_LANES, dtype=jnp.int32)[None, :]
    return (col == lane // d_group).astype(jnp.float32)


def _single_emb_margin_loss_xla(embedding, power):
    e = embedding.astype(jnp.float32)
    norm_e = jnp.sum(_apply_power(e, power), axis=1, keepdims=True)
    return jnp.sum(jnp.maximum(norm_e - 1.0, 0.0))


def _single_emb_margin_loss_pallas(embedding, power, in_buffer_budget_bytes):
    """Loss contribution of a single [N, D] embedding matrix (scalar f32)."""
    assert embedding.ndim == 2, "embedding must be [N, D]"
    n, d = embedding.shape
    itemsize = embedding.dtype.itemsize

    # Lane-dense repack for narrow embeddings: [N, D] -> [N*D/128, 128] is a
    # free row-major reshape whenever D divides 128 and rows pack evenly.
    # TODO(synk): narrow D that does not divide 128 (e.g. D=48) stays on the
    # lane-sparse path; a two-level lcm(D,128) selector could pack it too.
    if d < _LANES and _LANES % d == 0 and (n * d) % _LANES == 0:
        g = _LANES // d
        x = embedding.reshape((n * d) // _LANES, _LANES)
    else:
        g = 1
        x = embedding
    m, c = x.shape

    # Largest row tile whose VMEM footprint (lanes pad to 128) fits the budget,
    # rounded to the dtype's sublane packing (8 f32 / 16 bf16 / 32 int8).
    row_bytes = _round_up(c, _LANES) * itemsize
    pack = max(_SUBLANES, 32 // itemsize)
    row_tile = max(pack, (in_buffer_budget_bytes // row_bytes) // pack * pack)
    if row_tile >= m:
        row_tile = m                      # whole array as a single (legal) block

    num_tiles = pl.cdiv(m, row_tile)
    # 2-way outer split whenever there is anything to split; clamped block
    # index below makes this legal for odd tile counts too.
    n_outer = 2 if num_tiles >= 2 else 1
    n_inner = pl.cdiv(num_tiles, n_outer)
    last_tile = num_tiles - 1

    sel = _make_selector(c, g)            # built once, DMA'd once (constant index_map)

    kernel = functools.partial(
        _emb_margin_kernel, power=power, row_tile=row_tile, n_rows=m, n_inner=n_inner)

    block_bytes = row_tile * _round_up(c, _LANES) * itemsize
    sel_bytes = _round_up(c, _SUBLANES) * _LANES * 4
    vmem_limit = 2 * block_bytes + 2 * sel_bytes + (4 << 20)
    vmem_limit = min(max(vmem_limit, 16 << 20), 48 << 20)

    partials = pl.pallas_call(
        kernel,
        out_shape=jax.ShapeDtypeStruct((n_outer, 1, _LANES), jnp.float32),
        grid_spec=pltpu.PrefetchScalarGridSpec(
            num_scalar_prefetch=0,
            grid=(n_outer, n_inner),
            in_specs=[
                # Selector: constant block index => resident, no per-step DMA.
                pl.BlockSpec((c, _LANES), lambda o, i: (0, 0)),
                # Data tiles: clamped linear block index for the 2-way split.
                pl.BlockSpec(
                    (row_tile, c),
                    lambda o, i: (jnp.minimum(o * n_inner + i, last_tile), 0)),
            ],
            out_specs=pl.BlockSpec((1, 1, _LANES), lambda o, i: (o, 0, 0)),
        ),
        compiler_params=pltpu.CompilerParams(
            dimension_semantics=("parallel", "arbitrary"),
            vmem_limit_bytes=vmem_limit,
        ),
        cost_estimate=pl.CostEstimate(
            flops=(2 + max(int(power) - 1, 0)) * n * d,
            transcendentals=0,
            bytes_accessed=n * d * itemsize + sel_bytes + n_outer * _LANES * 4,
        ),
    )(sel, x)

    # Single tiny final reduce of the lane-dense partials (done once by XLA).
    return jnp.sum(partials)


def emb_margin_loss(*embeddings, power=2,
                    min_pallas_bytes=_DEFAULT_MIN_PALLAS_BYTES,
                    in_buffer_budget_bytes=_DEFAULT_IN_BUFFER_BUDGET_BYTES):
    """Pallas equivalent of EmbMarginLoss.forward(*embeddings)."""
    # TODO(synk): heterogeneous embeddings still get one pallas_call each; a
    # fully fused single-call version would need a scalar-prefetched boundary
    # table over one concatenated lane-packed stream.
    total = jnp.float32(0.0)
    for emb in embeddings:
        if emb.size * emb.dtype.itemsize < min_pallas_bytes:
            total = total + _single_emb_margin_loss_xla(emb, power)
        else:
            total = total + _single_emb_margin_loss_pallas(
                emb, power, in_buffer_budget_bytes)
    return total


def _reference(*embeddings, power=2):
    total = jnp.float32(0.0)
    for emb in embeddings:
        e = emb.astype(jnp.float32)
        norm_e = jnp.sum(e ** power, axis=1, keepdims=True)
        total = total + jnp.sum(jnp.maximum(norm_e - 1.0, 0.0))
    return total


if __name__ == "__main__":
    key = jax.random.PRNGKey(0)
    k1, k2, k3, k4 = jax.random.split(key, 4)

    # Small tables (typical RecBole [batch, hidden] shapes) -> XLA bypass path.
    emb_small_a = jax.random.normal(k1, (16, 32), dtype=jnp.float32) * 0.5
    emb_small_b = jax.random.normal(k2, (12, 32), dtype=jnp.float32) * 0.5
    # Moderate tables that exceed the bypass threshold -> Pallas kernel:
    #   packed path (D=64 | 128, odd row count -> partial tail handling), and
    #   generic path (D=160, lane-sparse, rows not a multiple of 8).
    emb_packed = jax.random.normal(k3, (4100, 64), dtype=jnp.float32) * 0.2
    emb_wide = jax.random.normal(k4, (2050, 160), dtype=jnp.float32) * 0.2

    embs = (emb_small_a, emb_small_b, emb_packed, emb_wide)
    ref = jax.block_until_ready(_reference(*embs, power=2))

    # 1) Default configuration (large tiles, XLA bypass for the tiny tables).
    loss = jax.block_until_ready(emb_margin_loss(*embs, power=2))
    assert jnp.allclose(loss, ref, rtol=1e-4, atol=1e-2), (loss, ref)

    # 2) Forced small-tile configuration: exercises multi-tile accumulation,
    #    the pl.when-gated partial-tail mask, the clamped 2-way outer split,
    #    and the Pallas path for every embedding (including tiny ones).
    loss2 = jax.block_until_ready(
        emb_margin_loss(*embs, power=2, min_pallas_bytes=0,
                        in_buffer_budget_bytes=64 * 1024))
    assert jnp.allclose(loss2, ref, rtol=1e-4, atol=1e-2), (loss2, ref)

    print("KERNEL_OK")
</pallas_src>

<mosaic_0001>
module attributes {stable_mosaic.version = 11 : i64} {
  func.func @_emb_margin_kernel(%arg0: i32, %arg1: i32, %arg2: memref<128x128xf32, #tpu.memory_space<vmem>>, %arg3: memref<2050x128xf32, #tpu.memory_space<vmem>>, %arg4: memref<1x1x128xf32, #tpu.memory_space<vmem>>) attributes {dimension_semantics = [#tpu.dimension_semantics<parallel>, #tpu.dimension_semantics<arbitrary>], iteration_bounds = array<i64: 1, 1>, scalar_prefetch = 0 : i64, scratch_operands = 0 : i64, tpu.core_type = #tpu.core_type<tc>, window_params = [{pipeline_mode = #tpu.pipeline_mode<synchronous>, transform_indices = @transform_0, window_bounds = array<i64: 128, 128>}, {transform_indices = @transform_1, window_bounds = array<i64: 2050, 128>}, {transform_indices = @transform_2, window_bounds = array<i64: 1, 1, 128>}]} {
    %c0_i32 = arith.constant 0 : i32
    %0 = arith.cmpi eq, %arg1, %c0_i32 : i32
    %1 = arith.extui %0 : i1 to i32
    %c0_i32_0 = arith.constant 0 : i32
    %2 = arith.cmpi ne, %1, %c0_i32_0 : i32
    scf.if %2 {
      %cst_10 = arith.constant 0.000000e+00 : f32
      %21 = vector.broadcast %cst_10 : f32 to vector<1x1x128xf32>
      %c0_11 = arith.constant 0 : index
      %c0_12 = arith.constant 0 : index
      %c0_13 = arith.constant 0 : index
      %22 = vector.load %arg4[%c0_11, %c0_12, %c0_13] : memref<1x1x128xf32, #tpu.memory_space<vmem>>, vector<1x1x128xf32>
      tpu.vector_store %arg4[%c0_11, %c0_12, %c0_13], %21 {strides = array<i32>} : memref<1x1x128xf32, #tpu.memory_space<vmem>>, vector<1x1x128xf32>,
    } else {
    }
    %c0 = arith.constant 0 : index
    %c0_1 = arith.constant 0 : index
    %3 = vector.load %arg3[%c0, %c0_1] : memref<2050x128xf32, #tpu.memory_space<vmem>>, vector<2050x128xf32>
    %4 = arith.mulf %3, %3 : vector<2050x128xf32>
    %c0_2 = arith.constant 0 : index
    %c0_3 = arith.constant 0 : index
    %5 = vector.load %arg2[%c0_2, %c0_3] : memref<128x128xf32, #tpu.memory_space<vmem>>, vector<128x128xf32>
    %cst = arith.constant dense<0.000000e+00> : vector<2050x128xf32>
    %6 = tpu.matmul %4, %5, %cst {dimension_numbers = #tpu.dot_dimension_numbers<[1], [0], [0], [1], [0, 0, 1, 1], [], []>} : vector<2050x128xf32>, vector<128x128xf32>, vector<2050x128xf32> -> vector<2050x128xf32>
    %cst_4 = arith.constant 1.000000e+00 : f32
    %7 = vector.broadcast %cst_4 : f32 to vector<2050x128xf32>
    %8 = arith.subf %6, %7 : vector<2050x128xf32>
    %cst_5 = arith.constant 0.000000e+00 : f32
    %9 = vector.broadcast %cst_5 : f32 to vector<2050x128xf32>
    %10 = arith.maximumf %8, %9 : vector<2050x128xf32>
    %c1_i32 = arith.constant 1 : i32
    %11 = arith.muli %arg0, %c1_i32 : i32
    %12 = arith.addi %11, %arg1 : i32
    %c1_i32_6 = arith.constant 1 : i32
    %13 = arith.addi %12, %c1_i32_6 : i32
    %c2050_i32 = arith.constant 2050 : i32
    %14 = arith.muli %13, %c2050_i32 : i32
    %c2050_i32_7 = arith.constant 2050 : i32
    %15 = arith.cmpi sle, %14, %c2050_i32_7 : i32
    %16 = arith.extui %15 : i1 to i32
    %c0_i32_8 = arith.constant 0 : i32
    %17 = arith.cmpi ne, %16, %c0_i32_8 : i32
    scf.if %17 {
      %c0_10 = arith.constant 0 : index
      %c0_11 = arith.constant 0 : index
      %c0_12 = arith.constant 0 : index
      %21 = vector.load %arg4[%c0_10, %c0_11, %c0_12] : memref<1x1x128xf32, #tpu.memory_space<vmem>>, vector<1x1x128xf32>
      %cst_13 = arith.constant dense<0.000000e+00> : vector<128xf32>
      %22 = vector.multi_reduction <add>, %10, %cst_13 [0] : vector<2050x128xf32> to vector<128xf32>
      %23 = vector.shape_cast %22 : vector<128xf32> to vector<1x128xf32>
      %24 = vector.shape_cast %23 : vector<1x128xf32> to vector<1x1x128xf32>
      %25 = arith.addf %21, %24 : vector<1x1x128xf32>
      %c0_14 = arith.constant 0 : index
      %c0_15 = arith.constant 0 : index
      %c0_16 = arith.constant 0 : index
      %26 = vector.load %arg4[%c0_14, %c0_15, %c0_16] : memref<1x1x128xf32, #tpu.memory_space<vmem>>, vector<1x1x128xf32>
      tpu.vector_store %arg4[%c0_14, %c0_15, %c0_16], %25 {strides = array<i32>} : memref<1x1x128xf32, #tpu.memory_space<vmem>>, vector<1x1x128xf32>,
    } else {
    }
    %true = arith.constant true
    %18 = arith.xori %15, %true : i1
    %19 = arith.extui %18 : i1 to i32
    %c0_i32_9 = arith.constant 0 : i32
    %20 = arith.cmpi ne, %19, %c0_i32_9 : i32
    scf.if %20 {
      %c2050_i32_10 = arith.constant 2050 : i32
      %21 = arith.muli %12, %c2050_i32_10 : i32
      %22 = tpu.iota {dimensions = array<i32: 0>} : vector<2050x128xi32>
      %23 = vector.broadcast %21 : i32 to vector<2050x128xi32>
      %24 = arith.addi %22, %23 : vector<2050x128xi32>
      %c2050_i32_11 = arith.constant 2050 : i32
      %25 = vector.broadcast %c2050_i32_11 : i32 to vector<2050x128xi32>
      %26 = arith.cmpi slt, %24, %25 : vector<2050x128xi32>
      %cst_12 = arith.constant 0.000000e+00 : f32
      %27 = vector.broadcast %cst_12 : f32 to vector<2050x128xf32>
      %28 = arith.select %26, %10, %27 : vector<2050x128xi1>, vector<2050x128xf32>
      %c0_13 = arith.constant 0 : index
      %c0_14 = arith.constant 0 : index
      %c0_15 = arith.constant 0 : index
      %29 = vector.load %arg4[%c0_13, %c0_14, %c0_15] : memref<1x1x128xf32, #tpu.memory_space<vmem>>, vector<1x1x128xf32>
      %cst_16 = arith.constant dense<0.000000e+00> : vector<128xf32>
      %30 = vector.multi_reduction <add>, %28, %cst_16 [0] : vector<2050x128xf32> to vector<128xf32>
      %31 = vector.shape_cast %30 : vector<128xf32> to vector<1x128xf32>
      %32 = vector.shape_cast %31 : vector<1x128xf32> to vector<1x1x128xf32>
      %33 = arith.addf %29, %32 : vector<1x1x128xf32>
      %c0_17 = arith.constant 0 : index
      %c0_18 = arith.constant 0 : index
      %c0_19 = arith.constant 0 : index
      %34 = vector.load %arg4[%c0_17, %c0_18, %c0_19] : memref<1x1x128xf32, #tpu.memory_space<vmem>>, vector<1x1x128xf32>
      tpu.vector_store %arg4[%c0_17, %c0_18, %c0_19], %33 {strides = array<i32>} : memref<1x1x128xf32, #tpu.memory_space<vmem>>, vector<1x1x128xf32>,
    } else {
    }
    return
  }
  func.func @transform_0(%arg0: i32, %arg1: i32) -> (i32, i32) {
    %c0_i32 = arith.constant 0 : i32
    %c0_i32_0 = arith.constant 0 : i32
    %c0_i32_1 = arith.constant 0 : i32
    return %c0_i32, %c0_i32_0 : i32, i32
  }
  func.func @transform_1(%arg0: i32, %arg1: i32) -> (i32, i32) {
    %c1_i32 = arith.constant 1 : i32
    %0 = arith.muli %arg0, %c1_i32 : i32
    %1 = arith.addi %0, %arg1 : i32
    %c0_i32 = arith.constant 0 : i32
    %2 = arith.minsi %1, %c0_i32 : i32
    %c0_i32_0 = arith.constant 0 : i32
    %c0_i32_1 = arith.constant 0 : i32
    return %2, %c0_i32_0 : i32, i32
  }
  func.func @transform_2(%arg0: i32, %arg1: i32) -> (i32, i32, i32) {
    %c0_i32 = arith.constant 0 : i32
    %c0_i32_0 = arith.constant 0 : i32
    %c0_i32_1 = arith.constant 0 : i32
    return %arg0, %c0_i32, %c0_i32_0 : i32, i32, i32
  }
}

</mosaic_0001>

<llo_original>
// kernel: tpu_custom_call.1
$region0: #{tpu_custom_call.1}
  #allocation0 [shape = 'u32[]', space=smem, size = 0x4, offset = 0x4, fixed_abs, tag = 'smem constant byte address 0x4 - core index']
  #allocation1 [shape = 'u32[144,128]{1,0:T(1,128)}', space=vmem, size = 0x12000, scoped, tag = 'internal scratch']
  %s0 = inlined_call_operand.hbm [shape: f32[128,128], index: 0, kind: input, shape index: {}]
  %s1 = inlined_call_operand.hbm [shape: f32[2050,128], index: 1, kind: input, shape index: {}]
  %s2 = inlined_call_operand.hbm [shape: f32[1,1,128], index: 2, kind: output, shape index: {}]
  %s3 = sld [smem:[#allocation0]]
  $region38: #{tpu_custom_call.1} parent=0
    _
  %s5 = ssub.s32 1, %s3
  %s6 = scalar_select 0, %s5, %s3
  $region1: #{tpu_custom_call.1} parent=0
    #allocation2 [shape = 'u8[65536]{0}', space=vmem, size = 0x10000, scoped, tag = 'input window, operand 0, single buffered']
    #allocation3 [shape = 's32[1]{0}', space=sflag, size = 0x4, scoped, tag = 'scoped memory for tpu_custom_call.1']
    #allocation4 [shape = 's32[1]{0}', space=sflag, size = 0x4, scoped, tag = 'scoped memory for tpu_custom_call.1']
    #allocation5 [shape = 'u8[1052672]{0}', space=vmem, size = 0x101000, scoped, tag = 'input window, operand 1, single buffered']
    #allocation6 [shape = 's32[1]{0}', space=sflag, size = 0x4, scoped, tag = 'scoped memory for tpu_custom_call.1']
    #allocation7 [shape = 'u8[512]{0}', space=vmem, size = 0x400, scoped, tag = 'output window, operand 0, single buffered']
    %7 = vsyncpa [#allocation3], 0
    %8 = vsyncpa [#allocation6], 0
    %9 = vsyncpa [#allocation4], 0
    // Predicated region
    $region2: #{tpu_custom_call.1} parent=1 // pred_check
      _
    $region3: #{tpu_custom_call.1} parent=1 // pred_check_branch
      %11 = sbr.rel (0) target = $region5
    $region4: #{tpu_custom_call.1} parent=1 // pred_region
      %s13 = ssub.s32 2048, 2048
      %14 = vsyncadd [#allocation3], %s13
      %s15 = sshll.u32 [#allocation2], 4
      %s16 = int_to_ptr.vmem [resolvable:$true] %s15
      %21 = dma.hbm_to_vmem [thread:$0]  %s0, 2048, %s16, [#allocation3], 128, 128, 8
    $region5: #{tpu_custom_call.1} parent=1 // pred_fallthru
      _
    // Predicated region
    $region6: #{tpu_custom_call.1} parent=1 // pred_check
      _
    $region7: #{tpu_custom_call.1} parent=1 // pred_check_branch
      %23 = sbr.rel (0) target = $region9
    $region8: #{tpu_custom_call.1} parent=1 // pred_region
      %s24 = sadd.s32 0, 0
      %p25 = scmp.lt.s32.totalorder %s24, 0
      %s26 = scalar_select %p25, %s24, 0
      %s27 = smul.u32 257, %s26
      %s29 = ssub.s32 32896, 32896
      %30 = vsyncadd [#allocation6], %s29
      %s31 = smul.addr %s27, 128
      %s32 = scalar_lea.hbm %s1, %s31
      %s33 = sshll.u32 [#allocation5], 4
      %s34 = int_to_ptr.vmem [resolvable:$true] %s33
      %39 = dma.hbm_to_vmem [thread:$0]  %s32, 32896, %s34, [#allocation6], 128, 128, 8
    $region9: #{tpu_custom_call.1} parent=1 // pred_fallthru
      _
    // Predicated region
    $region10: #{tpu_custom_call.1} parent=1 // pred_check
      _
    $region11: #{tpu_custom_call.1} parent=1 // pred_check_branch
      %41 = sbr.rel (0) target = $region13
    $region12: #{tpu_custom_call.1} parent=1 // pred_region
      %42 = dma.done [#allocation3], 2048
    $region13: #{tpu_custom_call.1} parent=1 // pred_fallthru
      _
    // Predicated region
    $region14: #{tpu_custom_call.1} parent=1 // pred_check
      _
    $region15: #{tpu_custom_call.1} parent=1 // pred_check_branch
      %44 = sbr.rel (0) target = $region17
    $region16: #{tpu_custom_call.1} parent=1 // pred_region
      %45 = dma.done [#allocation6], 32896
    $region17: #{tpu_custom_call.1} parent=1 // pred_fallthru
      _
    %s46 = sadd.s32 0, 0
    %p47 = scmp.lt.s32.totalorder %s46, 0
    %s48 = scalar_select %p47, %s46, 0
    %s49 = smul.u32 257, %s48
    %p50 = scmp.eq.s32.totalorder 0, 0
    // Predicated region
    $region18: #{tpu_custom_call.1} parent=1 // pred_check
      %p51 = pneg %p50
    $region19: #{tpu_custom_call.1} parent=1 // pred_check_branch
      %53 = sbr.rel (%p51) target = $region21
    $region20: #{tpu_custom_call.1} parent=1 // pred_region
      %54 = vst [vmem:[#allocation7] sm:$0x1] 0.0
    $region21: #{tpu_custom_call.1} parent=1 // pred_fallthru
      _
    %v55 = vld [vmem:[#allocation5] sm:$0xff]
    %v56 = vld [vmem:[#allocation5 + $0x8] sm:$0xff]
    %v57 = vld [vmem:[#allocation5 + $0x10] sm:$0xff]
    %v58 = vld [vmem:[#allocation5 + $0x18] sm:$0xff]
    %v59 = vld [vmem:[#allocation5 + $0x20] sm:$0xff]
    %v60 = vld [vmem:[#allocation5 + $0x28] sm:$0xff]
    %v61 = vld [vmem:[#allocation5 + $0x30] sm:$0xff]
    %v62 = vld [vmem:[#allocation5 + $0x38] sm:$0xff]
    %v63 = vld [vmem:[#allocation5 + $0x40] sm:$0xff]
    %v64 = vld [vmem:[#allocation5 + $0x48] sm:$0xff]
    %v65 = vld [vmem:[#allocation5 + $0x50] sm:$0xff]
    %v66 = vld [vmem:[#allocation5 + $0x58] sm:$0xff]
    %v67 = vld [vmem:[#allocation5 + $0x60] sm:$0xff]
    %v68 = vld [vmem:[#allocation5 + $0x68] sm:$0xff]
    %v69 = vld [vmem:[#allocation5 + $0x70] sm:$0xff]
    %v70 = vld [vmem:[#allocation5 + $0x78] sm:$0xff]
    %v71 = vld [vmem:[#allocation5 + $0x80] sm:$0xff]
    %v72 = vld [vmem:[#allocation5 + $0x88] sm:$0xff]
    %v73 = vld [vmem:[#allocation5 + $0x90] sm:$0xff]
    %v74 = vld [vmem:[#allocation5 + $0x98] sm:$0xff]
    %v75 = vld [vmem:[#allocation5 + $0xa0] sm:$0xff]
    %v76 = vld [vmem:[#allocation5 + $0xa8] sm:$0xff]
    %v77 = vld [vmem:[#allocation5 + $0xb0] sm:$0xff]
    %v78 = vld [vmem:[#allocation5 + $0xb8] sm:$0xff]
    %v79 = vld [vmem:[#allocation5 + $0xc0] sm:$0xff]
    %v80 = vld [vmem:[#allocation5 + $0xc8] sm:$0xff]
    %v81 = vld [vmem:[#allocation5 + $0xd0] sm:$0xff]
    %v82 = vld [vmem:[#allocation5 + $0xd8] sm:$0xff]
    %v83 = vld [vmem:[#allocation5 + $0xe0] sm:$0xff]
    %v84 = vld [vmem:[#allocation5 + $0xe8] sm:$0xff]
    %v85 = vld [vmem:[#allocation5 + $0xf0] sm:$0xff]
    %v86 = vld [vmem:[#allocation5 + $0xf8] sm:$0xff]
    %v87 = vld [vmem:[#allocation5 + $0x100] sm:$0xff]
    %v88 = vld [vmem:[#allocation5 + $0x108] sm:$0xff]
    %v89 = vld [vmem:[#allocation5 + $0x110] sm:$0xff]
    %v90 = vld [vmem:[#allocation5 + $0x118] sm:$0xff]
    %v91 = vld [vmem:[#allocation5 + $0x120] sm:$0xff]
    %v92 = vld [vmem:[#allocation5 + $0x128] sm:$0xff]
    %v93 = vld [vmem:[#allocation5 + $0x130] sm:$0xff]
    %v94 = vld [vmem:[#allocation5 + $0x138] sm:$0xff]
    %v95 = vld [vmem:[#allocation5 + $0x140] sm:$0xff]
    %v96 = vld [vmem:[#allocation5 + $0x148] sm:$0xff]
    %v97 = vld [vmem:[#allocation5 + $0x150] sm:$0xff]
    %v98 = vld [vmem:[#allocation5 + $0x158] sm:$0xff]
    %v99 = vld [vmem:[#allocation5 + $0x160] sm:$0xff]
    %v100 = vld [vmem:[#allocation5 + $0x168] sm:$0xff]
    %v101 = vld [vmem:[#allocation5 + $0x170] sm:$0xff]
    %v102 = vld [vmem:[#allocation5 + $0x178] sm:$0xff]
    %v103 = vld [vmem:[#allocation5 + $0x180] sm:$0xff]
    %v104 = vld [vmem:[#allocation5 + $0x188] sm:$0xff]
    %v105 = vld [vmem:[#allocation5 + $0x190] sm:$0xff]
    %v106 = vld [vmem:[#allocation5 + $0x198] sm:$0xff]
    %v107 = vld [vmem:[#allocation5 + $0x1a0] sm:$0xff]
    %v108 = vld [vmem:[#allocation5 + $0x1a8] sm:$0xff]
    %v109 = vld [vmem:[#allocation5 + $0x1b0] sm:$0xff]
    %v110 = vld [vmem:[#allocation5 + $0x1b8] sm:$0xff]
    %v111 = vld [vmem:[#allocation5 + $0x1c0] sm:$0xff]
    %v112 = vld [vmem:[#allocation5 + $0x1c8] sm:$0xff]
    %v113 = vld [vmem:[#allocation5 + $0x1d0] sm:$0xff]
    %v114 = vld [vmem:[#allocation5 + $0x1d8] sm:$0xff]
    %v115 = vld [vmem:[#allocation5 + $0x1e0] sm:$0xff]
    %v116 = vld [vmem:[#allocation5 + $0x1e8] sm:$0xff]
    %v117 = vld [vmem:[#allocation5 + $0x1f0] sm:$0xff]
    %v118 = vld [vmem:[#allocation5 + $0x1f8] sm:$0xff]
    %v119 = vld [vmem:[#allocation5 + $0x200] sm:$0xff]
    %v120 = vld [vmem:[#allocation5 + $0x208] sm:$0xff]
    %v121 = vld [vmem:[#allocation5 + $0x210] sm:$0xff]
    %v122 = vld [vmem:[#allocation5 + $0x218] sm:$0xff]
    %v123 = vld [vmem:[#allocation5 + $0x220] sm:$0xff]
    %v124 = vld [vmem:[#allocation5 + $0x228] sm:$0xff]
    %v125 = vld [vmem:[#allocation5 + $0x230] sm:$0xff]
    %v126 = vld [vmem:[#allocation5 + $0x238] sm:$0xff]
    %v127 = vld [vmem:[#allocation5 + $0x240] sm:$0xff]
    %v128 = vld [vmem:[#allocation5 + $0x248] sm:$0xff]
    %v129 = vld [vmem:[#allocation5 + $0x250] sm:$0xff]
    %v130 = vld [vmem:[#allocation5 + $0x258] sm:$0xff]
    %v131 = vld [vmem:[#allocation5 + $0x260] sm:$0xff]
    %v132 = vld [vmem:[#allocation5 + $0x268] sm:$0xff]
    %v133 = vld [vmem:[#allocation5 + $0x270] sm:$0xff]
    %v134 = vld [vmem:[#allocation5 + $0x278] sm:$0xff]
    %v135 = vld [vmem:[#allocation5 + $0x280] sm:$0xff]
    %v136 = vld [vmem:[#allocation5 + $0x288] sm:$0xff]
    %v137 = vld [vmem:[#allocation5 + $0x290] sm:$0xff]
    %v138 = vld [vmem:[#allocation5 + $0x298] sm:$0xff]
    %v139 = vld [vmem:[#allocation5 + $0x2a0] sm:$0xff]
    %v140 = vld [vmem:[#allocation5 + $0x2a8] sm:$0xff]
    %v141 = vld [vmem:[#allocation5 + $0x2b0] sm:$0xff]
    %v142 = vld [vmem:[#allocation5 + $0x2b8] sm:$0xff]
    %v143 = vld [vmem:[#allocation5 + $0x2c0] sm:$0xff]
    %v144 = vld [vmem:[#allocation5 + $0x2c8] sm:$0xff]
    %v145 = vld [vmem:[#allocation5 + $0x2d0] sm:$0xff]
    %v146 = vld [vmem:[#allocation5 + $0x2d8] sm:$0xff]
    %v147 = vld [vmem:[#allocation5 + $0x2e0] sm:$0xff]
    %v148 = vld [vmem:[#allocation5 + $0x2e8] sm:$0xff]
    %v149 = vld [vmem:[#allocation5 + $0x2f0] sm:$0xff]
    %v150 = vld [vmem:[#allocation5 + $0x2f8] sm:$0xff]
    %v151 = vld [vmem:[#allocation5 + $0x300] sm:$0xff]
    %v152 = vld [vmem:[#allocation5 + $0x308] sm:$0xff]
    %v153 = vld [vmem:[#allocation5 + $0x310] sm:$0xff]
    %v154 = vld [vmem:[#allocation5 + $0x318] sm:$0xff]
    %v155 = vld [vmem:[#allocation5 + $0x320] sm:$0xff]
    %v156 = vld [vmem:[#allocation5 + $0x328] sm:$0xff]
    %v157 = vld [vmem:[#allocation5 + $0x330] sm:$0xff]
    %v158 = vld [vmem:[#allocation5 + $0x338] sm:$0xff]
    %v159 = vld [vmem:[#allocation5 + $0x340] sm:$0xff]
    %v160 = vld [vmem:[#allocation5 + $0x348] sm:$0xff]
    %v161 = vld [vmem:[#allocation5 + $0x350] sm:$0xff]
    %v162 = vld [vmem:[#allocation5 + $0x358] sm:$0xff]
    %v163 = vld [vmem:[#allocation5 + $0x360] sm:$0xff]
    %v164 = vld [vmem:[#allocation5 + $0x368] sm:$0xff]
    %v165 = vld [vmem:[#allocation5 + $0x370] sm:$0xff]
    %v166 = vld [vmem:[#allocation5 + $0x378] sm:$0xff]
    %v167 = vld [vmem:[#allocation5 + $0x380] sm:$0xff]
    %v168 = vld [vmem:[#allocation5 + $0x388] sm:$0xff]
    %v169 = vld [vmem:[#allocation5 + $0x390] sm:$0xff]
    %v170 = vld [vmem:[#allocation5 + $0x398] sm:$0xff]
    %v171 = vld [vmem:[#allocation5 + $0x3a0] sm:$0xff]
    %v172 = vld [vmem:[#allocation5 + $0x3a8] sm:$0xff]
    %v173 = vld [vmem:[#allocation5 + $0x3b0] sm:$0xff]
    %v174 = vld [vmem:[#allocation5 + $0x3b8] sm:$0xff]
    %v175 = vld [vmem:[#allocation5 + $0x3c0] sm:$0xff]
    %v176 = vld [vmem:[#allocation5 + $0x3c8] sm:$0xff]
    %v177 = vld [vmem:[#allocation5 + $0x3d0] sm:$0xff]
    %v178 = vld [vmem:[#allocation5 + $0x3d8] sm:$0xff]
    %v179 = vld [vmem:[#allocation5 + $0x3e0] sm:$0xff]
    %v180 = vld [vmem:[#allocation5 + $0x3e8] sm:$0xff]
    %v181 = vld [vmem:[#allocation5 + $0x3f0] sm:$0xff]
    %v182 = vld [vmem:[#allocation5 + $0x3f8] sm:$0xff]
    %v183 = vld [vmem:[#allocation5 + $0x400] sm:$0xff]
    %v184 = vld [vmem:[#allocation5 + $0x408] sm:$0xff]
    %v185 = vld [vmem:[#allocation5 + $0x410] sm:$0xff]
    %v186 = vld [vmem:[#allocation5 + $0x418] sm:$0xff]
    %v187 = vld [vmem:[#allocation5 + $0x420] sm:$0xff]
    %v188 = vld [vmem:[#allocation5 + $0x428] sm:$0xff]
    %v189 = vld [vmem:[#allocation5 + $0x430] sm:$0xff]
    %v190 = vld [vmem:[#allocation5 + $0x438] sm:$0xff]
    %v191 = vld [vmem:[#allocation5 + $0x440] sm:$0xff]
    %v192 = vld [vmem:[#allocation5 + $0x448] sm:$0xff]
    %v193 = vld [vmem:[#allocation5 + $0x450] sm:$0xff]
    %v194 = vld [vmem:[#allocation5 + $0x458] sm:$0xff]
    %v195 = vld [vmem:[#allocation5 + $0x460] sm:$0xff]
    %v196 = vld [vmem:[#allocation5 + $0x468] sm:$0xff]
    %v197 = vld [vmem:[#allocation5 + $0x470] sm:$0xff]
    %v198 = vld [vmem:[#allocation5 + $0x478] sm:$0xff]
    %v199 = vld [vmem:[#allocation5 + $0x480] sm:$0xff]
    %v200 = vld [vmem:[#allocation5 + $0x488] sm:$0xff]
    %v201 = vld [vmem:[#allocation5 + $0x490] sm:$0xff]
    %v202 = vld [vmem:[#allocation5 + $0x498] sm:$0xff]
    %v203 = vld [vmem:[#allocation5 + $0x4a0] sm:$0xff]
    %v204 = vld [vmem:[#allocation5 + $0x4a8] sm:$0xff]
    %v205 = vld [vmem:[#allocation5 + $0x4b0] sm:$0xff]
    %v206 = vld [vmem:[#allocation5 + $0x4b8] sm:$0xff]
    %v207 = vld [vmem:[#allocation5 + $0x4c0] sm:$0xff]
    %v208 = vld [vmem:[#allocation5 + $0x4c8] sm:$0xff]
    %v209 = vld [vmem:[#allocation5 + $0x4d0] sm:$0xff]
    %v210 = vld [vmem:[#allocation5 + $0x4d8] sm:$0xff]
    %v211 = vld [vmem:[#allocation5 + $0x4e0] sm:$0xff]
    %v212 = vld [vmem:[#allocation5 + $0x4e8] sm:$0xff]
    %v213 = vld [vmem:[#allocation5 + $0x4f0] sm:$0xff]
    %v214 = vld [vmem:[#allocation5 + $0x4f8] sm:$0xff]
    %v215 = vld [vmem:[#allocation5 + $0x500] sm:$0xff]
    %v216 = vld [vmem:[#allocation5 + $0x508] sm:$0xff]
    %v217 = vld [vmem:[#allocation5 + $0x510] sm:$0xff]
    %v218 = vld [vmem:[#allocation5 + $0x518] sm:$0xff]
    %v219 = vld [vmem:[#allocation5 + $0x520] sm:$0xff]
    %v220 = vld [vmem:[#allocation5 + $0x528] sm:$0xff]
    %v221 = vld [vmem:[#allocation5 + $0x530] sm:$0xff]
    %v222 = vld [vmem:[#allocation5 + $0x538] sm:$0xff]
    %v223 = vld [vmem:[#allocation5 + $0x540] sm:$0xff]
    %v224 = vld [vmem:[#allocation5 + $0x548] sm:$0xff]
    %v225 = vld [vmem:[#allocation5 + $0x550] sm:$0xff]
    %v226 = vld [vmem:[#allocation5 + $0x558] sm:$0xff]
    %v227 = vld [vmem:[#allocation5 + $0x560] sm:$0xff]
    %v228 = vld [vmem:[#allocation5 + $0x568] sm:$0xff]
    %v229 = vld [vmem:[#allocation5 + $0x570] sm:$0xff]
    %v230 = vld [vmem:[#allocation5 + $0x578] sm:$0xff]
    %v231 = vld [vmem:[#allocation5 + $0x580] sm:$0xff]
    %v232 = vld [vmem:[#allocation5 + $0x588] sm:$0xff]
    %v233 = vld [vmem:[#allocation5 + $0x590] sm:$0xff]
    %v234 = vld [vmem:[#allocation5 + $0x598] sm:$0xff]
    %v235 = vld [vmem:[#allocation5 + $0x5a0] sm:$0xff]
    %v236 = vld [vmem:[#allocation5 + $0x5a8] sm:$0xff]
    %v237 = vld [vmem:[#allocation5 + $0x5b0] sm:$0xff]
    %v238 = vld [vmem:[#allocation5 + $0x5b8] sm:$0xff]
    %v239 = vld [vmem:[#allocation5 + $0x5c0] sm:$0xff]
    %v240 = vld [vmem:[#allocation5 + $0x5c8] sm:$0xff]
    %v241 = vld [vmem:[#allocation5 + $0x5d0] sm:$0xff]
    %v242 = vld [vmem:[#allocation5 + $0x5d8] sm:$0xff]
    %v243 = vld [vmem:[#allocation5 + $0x5e0] sm:$0xff]
    %v244 = vld [vmem:[#allocation5 + $0x5e8] sm:$0xff]
    %v245 = vld [vmem:[#allocation5 + $0x5f0] sm:$0xff]
    %v246 = vld [vmem:[#allocation5 + $0x5f8] sm:$0xff]
    %v247 = vld [vmem:[#allocation5 + $0x600] sm:$0xff]
    %v248 = vld [vmem:[#allocation5 + $0x608] sm:$0xff]
    %v249 = vld [vmem:[#allocation5 + $0x610] sm:$0xff]
    %v250 = vld [vmem:[#allocation5 + $0x618] sm:$0xff]
    %v251 = vld [vmem:[#allocation5 + $0x620] sm:$0xff]
    %v252 = vld [vmem:[#allocation5 + $0x628] sm:$0xff]
    %v253 = vld [vmem:[#allocation5 + $0x630] sm:$0xff]
    %v254 = vld [vmem:[#allocation5 + $0x638] sm:$0xff]
    %v255 = vld [vmem:[#allocation5 + $0x640] sm:$0xff]
    %v256 = vld [vmem:[#allocation5 + $0x648] sm:$0xff]
    %v257 = vld [vmem:[#allocation5 + $0x650] sm:$0xff]
    %v258 = vld [vmem:[#allocation5 + $0x658] sm:$0xff]
    %v259 = vld [vmem:[#allocation5 + $0x660] sm:$0xff]
    %v260 = vld [vmem:[#allocation5 + $0x668] sm:$0xff]
    %v261 = vld [vmem:[#allocation5 + $0x670] sm:$0xff]
    %v262 = vld [vmem:[#allocation5 + $0x678] sm:$0xff]
    %v263 = vld [vmem:[#allocation5 + $0x680] sm:$0xff]
    %v264 = vld [vmem:[#allocation5 + $0x688] sm:$0xff]
    %v265 = vld [vmem:[#allocation5 + $0x690] sm:$0xff]
    %v266 = vld [vmem:[#allocation5 + $0x698] sm:$0xff]
    %v267 = vld [vmem:[#allocation5 + $0x6a0] sm:$0xff]
    %v268 = vld [vmem:[#allocation5 + $0x6a8] sm:$0xff]
    %v269 = vld [vmem:[#allocation5 + $0x6b0] sm:$0xff]
    %v270 = vld [vmem:[#allocation5 + $0x6b8] sm:$0xff]
    %v271 = vld [vmem:[#allocation5 + $0x6c0] sm:$0xff]
    %v272 = vld [vmem:[#allocation5 + $0x6c8] sm:$0xff]
    %v273 = vld [vmem:[#allocation5 + $0x6d0] sm:$0xff]
    %v274 = vld [vmem:[#allocation5 + $0x6d8] sm:$0xff]
    %v275 = vld [vmem:[#allocation5 + $0x6e0] sm:$0xff]
    %v276 = vld [vmem:[#allocation5 + $0x6e8] sm:$0xff]
    %v277 = vld [vmem:[#allocation5 + $0x6f0] sm:$0xff]
    %v278 = vld [vmem:[#allocation5 + $0x6f8] sm:$0xff]
    %v279 = vld [vmem:[#allocation5 + $0x700] sm:$0xff]
    %v280 = vld [vmem:[#allocation5 + $0x708] sm:$0xff]
    %v281 = vld [vmem:[#allocation5 + $0x710] sm:$0xff]
    %v282 = vld [vmem:[#allocation5 + $0x718] sm:$0xff]
    %v283 = vld [vmem:[#allocation5 + $0x720] sm:$0xff]
    %v284 = vld [vmem:[#allocation5 + $0x728] sm:$0xff]
    %v285 = vld [vmem:[#allocation5 + $0x730] sm:$0xff]
    %v286 = vld [vmem:[#allocation5 + $0x738] sm:$0xff]
    %v287 = vld [vmem:[#allocation5 + $0x740] sm:$0xff]
    %v288 = vld [vmem:[#allocation5 + $0x748] sm:$0xff]
    %v289 = vld [vmem:[#allocation5 + $0x750] sm:$0xff]
    %v290 = vld [vmem:[#allocation5 + $0x758] sm:$0xff]
    %v291 = vld [vmem:[#allocation5 + $0x760] sm:$0xff]
    %v292 = vld [vmem:[#allocation5 + $0x768] sm:$0xff]
    %v293 = vld [vmem:[#allocation5 + $0x770] sm:$0xff]
    %v294 = vld [vmem:[#allocation5 + $0x778] sm:$0xff]
    %v295 = vld [vmem:[#allocation5 + $0x780] sm:$0xff]
    %v296 = vld [vmem:[#allocation5 + $0x788] sm:$0xff]
    %v297 = vld [vmem:[#allocation5 + $0x790] sm:$0xff]
    %v298 = vld [vmem:[#allocation5 + $0x798] sm:$0xff]
    %v299 = vld [vmem:[#allocation5 + $0x7a0] sm:$0xff]
    %v300 = vld [vmem:[#allocation5 + $0x7a8] sm:$0xff]
    %v301 = vld [vmem:[#allocation5 + $0x7b0] sm:$0xff]
    %v302 = vld [vmem:[#allocation5 + $0x7b8] sm:$0xff]
    %v303 = vld [vmem:[#allocation5 + $0x7c0] sm:$0xff]
    %v304 = vld [vmem:[#allocation5 + $0x7c8] sm:$0xff]
    %v305 = vld [vmem:[#allocation5 + $0x7d0] sm:$0xff]
    %v306 = vld [vmem:[#allocation5 + $0x7d8] sm:$0xff]
    %v307 = vld [vmem:[#allocation5 + $0x7e0] sm:$0xff]
    %v308 = vld [vmem:[#allocation5 + $0x7e8] sm:$0xff]
    %v309 = vld [vmem:[#allocation5 + $0x7f0] sm:$0xff]
    %v310 = vld [vmem:[#allocation5 + $0x7f8] sm:$0xff]
    %v311 = vld [vmem:[#allocation5 + $0x800] sm:$0x3]
    %v312 = vmul.f32 %v55, %v55
    %v313 = vmul.f32 %v56, %v56
    %v314 = vmul.f32 %v57, %v57
    %v315 = vmul.f32 %v58, %v58
    %v316 = vmul.f32 %v59, %v59
    %v317 = vmul.f32 %v60, %v60
    %v318 = vmul.f32 %v61, %v61
    %v319 = vmul.f32 %v62, %v62
    %v320 = vmul.f32 %v63, %v63
    %v321 = vmul.f32 %v64, %v64
    %v322 = vmul.f32 %v65, %v65
    %v323 = vmul.f32 %v66, %v66
    %v324 = vmul.f32 %v67, %v67
    %v325 = vmul.f32 %v68, %v68
    %v326 = vmul.f32 %v69, %v69
    %v327 = vmul.f32 %v70, %v70
    %v328 = vmul.f32 %v71, %v71
    %v329 = vmul.f32 %v72, %v72
    %v330 = vmul.f32 %v73, %v73
    %v331 = vmul.f32 %v74, %v74
    %v332 = vmul.f32 %v75, %v75
    %v333 = vmul.f32 %v76, %v76
    %v334 = vmul.f32 %v77, %v77
    %v335 = vmul.f32 %v78, %v78
    %v336 = vmul.f32 %v79, %v79
    %v337 = vmul.f32 %v80, %v80
    %v338 = vmul.f32 %v81, %v81
    %v339 = vmul.f32 %v82, %v82
    %v340 = vmul.f32 %v83, %v83
    %v341 = vmul.f32 %v84, %v84
    %v342 = vmul.f32 %v85, %v85
    %v343 = vmul.f32 %v86, %v86
    %v344 = vmul.f32 %v87, %v87
    %v345 = vmul.f32 %v88, %v88
    %v346 = vmul.f32 %v89, %v89
    %v347 = vmul.f32 %v90, %v90
    %v348 = vmul.f32 %v91, %v91
    %v349 = vmul.f32 %v92, %v92
    %v350 = vmul.f32 %v93, %v93
    %v351 = vmul.f32 %v94, %v94
    %v352 = vmul.f32 %v95, %v95
    %v353 = vmul.f32 %v96, %v96
    %v354 = vmul.f32 %v97, %v97
    %v355 = vmul.f32 %v98, %v98
    %v356 = vmul.f32 %v99, %v99
    %v357 = vmul.f32 %v100, %v100
    %v358 = vmul.f32 %v101, %v101
    %v359 = vmul.f32 %v102, %v102
    %v360 = vmul.f32 %v103, %v103
    %v361 = vmul.f32 %v104, %v104
    %v362 = vmul.f32 %v105, %v105
    %v363 = vmul.f32 %v106, %v106
    %v364 = vmul.f32 %v107, %v107
    %v365 = vmul.f32 %v108, %v108
    %v366 = vmul.f32 %v109, %v109
    %v367 = vmul.f32 %v110, %v110
    %v368 = vmul.f32 %v111, %v111
    %v369 = vmul.f32 %v112, %v112
    %v370 = vmul.f32 %v113, %v113
    %v371 = vmul.f32 %v114, %v114
    %v372 = vmul.f32 %v115, %v115
    %v373 = vmul.f32 %v116, %v116
    %v374 = vmul.f32 %v117, %v117
    %v375 = vmul.f32 %v118, %v118
    %v376 = vmul.f32 %v119, %v119
    %v377 = vmul.f32 %v120, %v120
    %v378 = vmul.f32 %v121, %v121
    %v379 = vmul.f32 %v122, %v122
    %v380 = vmul.f32 %v123, %v123
    %v381 = vmul.f32 %v124, %v124
    %v382 = vmul.f32 %v125, %v125
    %v383 = vmul.f32 %v126, %v126
    %v384 = vmul.f32 %v127, %v127
    %v385 = vmul.f32 %v128, %v128
    %v386 = vmul.f32 %v129, %v129
    %v387 = vmul.f32 %v130, %v130
    %v388 = vmul.f32 %v131, %v131
    %v389 = vmul.f32 %v132, %v132
    %v390 = vmul.f32 %v133, %v133
    %v391 = vmul.f32 %v134, %v134
    %v392 = vmul.f32 %v135, %v135
    %v393 = vmul.f32 %v136, %v136
    %v394 = vmul.f32 %v137, %v137
    %v395 = vmul.f32 %v138, %v138
    %v396 = vmul.f32 %v139, %v139
    %v397 = vmul.f32 %v140, %v140
    %v398 = vmul.f32 %v141, %v141
    %v399 = vmul.f32 %v142, %v142
    %v400 = vmul.f32 %v143, %v143
    %v401 = vmul.f32 %v144, %v144
    %v402 = vmul.f32 %v145, %v145
    %v403 = vmul.f32 %v146, %v146
    %v404 = vmul.f32 %v147, %v147
    %v405 = vmul.f32 %v148, %v148
    %v406 = vmul.f32 %v149, %v149
    %v407 = vmul.f32 %v150, %v150
    %v408 = vmul.f32 %v151, %v151
    %v409 = vmul.f32 %v152, %v152
    %v410 = vmul.f32 %v153, %v153
    %v411 = vmul.f32 %v154, %v154
    %v412 = vmul.f32 %v155, %v155
    %v413 = vmul.f32 %v156, %v156
    %v414 = vmul.f32 %v157, %v157
    %v415 = vmul.f32 %v158, %v158
    %v416 = vmul.f32 %v159, %v159
    %v417 = vmul.f32 %v160, %v160
    %v418 = vmul.f32 %v161, %v161
    %v419 = vmul.f32 %v162, %v162
    %v420 = vmul.f32 %v163, %v163
    %v421 = vmul.f32 %v164, %v164
    %v422 = vmul.f32 %v165, %v165
    %v423 = vmul.f32 %v166, %v166
    %v424 = vmul.f32 %v167, %v167
    %v425 = vmul.f32 %v168, %v168
    %v426 = vmul.f32 %v169, %v169
    %v427 = vmul.f32 %v170, %v170
    %v428 = vmul.f32 %v171, %v171
    %v429 = vmul.f32 %v172, %v172
    %v430 = vmul.f32 %v173, %v173
    %v431 = vmul.f32 %v174, %v174
    %v432 = vmul.f32 %v175, %v175
    %v433 = vmul.f32 %v176, %v176
    %v434 = vmul.f32 %v177, %v177
    %v435 = vmul.f32 %v178, %v178
    %v436 = vmul.f32 %v179, %v179
    %v437 = vmul.f32 %v180, %v180
    %v438 = vmul.f32 %v181, %v181
    %v439 = vmul.f32 %v182, %v182
    %v440 = vmul.f32 %v183, %v183
    %v441 = vmul.f32 %v184, %v184
    %v442 = vmul.f32 %v185, %v185
    %v443 = vmul.f32 %v186, %v186
    %v444 = vmul.f32 %v187, %v187
    %v445 = vmul.f32 %v188, %v188
    %v446 = vmul.f32 %v189, %v189
    %v447 = vmul.f32 %v190, %v190
    %v448 = vmul.f32 %v191, %v191
    %v449 = vmul.f32 %v192, %v192
    %v450 = vmul.f32 %v193, %v193
    %v451 = vmul.f32 %v194, %v194
    %v452 = vmul.f32 %v195, %v195
    %v453 = vmul.f32 %v196, %v196
    %v454 = vmul.f32 %v197, %v197
    %v455 = vmul.f32 %v198, %v198
    %v456 = vmul.f32 %v199, %v199
    %v457 = vmul.f32 %v200, %v200
    %v458 = vmul.f32 %v201, %v201
    %v459 = vmul.f32 %v202, %v202
    %v460 = vmul.f32 %v203, %v203
    %v461 = vmul.f32 %v204, %v204
    %v462 = vmul.f32 %v205, %v205
    %v463 = vmul.f32 %v206, %v206
    %v464 = vmul.f32 %v207, %v207
    %v465 = vmul.f32 %v208, %v208
    %v466 = vmul.f32 %v209, %v209
    %v467 = vmul.f32 %v210, %v210
    %v468 = vmul.f32 %v211, %v211
    %v469 = vmul.f32 %v212, %v212
    %v470 = vmul.f32 %v213, %v213
    %v471 = vmul.f32 %v214, %v214
    %v472 = vmul.f32 %v215, %v215
    %v473 = vmul.f32 %v216, %v216
    %v474 = vmul.f32 %v217, %v217
    %v475 = vmul.f32 %v218, %v218
    %v476 = vmul.f32 %v219, %v219
    %v477 = vmul.f32 %v220, %v220
    %v478 = vmul.f32 %v221, %v221
    %v479 = vmul.f32 %v222, %v222
    %v480 = vmul.f32 %v223, %v223
    %v481 = vmul.f32 %v224, %v224
    %v482 = vmul.f32 %v225, %v225
    %v483 = vmul.f32 %v226, %v226
    %v484 = vmul.f32 %v227, %v227
    %v485 = vmul.f32 %v228, %v228
    %v486 = vmul.f32 %v229, %v229
    %v487 = vmul.f32 %v230, %v230
    %v488 = vmul.f32 %v231, %v231
    %v489 = vmul.f32 %v232, %v232
    %v490 = vmul.f32 %v233, %v233
    %v491 = vmul.f32 %v234, %v234
    %v492 = vmul.f32 %v235, %v235
    %v493 = vmul.f32 %v236, %v236
    %v494 = vmul.f32 %v237, %v237
    %v495 = vmul.f32 %v238, %v238
    %v496 = vmul.f32 %v239, %v239
    %v497 = vmul.f32 %v240, %v240
    %v498 = vmul.f32 %v241, %v241
    %v499 = vmul.f32 %v242, %v242
    %v500 = vmul.f32 %v243, %v243
    %v501 = vmul.f32 %v244, %v244
    %v502 = vmul.f32 %v245, %v245
    %v503 = vmul.f32 %v246, %v246
    %v504 = vmul.f32 %v247, %v247
    %v505 = vmul.f32 %v248, %v248
    %v506 = vmul.f32 %v249, %v249
    %v507 = vmul.f32 %v250, %v250
    %v508 = vmul.f32 %v251, %v251
    %v509 = vmul.f32 %v252, %v252
    %v510 = vmul.f32 %v253, %v253
    %v511 = vmul.f32 %v254, %v254
    %v512 = vmul.f32 %v255, %v255
    %v513 = vmul.f32 %v256, %v256
    %v514 = vmul.f32 %v257, %v257
    %v515 = vmul.f32 %v258, %v258
    %v516 = vmul.f32 %v259, %v259
    %v517 = vmul.f32 %v260, %v260
    %v518 = vmul.f32 %v261, %v261
    %v519 = vmul.f32 %v262, %v262
    %v520 = vmul.f32 %v263, %v263
    %v521 = vmul.f32 %v264, %v264
    %v522 = vmul.f32 %v265, %v265
    %v523 = vmul.f32 %v266, %v266
    %v524 = vmul.f32 %v267, %v267
    %v525 = vmul.f32 %v268, %v268
    %v526 = vmul.f32 %v269, %v269
    %v527 = vmul.f32 %v270, %v270
    %v528 = vmul.f32 %v271, %v271
    %v529 = vmul.f32 %v272, %v272
    %v530 = vmul.f32 %v273, %v273
    %v531 = vmul.f32 %v274, %v274
    %v532 = vmul.f32 %v275, %v275
    %v533 = vmul.f32 %v276, %v276
    %v534 = vmul.f32 %v277, %v277
    %v535 = vmul.f32 %v278, %v278
    %v536 = vmul.f32 %v279, %v279
    %v537 = vmul.f32 %v280, %v280
    %v538 = vmul.f32 %v281, %v281
    %v539 = vmul.f32 %v282, %v282
    %v540 = vmul.f32 %v283, %v283
    %v541 = vmul.f32 %v284, %v284
    %v542 = vmul.f32 %v285, %v285
    %v543 = vmul.f32 %v286, %v286
    %v544 = vmul.f32 %v287, %v287
    %v545 = vmul.f32 %v288, %v288
    %v546 = vmul.f32 %v289, %v289
    %v547 = vmul.f32 %v290, %v290
    %v548 = vmul.f32 %v291, %v291
    %v549 = vmul.f32 %v292, %v292
    %v550 = vmul.f32 %v293, %v293
    %v551 = vmul.f32 %v294, %v294
    %v552 = vmul.f32 %v295, %v295
    %v553 = vmul.f32 %v296, %v296
    %v554 = vmul.f32 %v297, %v297
    %v555 = vmul.f32 %v298, %v298
    %v556 = vmul.f32 %v299, %v299
    %v557 = vmul.f32 %v300, %v300
    %v558 = vmul.f32 %v301, %v301
    %v559 = vmul.f32 %v302, %v302
    %v560 = vmul.f32 %v303, %v303
    %v561 = vmul.f32 %v304, %v304
    %v562 = vmul.f32 %v305, %v305
    %v563 = vmul.f32 %v306, %v306
    %v564 = vmul.f32 %v307, %v307
    %v565 = vmul.f32 %v308, %v308
    %v566 = vmul.f32 %v309, %v309
    %v567 = vmul.f32 %v310, %v310
    %v568 = vmul.f32 %v311, %v311
    %v569 = vld [vmem:[#allocation2] sm:$0xff]
    %v570 = vld [vmem:[#allocation2 + $0x8] sm:$0xff]
    %v571 = vld [vmem:[#allocation2 + $0x10] sm:$0xff]
    %v572 = vld [vmem:[#allocation2 + $0x18] sm:$0xff]
    %v573 = vld [vmem:[#allocation2 + $0x20] sm:$0xff]
    %v574 = vld [vmem:[#allocation2 + $0x28] sm:$0xff]
    %v575 = vld [vmem:[#allocation2 + $0x30] sm:$0xff]
    %v576 = vld [vmem:[#allocation2 + $0x38] sm:$0xff]
    %v577 = vld [vmem:[#allocation2 + $0x40] sm:$0xff]
    %v578 = vld [vmem:[#allocation2 + $0x48] sm:$0xff]
    %v579 = vld [vmem:[#allocation2 + $0x50] sm:$0xff]
    %v580 = vld [vmem:[#allocation2 + $0x58] sm:$0xff]
    %v581 = vld [vmem:[#allocation2 + $0x60] sm:$0xff]
    %v582 = vld [vmem:[#allocation2 + $0x68] sm:$0xff]
    %v583 = vld [vmem:[#allocation2 + $0x70] sm:$0xff]
    %v584 = vld [vmem:[#allocation2 + $0x78] sm:$0xff]
    %585 = vmatprep.subr.mxu0 0.0
    %586 = vmatpush1.msra.mxu0 %v569
    %587 = vmatprep.subr.mxu0 0.0
    %588 = vmatpush1.msra.mxu0 %v570
    %589 = vmatprep.subr.mxu0 0.0
    %590 = vmatpush1.msra.mxu0 %v571
    %591 = vmatprep.subr.mxu0 0.0
    %592 = vmatpush1.msra.mxu0 %v572
    %593 = vmatprep.subr.mxu0 0.0
    %594 = vmatpush1.msra.mxu0 %v573
    %595 = vmatprep.subr.mxu0 0.0
    %596 = vmatpush1.msra.mxu0 %v574
    %597 = vmatprep.subr.mxu0 0.0
    %598 = vmatpush1.msra.mxu0 %v575
    %599 = vmatprep.subr.mxu0 0.0
    %600 = vmatpush1.msra.mxu0 %v576
    %601 = vmatprep.subr.mxu0 0.0
    %602 = vmatpush1.msra.mxu0 %v577
    %603 = vmatprep.subr.mxu0 0.0
    %604 = vmatpush1.msra.mxu0 %v578
    %605 = vmatprep.subr.mxu0 0.0
    %606 = vmatpush1.msra.mxu0 %v579
    %607 = vmatprep.subr.mxu0 0.0
    %608 = vmatpush1.msra.mxu0 %v580
    %609 = vmatprep.subr.mxu0 0.0
    %610 = vmatpush1.msra.mxu0 %v581
    %611 = vmatprep.subr.mxu0 0.0
    %612 = vmatpush1.msra.mxu0 %v582
    %613 = vmatprep.subr.mxu0 0.0
    %614 = vmatpush1.msra.mxu0 %v583
    %615 = vmatprep.subr.mxu0 0.0
    %616 = vmatpush1.msra.mxu0 %v584
    %617 = vmatprep.subr.mxu0 0.0
    %618 = vmatpush1.msra.mxu0 0.0
    %619 = vmatprep.subr.mxu0 0.0
    %620 = vmatpush1.msra.mxu0 0.0
    %621 = vmatprep.subr.mxu0 0.0
    %622 = vmatpush1.msra.mxu0 0.0
    %623 = vmatprep.subr.mxu0 0.0
    %624 = vmatpush1.msra.mxu0 0.0
    %625 = vmatprep.subr.mxu0 0.0
    %626 = vmatpush1.msra.mxu0 0.0
    %627 = vmatprep.subr.mxu0 0.0
    %628 = vmatpush1.msra.mxu0 0.0
    %629 = vmatprep.subr.mxu0 0.0
    %630 = vmatpush1.msra.mxu0 0.0
    %631 = vmatprep.subr.mxu0 0.0
    %632 = vmatpush1.msra.mxu0 0.0
    %633 = vmatprep.subr.mxu0 0.0
    %634 = vmatpush1.msra.mxu0 0.0
    %635 = vmatprep.subr.mxu0 0.0
    %636 = vmatpush1.msra.mxu0 0.0
    %637 = vmatprep.subr.mxu0 0.0
    %638 = vmatpush1.msra.mxu0 0.0
    %639 = vmatprep.subr.mxu0 0.0
    %640 = vmatpush1.msra.mxu0 0.0
    %641 = vmatprep.subr.mxu0 0.0
    %642 = vmatpush1.msra.mxu0 0.0
    %643 = vmatprep.subr.mxu0 0.0
    %644 = vmatpush1.msra.mxu0 0.0
    %645 = vmatprep.subr.mxu0 0.0
    %646 = vmatpush1.msra.mxu0 0.0
    %647 = vmatprep.subr.mxu0 0.0
    %648 = vmatpush1.msra.mxu0 0.0
    %649 = vmatprep.mubr.f32.mxu0 0.0
    %650 = vmatmul.mubr.f32.gmra.mrb[0].mxu0 %v312
    %v651 = vpop.f32.mrb[0].mxu0
    %v652 = vadd.f32 0.0, %v651
    %v653 = vpop.f32.mrb[0].mxu0
    %654 = vmatprep.mubr.f32.mxu0 0.0
    %655 = vmatmul.mubr.f32.gmra.mrb[0].mxu0 %v313
    %v656 = vpop.f32.mrb[0].mxu0
    %v657 = vadd.f32 0.0, %v656
    %v658 = vpop.f32.mrb[0].mxu0
    %659 = vmatprep.mubr.f32.mxu0 0.0
    %660 = vmatmul.mubr.f32.gmra.mrb[0].mxu0 %v314
    %v661 = vpop.f32.mrb[0].mxu0
    %v662 = vadd.f32 0.0, %v661
    %v663 = vpop.f32.mrb[0].mxu0
    %664 = vmatprep.mubr.f32.mxu0 0.0
    %665 = vmatmul.mubr.f32.gmra.mrb[0].mxu0 %v315
    %v666 = vpop.f32.mrb[0].mxu0
    %v667 = vadd.f32 0.0, %v666
    %v668 = vpop.f32.mrb[0].mxu0
    %669 = vmatprep.mubr.f32.mxu0 0.0
    %670 = vmatmul.mubr.f32.gmra.mrb[0].mxu0 %v316
    %v671 = vpop.f32.mrb[0].mxu0
    %v672 = vadd.f32 0.0, %v671
    %v673 = vpop.f32.mrb[0].mxu0
    %674 = vmatprep.mubr.f32.mxu0 0.0
    %675 = vmatmul.mubr.f32.gmra.mrb[0].mxu0 %v317
    %v676 = vpop.f32.mrb[0].mxu0
    %v677 = vadd.f32 0.0, %v676
    %v678 = vpop.f32.mrb[0].mxu0
    %679 = vmatprep.mubr.f32.mxu0 0.0
    %680 = vmatmul.mubr.f32.gmra.mrb[0].mxu0 %v318
    %v681 = vpop.f32.mrb[0].mxu0
    %v682 = vadd.f32 0.0, %v681
    %v683 = vpop.f32.mrb[0].mxu0
    %684 = vmatprep.mubr.f32.mxu0 0.0
    %685 = vmatmul.mubr.f32.gmra.mrb[0].mxu0 %v319
    %v686 = vpop.f32.mrb[0].mxu0
    %v687 = vadd.f32 0.0, %v686
    %v688 = vpop.f32.mrb[0].mxu0
    %689 = vmatprep.mubr.f32.mxu0 0.0
    %690 = vmatmul.mubr.f32.gmra.mrb[0].mxu0 %v320
    %v691 = vpop.f32.mrb[0].mxu0
    %v692 = vadd.f32 0.0, %v691
    %v693 = vpop.f32.mrb[0].mxu0
    %694 = vmatprep.mubr.f32.mxu0 0.0
    %695 = vmatmul.mubr.f32.gmra.mrb[0].mxu0 %v321
    %v696 = vpop.f32.mrb[0].mxu0
    %v697 = vadd.f32 0.0, %v696
    %v698 = vpop.f32.mrb[0].mxu0
    %699 = vmatprep.mubr.f32.mxu0 0.0
    %700 = vmatmul.mubr.f32.gmra.mrb[0].mxu0 %v322
    %v701 = vpop.f32.mrb[0].mxu0
    %v702 = vadd.f32 0.0, %v701
    %v703 = vpop.f32.mrb[0].mxu0
    %704 = vmatprep.mubr.f32.mxu0 0.0
    %705 = vmatmul.mubr.f32.gmra.mrb[0].mxu0 %v323
    %v706 = vpop.f32.mrb[0].mxu0
    %v707 = vadd.f32 0.0, %v706
    %v708 = vpop.f32.mrb[0].mxu0
    %709 = vmatprep.mubr.f32.mxu0 0.0
    %710 = vmatmul.mubr.f32.gmra.mrb[0].mxu0 %v324
    %v711 = vpop.f32.mrb[0].mxu0
    %v712 = vadd.f32 0.0, %v711
    %v713 = vpop.f32.mrb[0].mxu0
    %714 = vmatprep.mubr.f32.mxu0 0.0
    %715 = vmatmul.mubr.f32.gmra.mrb[0].mxu0 %v325
    %v716 = vpop.f32.mrb[0].mxu0
    %v717 = vadd.f32 0.0, %v716
    %v718 = vpop.f32.mrb[0].mxu0
    %719 = vmatprep.mubr.f32.mxu0 0.0
    %720 = vmatmul.mubr.f32.gmra.mrb[0].mxu0 %v326
    %v721 = vpop.f32.mrb[0].mxu0
    %v722 = vadd.f32 0.0, %v721
    %v723 = vpop.f32.mrb[0].mxu0
    %724 = vmatprep.mubr.f32.mxu0 0.0
    %725 = vmatmul.mubr.f32.gmra.mrb[0].mxu0 %v327
    %v726 = vpop.f32.mrb[0].mxu0
    %v727 = vadd.f32 0.0, %v726
    %v728 = vpop.f32.mrb[0].mxu0
    %729 = vmatprep.mubr.f32.mxu0 0.0
    %730 = vmatmul.mubr.f32.gmra.mrb[0].mxu0 %v328
    %v731 = vpop.f32.mrb[0].mxu0
    %v732 = vadd.f32 0.0, %v731
    %v733 = vpop.f32.mrb[0].mxu0
    %734 = vmatprep.mubr.f32.mxu0 0.0
    %735 = vmatmul.mubr.f32.gmra.mrb[0].mxu0 %v329
    %v736 = vpop.f32.mrb[0].mxu0
    %v737 = vadd.f32 0.0, %v736
    %v738 = vpop.f32.mrb[0].mxu0
    %739 = vmatprep.mubr.f32.mxu0 0.0
    %740 = vmatmul.mubr.f32.gmra.mrb[0].mxu0 %v330
    %v741 = vpop.f32.mrb[0].mxu0
    %v742 = vadd.f32 0.0, %v741
    %v743 = vpop.f32.mrb[0].mxu0
    %744 = vmatprep.mubr.f32.mxu0 0.0
    %745 = vmatmul.mubr.f32.gmra.mrb[0].mxu0 %v331
    %v746 = vpop.f32.mrb[0].mxu0
    %v747 = vadd.f32 0.0, %v746
    %v748 = vpop.f32.mrb[0].mxu0
    %749 = vmatprep.mubr.f32.mxu0 0.0
    %750 = vmatmul.mubr.f32.gmra.mrb[0].mxu0 %v332
    %v751 = vpop.f32.mrb[0].mxu0
    %v752 = vadd.f32 0.0, %v751
    %v753 = vpop.f32.mrb[0].mxu0
    %754 = vmatprep.mubr.f32.mxu0 0.0
    %755 = vmatmul.mubr.f32.gmra.mrb[0].mxu0 %v333
    %v756 = vpop.f32.mrb[0].mxu0
    %v757 = vadd.f32 0.0, %v756
    %v758 = vpop.f32.mrb[0].mxu0
    %759 = vmatprep.mubr.f32.mxu0 0.0
    %760 = vmatmul.mubr.f32.gmra.mrb[0].mxu0 %v334
    %v761 = vpop.f32.mrb[0].mxu0
    %v762 = vadd.f32 0.0, %v761
    %v763 = vpop.f32.mrb[0].mxu0
    %764 = vmatprep.mubr.f32.mxu0 0.0
    %765 = vmatmul.mubr.f32.gmra.mrb[0].mxu0 %v335
    %v766 = vpop.f32.mrb[0].mxu0
    %v767 = vadd.f32 0.0, %v766
    %v768 = vpop.f32.mrb[0].mxu0
    %769 = vmatprep.mubr.f32.mxu0 0.0
    %770 = vmatmul.mubr.f32.gmra.mrb[0].mxu0 %v336
    %v771 = vpop.f32.mrb[0].mxu0
    %v772 = vadd.f32 0.0, %v771
    %v773 = vpop.f32.mrb[0].mxu0
    %774 = vmatprep.mubr.f32.mxu0 0.0
    %775 = vmatmul.mubr.f32.gmra.mrb[0].mxu0 %v337
    %v776 = vpop.f32.mrb[0].mxu0
    %v777 = vadd.f32 0.0, %v776
    %v778 = vpop.f32.mrb[0].mxu0
    %779 = vmatprep.mubr.f32.mxu0 0.0
    %780 = vmatmul.mubr.f32.gmra.mrb[0].mxu0 %v338
    %v781 = vpop.f32.mrb[0].mxu0
    %v782 = vadd.f32 0.0, %v781
    %v783 = vpop.f32.mrb[0].mxu0
    %784 = vmatprep.mubr.f32.mxu0 0.0
    %785 = vmatmul.mubr.f32.gmra.mrb[0].mxu0 %v339
    %v786 = vpop.f32.mrb[0].mxu0
    %v787 = vadd.f32 0.0, %v786
    %v788 = vpop.f32.mrb[0].mxu0
    %789 = vmatprep.mubr.f32.mxu0 0.0
    %790 = vmatmul.mubr.f32.gmra.mrb[0].mxu0 %v340
    %v791 = vpop.f32.mrb[0].mxu0
    %v792 = vadd.f32 0.0, %v791
    %v793 = vpop.f32.mrb[0].mxu0
    %794 = vmatprep.mubr.f32.mxu0 0.0
    %795 = vmatmul.mubr.f32.gmra.mrb[0].mxu0 %v341
    %v796 = vpop.f32.mrb[0].mxu0
    %v797 = vadd.f32 0.0, %v796
    %v798 = vpop.f32.mrb[0].mxu0
    %799 = vmatprep.mubr.f32.mxu0 0.0
    %800 = vmatmul.mubr.f32.gmra.mrb[0].mxu0 %v342
    %v801 = vpop.f32.mrb[0].mxu0
    %v802 = vadd.f32 0.0, %v801
    %v803 = vpop.f32.mrb[0].mxu0
    %804 = vmatprep.mubr.f32.mxu0 0.0
    %805 = vmatmul.mubr.f32.gmra.mrb[0].mxu0 %v343
    %v806 = vpop.f32.mrb[0].mxu0
    %v807 = vadd.f32 0.0, %v806
    %v808 = vpop.f32.mrb[0].mxu0
    %809 = vmatprep.mubr.f32.mxu0 0.0
    %810 = vmatmul.mubr.f32.gmra.mrb[0].mxu0 %v344
    %v811 = vpop.f32.mrb[0].mxu0
    %v812 = vadd.f32 0.0, %v811
    %v813 = vpop.f32.mrb[0].mxu0
    %814 = vmatprep.mubr.f32.mxu0 0.0
    %815 = vmatmul.mubr.f32.gmra.mrb[0].mxu0 %v345
    %v816 = vpop.f32.mrb[0].mxu0
    %v817 = vadd.f32 0.0, %v816
    %v818 = vpop.f32.mrb[0].mxu0
    %819 = vmatprep.mubr.f32.mxu0 0.0
    %820 = vmatmul.mubr.f32.gmra.mrb[0].mxu0 %v346
    %v821 = vpop.f32.mrb[0].mxu0
    %v822 = vadd.f32 0.0, %v821
    %v823 = vpop.f32.mrb[0].mxu0
    %824 = vmatprep.mubr.f32.mxu0 0.0
    %825 = vmatmul.mubr.f32.gmra.mrb[0].mxu0 %v347
    %v826 = vpop.f32.mrb[0].mxu0
    %v827 = vadd.f32 0.0, %v826
    %v828 = vpop.f32.mrb[0].mxu0
    %829 = vmatprep.mubr.f32.mxu0 0.0
    %830 = vmatmul.mubr.f32.gmra.mrb[0].mxu0 %v348
    %v831 = vpop.f32.mrb[0].mxu0
    %v832 = vadd.f32 0.0, %v831
    %v833 = vpop.f32.mrb[0].mxu0
    %834 = vmatprep.mubr.f32.mxu0 0.0
    %835 = vmatmul.mubr.f32.gmra.mrb[0].mxu0 %v349
    %v836 = vpop.f32.mrb[0].mxu0
    %v837 = vadd.f32 0.0, %v836
    %v838 = vpop.f32.mrb[0].mxu0
    %839 = vmatprep.mubr.f32.mxu0 0.0
    %840 = vmatmul.mubr.f32.gmra.mrb[0].mxu0 %v350
    %v841 = vpop.f32.mrb[0].mxu0
    %v842 = vadd.f32 0.0, %v841
    %v843 = vpop.f32.mrb[0].mxu0
    %844 = vmatprep.mubr.f32.mxu0 0.0
    %845 = vmatmul.mubr.f32.gmra.mrb[0].mxu0 %v351
    %v846 = vpop.f32.mrb[0].mxu0
    %v847 = vadd.f32 0.0, %v846
    %v848 = vpop.f32.mrb[0].mxu0
    %849 = vmatprep.mubr.f32.mxu0 0.0
    %850 = vmatmul.mubr.f32.gmra.mrb[0].mxu0 %v352
    %v851 = vpop.f32.mrb[0].mxu0
    %v852 = vadd.f32 0.0, %v851
    %v853 = vpop.f32.mrb[0].mxu0
    %854 = vmatprep.mubr.f32.mxu0 0.0
    %855 = vmatmul.mubr.f32.gmra.mrb[0].mxu0 %v353
    %v856 = vpop.f32.mrb[0].mxu0
    %v857 = vadd.f32 0.0, %v856
    %v858 = vpop.f32.mrb[0].mxu0
    %859 = vmatprep.mubr.f32.mxu0 0.0
    %860 = vmatmul.mubr.f32.gmra.mrb[0].mxu0 %v354
    %v861 = vpop.f32.mrb[0].mxu0
    %v862 = vadd.f32 0.0, %v861
    %v863 = vpop.f32.mrb[0].mxu0
    %864 = vmatprep.mubr.f32.mxu0 0.0
    %865 = vmatmul.mubr.f32.gmra.mrb[0].mxu0 %v355
    %v866 = vpop.f32.mrb[0].mxu0
    %v867 = vadd.f32 0.0, %v866
    %v868 = vpop.f32.mrb[0].mxu0
    %869 = vmatprep.mubr.f32.mxu0 0.0
    %870 = vmatmul.mubr.f32.gmra.mrb[0].mxu0 %v356
    %v871 = vpop.f32.mrb[0].mxu0
    %v872 = vadd.f32 0.0, %v871
    %v873 = vpop.f32.mrb[0].mxu0
    %874 = vmatprep.mubr.f32.mxu0 0.0
    %875 = vmatmul.mubr.f32.gmra.mrb[0].mxu0 %v357
    %v876 = vpop.f32.mrb[0].mxu0
    %v877 = vadd.f32 0.0, %v876
    %v878 = vpop.f32.mrb[0].mxu0
    %879 = vmatprep.mubr.f32.mxu0 0.0
    %880 = vmatmul.mubr.f32.gmra.mrb[0].mxu0 %v358
    %v881 = vpop.f32.mrb[0].mxu0
    %v882 = vadd.f32 0.0, %v881
    %v883 = vpop.f32.mrb[0].mxu0
    %884 = vmatprep.mubr.f32.mxu0 0.0
    %885 = vmatmul.mubr.f32.gmra.mrb[0].mxu0 %v359
    %v886 = vpop.f32.mrb[0].mxu0
    %v887 = vadd.f32 0.0, %v886
    %v888 = vpop.f32.mrb[0].mxu0
    %889 = vmatprep.mubr.f32.mxu0 0.0
    %890 = vmatmul.mubr.f32.gmra.mrb[0].mxu0 %v360
    %v891 = vpop.f32.mrb[0].mxu0
    %v892 = vadd.f32 0.0, %v891
    %v893 = vpop.f32.mrb[0].mxu0
    %894 = vmatprep.mubr.f32.mxu0 0.0
    %895 = vmatmul.mubr.f32.gmra.mrb[0].mxu0 %v361
    %v896 = vpop.f32.mrb[0].mxu0
    %v897 = vadd.f32 0.0, %v896
    %v898 = vpop.f32.mrb[0].mxu0
    %899 = vmatprep.mubr.f32.mxu0 0.0
    %900 = vmatmul.mubr.f32.gmra.mrb[0].mxu0 %v362
    %v901 = vpop.f32.mrb[0].mxu0
    %v902 = vadd.f32 0.0, %v901
    %v903 = vpop.f32.mrb[0].mxu0
    %904 = vmatprep.mubr.f32.mxu0 0.0
    %905 = vmatmul.mubr.f32.gmra.mrb[0].mxu0 %v363
    %v906 = vpop.f32.mrb[0].mxu0
    %v907 = vadd.f32 0.0, %v906
    %v908 = vpop.f32.mrb[0].mxu0
    %909 = vmatprep.mubr.f32.mxu0 0.0
    %910 = vmatmul.mubr.f32.gmra.mrb[0].mxu0 %v364
    %v911 = vpop.f32.mrb[0].mxu0
    %v912 = vadd.f32 0.0, %v911
    %v913 = vpop.f32.mrb[0].mxu0
    %914 = vmatprep.mubr.f32.mxu0 0.0
    %915 = vmatmul.mubr.f32.gmra.mrb[0].mxu0 %v365
    %v916 = vpop.f32.mrb[0].mxu0
    %v917 = vadd.f32 0.0, %v916
    %v918 = vpop.f32.mrb[0].mxu0
    %919 = vmatprep.mubr.f32.mxu0 0.0
    %920 = vmatmul.mubr.f32.gmra.mrb[0].mxu0 %v366
    %v921 = vpop.f32.mrb[0].mxu0
    %v922 = vadd.f32 0.0, %v921
    %v923 = vpop.f32.mrb[0].mxu0
    %924 = vmatprep.mubr.f32.mxu0 0.0
    %925 = vmatmul.mubr.f32.gmra.mrb[0].mxu0 %v367
    %v926 = vpop.f32.mrb[0].mxu0
    %v927 = vadd.f32 0.0, %v926
    %v928 = vpop.f32.mrb[0].mxu0
    %929 = vmatprep.mubr.f32.mxu0 0.0
    %930 = vmatmul.mubr.f32.gmra.mrb[0].mxu0 %v368
    %v931 = vpop.f32.mrb[0].mxu0
    %v932 = vadd.f32 0.0, %v931
    %v933 = vpop.f32.mrb[0].mxu0
    %934 = vmatprep.mubr.f32.mxu0 0.0
    %935 = vmatmul.mubr.f32.gmra.mrb[0].mxu0 %v369
    %v936 = vpop.f32.mrb[0].mxu0
    %v937 = vadd.f32 0.0, %v936
    %v938 = vpop.f32.mrb[0].mxu0
    %939 = vmatprep.mubr.f32.mxu0 0.0
    %940 = vmatmul.mubr.f32.gmra.mrb[0].mxu0 %v370
    %v941 = vpop.f32.mrb[0].mxu0
    %v942 = vadd.f32 0.0, %v941
    %v943 = vpop.f32.mrb[0].mxu0
    %944 = vmatprep.mubr.f32.mxu0 0.0
    %945 = vmatmul.mubr.f32.gmra.mrb[0].mxu0 %v371
    %v946 = vpop.f32.mrb[0].mxu0
    %v947 = vadd.f32 0.0, %v946
    %v948 = vpop.f32.mrb[0].mxu0
    %949 = vmatprep.mubr.f32.mxu0 0.0
    %950 = vmatmul.mubr.f32.gmra.mrb[0].mxu0 %v372
    %v951 = vpop.f32.mrb[0].mxu0
    %v952 = vadd.f32 0.0, %v951
    %v953 = vpop.f32.mrb[0].mxu0
    %954 = vmatprep.mubr.f32.mxu0 0.0
    %955 = vmatmul.mubr.f32.gmra.mrb[0].mxu0 %v373
    %v956 = vpop.f32.mrb[0].mxu0
    %v957 = vadd.f32 0.0, %v956
    %v958 = vpop.f32.mrb[0].mxu0
    %959 = vmatprep.mubr.f32.mxu0 0.0
    %960 = vmatmul.mubr.f32.gmra.mrb[0].mxu0 %v374
    %v961 = vpop.f32.mrb[0].mxu0
    %v962 = vadd.f32 0.0, %v961
    %v963 = vpop.f32.mrb[0].mxu0
    %964 = vmatprep.mubr.f32.mxu0 0.0
    %965 = vmatmul.mubr.f32.gmra.mrb[0].mxu0 %v375
    %v966 = vpop.f32.mrb[0].mxu0
    %v967 = vadd.f32 0.0, %v966
    %v968 = vpop.f32.mrb[0].mxu0
    %969 = vmatprep.mubr.f32.mxu0 0.0
    %970 = vmatmul.mubr.f32.gmra.mrb[0].mxu0 %v376
    %v971 = vpop.f32.mrb[0].mxu0
    %v972 = vadd.f32 0.0, %v971
    %v973 = vpop.f32.mrb[0].mxu0
    %974 = vmatprep.mubr.f32.mxu0 0.0
    %975 = vmatmul.mubr.f32.gmra.mrb[0].mxu0 %v377
    %v976 = vpop.f32.mrb[0].mxu0
    %v977 = vadd.f32 0.0, %v976
    %v978 = vpop.f32.mrb[0].mxu0
    %979 = vmatprep.mubr.f32.mxu0 0.0
    %980 = vmatmul.mubr.f32.gmra.mrb[0].mxu0 %v378
    %v981 = vpop.f32.mrb[0].mxu0
    %v982 = vadd.f32 0.0, %v981
    %v983 = vpop.f32.mrb[0].mxu0
    %984 = vmatprep.mubr.f32.mxu0 0.0
    %985 = vmatmul.mubr.f32.gmra.mrb[0].mxu0 %v379
    %v986 = vpop.f32.mrb[0].mxu0
    %v987 = vadd.f32 0.0, %v986
    %v988 = vpop.f32.mrb[0].mxu0
    %989 = vmatprep.mubr.f32.mxu0 0.0
    %990 = vmatmul.mubr.f32.gmra.mrb[0].mxu0 %v380
    %v991 = vpop.f32.mrb[0].mxu0
    %v992 = vadd.f32 0.0, %v991
    %v993 = vpop.f32.mrb[0].mxu0
    %994 = vmatprep.mubr.f32.mxu0 0.0
    %995 = vmatmul.mubr.f32.gmra.mrb[0].mxu0 %v381
    %v996 = vpop.f32.mrb[0].mxu0
    %v997 = vadd.f32 0.0, %v996
    %v998 = vpop.f32.mrb[0].mxu0
    %999 = vmatprep.mubr.f32.mxu0 0.0
    %1000 = vmatmul.mubr.f32.gmra.mrb[0].mxu0 %v382
    %v1001 = vpop.f32.mrb[0].mxu0
    %v1002 = vadd.f32 0.0, %v1001
    %v1003 = vpop.f32.mrb[0].mxu0
    %1004 = vmatprep.mubr.f32.mxu0 0.0
    %1005 = vmatmul.mubr.f32.gmra.mrb[0].mxu0 %v383
    %v1006 = vpop.f32.mrb[0].mxu0
    %v1007 = vadd.f32 0.0, %v1006
    %v1008 = vpop.f32.mrb[0].mxu0
    %1009 = vmatprep.mubr.f32.mxu0 0.0
    %1010 = vmatmul.mubr.f32.gmra.mrb[0].mxu0 %v384
    %v1011 = vpop.f32.mrb[0].mxu0
    %v1012 = vadd.f32 0.0, %v1011
    %v1013 = vpop.f32.mrb[0].mxu0
    %1014 = vmatprep.mubr.f32.mxu0 0.0
    %1015 = vmatmul.mubr.f32.gmra.mrb[0].mxu0 %v385
    %v1016 = vpop.f32.mrb[0].mxu0
    %v1017 = vadd.f32 0.0, %v1016
    %v1018 = vpop.f32.mrb[0].mxu0
    %1019 = vmatprep.mubr.f32.mxu0 0.0
    %1020 = vmatmul.mubr.f32.gmra.mrb[0].mxu0 %v386
    %v1021 = vpop.f32.mrb[0].mxu0
    %v1022 = vadd.f32 0.0, %v1021
    %v1023 = vpop.f32.mrb[0].mxu0
    %1024 = vmatprep.mubr.f32.mxu0 0.0
    %1025 = vmatmul.mubr.f32.gmra.mrb[0].mxu0 %v387
    %v1026 = vpop.f32.mrb[0].mxu0
    %v1027 = vadd.f32 0.0, %v1026
    %v1028 = vpop.f32.mrb[0].mxu0
    %1029 = vmatprep.mubr.f32.mxu0 0.0
    %1030 = vmatmul.mubr.f32.gmra.mrb[0].mxu0 %v388
    %v1031 = vpop.f32.mrb[0].mxu0
    %v1032 = vadd.f32 0.0, %v1031
    %v1033 = vpop.f32.mrb[0].mxu0
    %1034 = vmatprep.mubr.f32.mxu0 0.0
    %1035 = vmatmul.mubr.f32.gmra.mrb[0].mxu0 %v389
    %v1036 = vpop.f32.mrb[0].mxu0
    %v1037 = vadd.f32 0.0, %v1036
    %v1038 = vpop.f32.mrb[0].mxu0
    %1039 = vmatprep.mubr.f32.mxu0 0.0
    %1040 = vmatmul.mubr.f32.gmra.mrb[0].mxu0 %v390
    %v1041 = vpop.f32.mrb[0].mxu0
    %v1042 = vadd.f32 0.0, %v1041
    %v1043 = vpop.f32.mrb[0].mxu0
    %1044 = vmatprep.mubr.f32.mxu0 0.0
    %1045 = vmatmul.mubr.f32.gmra.mrb[0].mxu0 %v391
    %v1046 = vpop.f32.mrb[0].mxu0
    %v1047 = vadd.f32 0.0, %v1046
    %v1048 = vpop.f32.mrb[0].mxu0
    %1049 = vmatprep.mubr.f32.mxu0 0.0
    %1050 = vmatmul.mubr.f32.gmra.mrb[0].mxu0 %v392
    %v1051 = vpop.f32.mrb[0].mxu0
    %v1052 = vadd.f32 0.0, %v1051
    %v1053 = vpop.f32.mrb[0].mxu0
    %1054 = vmatprep.mubr.f32.mxu0 0.0
    %1055 = vmatmul.mubr.f32.gmra.mrb[0].mxu0 %v393
    %v1056 = vpop.f32.mrb[0].mxu0
    %v1057 = vadd.f32 0.0, %v1056
    %v1058 = vpop.f32.mrb[0].mxu0
    %1059 = vmatprep.mubr.f32.mxu0 0.0
    %1060 = vmatmul.mubr.f32.gmra.mrb[0].mxu0 %v394
    %v1061 = vpop.f32.mrb[0].mxu0
    %v1062 = vadd.f32 0.0, %v1061
    %v1063 = vpop.f32.mrb[0].mxu0
    %1064 = vmatprep.mubr.f32.mxu0 0.0
    %1065 = vmatmul.mubr.f32.gmra.mrb[0].mxu0 %v395
    %v1066 = vpop.f32.mrb[0].mxu0
    %v1067 = vadd.f32 0.0, %v1066
    %v1068 = vpop.f32.mrb[0].mxu0
    %1069 = vmatprep.mubr.f32.mxu0 0.0
    %1070 = vmatmul.mubr.f32.gmra.mrb[0].mxu0 %v396
    %v1071 = vpop.f32.mrb[0].mxu0
    %v1072 = vadd.f32 0.0, %v1071
    %v1073 = vpop.f32.mrb[0].mxu0
    %1074 = vmatprep.mubr.f32.mxu0 0.0
    %1075 = vmatmul.mubr.f32.gmra.mrb[0].mxu0 %v397
    %v1076 = vpop.f32.mrb[0].mxu0
    %v1077 = vadd.f32 0.0, %v1076
    %v1078 = vpop.f32.mrb[0].mxu0
    %1079 = vmatprep.mubr.f32.mxu0 0.0
    %1080 = vmatmul.mubr.f32.gmra.mrb[0].mxu0 %v398
    %v1081 = vpop.f32.mrb[0].mxu0
    %v1082 = vadd.f32 0.0, %v1081
    %v1083 = vpop.f32.mrb[0].mxu0
    %1084 = vmatprep.mubr.f32.mxu0 0.0
    %1085 = vmatmul.mubr.f32.gmra.mrb[0].mxu0 %v399
    %v1086 = vpop.f32.mrb[0].mxu0
    %v1087 = vadd.f32 0.0, %v1086
    %v1088 = vpop.f32.mrb[0].mxu0
    %1089 = vmatprep.mubr.f32.mxu0 0.0
    %1090 = vmatmul.mubr.f32.gmra.mrb[0].mxu0 %v400
    %v1091 = vpop.f32.mrb[0].mxu0
    %v1092 = vadd.f32 0.0, %v1091
    %v1093 = vpop.f32.mrb[0].mxu0
    %1094 = vmatprep.mubr.f32.mxu0 0.0
    %1095 = vmatmul.mubr.f32.gmra.mrb[0].mxu0 %v401
    %v1096 = vpop.f32.mrb[0].mxu0
    %v1097 = vadd.f32 0.0, %v1096
    %v1098 = vpop.f32.mrb[0].mxu0
    %1099 = vmatprep.mubr.f32.mxu0 0.0
    %1100 = vmatmul.mubr.f32.gmra.mrb[0].mxu0 %v402
    %v1101 = vpop.f32.mrb[0].mxu0
    %v1102 = vadd.f32 0.0, %v1101
    %v1103 = vpop.f32.mrb[0].mxu0
    %1104 = vmatprep.mubr.f32.mxu0 0.0
    %1105 = vmatmul.mubr.f32.gmra.mrb[0].mxu0 %v403
    %v1106 = vpop.f32.mrb[0].mxu0
    %v1107 = vadd.f32 0.0, %v1106
    %v1108 = vpop.f32.mrb[0].mxu0
    %1109 = vmatprep.mubr.f32.mxu0 0.0
    %1110 = vmatmul.mubr.f32.gmra.mrb[0].mxu0 %v404
    %v1111 = vpop.f32.mrb[0].mxu0
    %v1112 = vadd.f32 0.0, %v1111
    %v1113 = vpop.f32.mrb[0].mxu0
    %1114 = vmatprep.mubr.f32.mxu0 0.0
    %1115 = vmatmul.mubr.f32.gmra.mrb[0].mxu0 %v405
    %v1116 = vpop.f32.mrb[0].mxu0
    %v1117 = vadd.f32 0.0, %v1116
    %v1118 = vpop.f32.mrb[0].mxu0
    %1119 = vmatprep.mubr.f32.mxu0 0.0
    %1120 = vmatmul.mubr.f32.gmra.mrb[0].mxu0 %v406
    %v1121 = vpop.f32.mrb[0].mxu0
    %v1122 = vadd.f32 0.0, %v1121
    %v1123 = vpop.f32.mrb[0].mxu0
    %1124 = vmatprep.mubr.f32.mxu0 0.0
    %1125 = vmatmul.mubr.f32.gmra.mrb[0].mxu0 %v407
    %v1126 = vpop.f32.mrb[0].mxu0
    %v1127 = vadd.f32 0.0, %v1126
    %v1128 = vpop.f32.mrb[0].mxu0
    %1129 = vmatprep.mubr.f32.mxu0 0.0
    %1130 = vmatmul.mubr.f32.gmra.mrb[0].mxu0 %v408
    %v1131 = vpop.f32.mrb[0].mxu0
    %v1132 = vadd.f32 0.0, %v1131
    %v1133 = vpop.f32.mrb[0].mxu0
    %1134 = vmatprep.mubr.f32.mxu0 0.0
    %1135 = vmatmul.mubr.f32.gmra.mrb[0].mxu0 %v409
    %v1136 = vpop.f32.mrb[0].mxu0
    %v1137 = vadd.f32 0.0, %v1136
    %v1138 = vpop.f32.mrb[0].mxu0
    %1139 = vmatprep.mubr.f32.mxu0 0.0
    %1140 = vmatmul.mubr.f32.gmra.mrb[0].mxu0 %v410
    %v1141 = vpop.f32.mrb[0].mxu0
    %v1142 = vadd.f32 0.0, %v1141
    %v1143 = vpop.f32.mrb[0].mxu0
    %1144 = vmatprep.mubr.f32.mxu0 0.0
    %1145 = vmatmul.mubr.f32.gmra.mrb[0].mxu0 %v411
    %v1146 = vpop.f32.mrb[0].mxu0
    %v1147 = vadd.f32 0.0, %v1146
    %v1148 = vpop.f32.mrb[0].mxu0
    %1149 = vmatprep.mubr.f32.mxu0 0.0
    %1150 = vmatmul.mubr.f32.gmra.mrb[0].mxu0 %v412
    %v1151 = vpop.f32.mrb[0].mxu0
    %v1152 = vadd.f32 0.0, %v1151
    %v1153 = vpop.f32.mrb[0].mxu0
    %1154 = vmatprep.mubr.f32.mxu0 0.0
    %1155 = vmatmul.mubr.f32.gmra.mrb[0].mxu0 %v413
    %v1156 = vpop.f32.mrb[0].mxu0
    %v1157 = vadd.f32 0.0, %v1156
    %v1158 = vpop.f32.mrb[0].mxu0
    %1159 = vmatprep.mubr.f32.mxu0 0.0
    %1160 = vmatmul.mubr.f32.gmra.mrb[0].mxu0 %v414
    %v1161 = vpop.f32.mrb[0].mxu0
    %v1162 = vadd.f32 0.0, %v1161
    %v1163 = vpop.f32.mrb[0].mxu0
    %1164 = vmatprep.mubr.f32.mxu0 0.0
    %1165 = vmatmul.mubr.f32.gmra.mrb[0].mxu0 %v415
    %v1166 = vpop.f32.mrb[0].mxu0
    %v1167 = vadd.f32 0.0, %v1166
    %v1168 = vpop.f32.mrb[0].mxu0
    %1169 = vmatprep.mubr.f32.mxu0 0.0
    %1170 = vmatmul.mubr.f32.gmra.mrb[0].mxu0 %v416
    %v1171 = vpop.f32.mrb[0].mxu0
    %v1172 = vadd.f32 0.0, %v1171
    %v1173 = vpop.f32.mrb[0].mxu0
    %1174 = vmatprep.mubr.f32.mxu0 0.0
    %1175 = vmatmul.mubr.f32.gmra.mrb[0].mxu0 %v417
    %v1176 = vpop.f32.mrb[0].mxu0
    %v1177 = vadd.f32 0.0, %v1176
    %v1178 = vpop.f32.mrb[0].mxu0
    %1179 = vmatprep.mubr.f32.mxu0 0.0
    %1180 = vmatmul.mubr.f32.gmra.mrb[0].mxu0 %v418
    %v1181 = vpop.f32.mrb[0].mxu0
    %v1182 = vadd.f32 0.0, %v1181
    %v1183 = vpop.f32.mrb[0].mxu0
    %1184 = vmatprep.mubr.f32.mxu0 0.0
    %1185 = vmatmul.mubr.f32.gmra.mrb[0].mxu0 %v419
    %v1186 = vpop.f32.mrb[0].mxu0
    %v1187 = vadd.f32 0.0, %v1186
    %v1188 = vpop.f32.mrb[0].mxu0
    %1189 = vmatprep.mubr.f32.mxu0 0.0
    %1190 = vmatmul.mubr.f32.gmra.mrb[0].mxu0 %v420
    %v1191 = vpop.f32.mrb[0].mxu0
    %v1192 = vadd.f32 0.0, %v1191
    %v1193 = vpop.f32.mrb[0].mxu0
    %1194 = vmatprep.mubr.f32.mxu0 0.0
    %1195 = vmatmul.mubr.f32.gmra.mrb[0].mxu0 %v421
    %v1196 = vpop.f32.mrb[0].mxu0
    %v1197 = vadd.f32 0.0, %v1196
    %v1198 = vpop.f32.mrb[0].mxu0
    %1199 = vmatprep.mubr.f32.mxu0 0.0
    %1200 = vmatmul.mubr.f32.gmra.mrb[0].mxu0 %v422
    %v1201 = vpop.f32.mrb[0].mxu0
    %v1202 = vadd.f32 0.0, %v1201
    %v1203 = vpop.f32.mrb[0].mxu0
    %1204 = vmatprep.mubr.f32.mxu0 0.0
    %1205 = vmatmul.mubr.f32.gmra.mrb[0].mxu0 %v423
    %v1206 = vpop.f32.mrb[0].mxu0
    %v1207 = vadd.f32 0.0, %v1206
    %v1208 = vpop.f32.mrb[0].mxu0
    %1209 = vmatprep.mubr.f32.mxu0 0.0
    %1210 = vmatmul.mubr.f32.gmra.mrb[0].mxu0 %v424
    %v1211 = vpop.f32.mrb[0].mxu0
    %v1212 = vadd.f32 0.0, %v1211
    %v1213 = vpop.f32.mrb[0].mxu0
    %1214 = vmatprep.mubr.f32.mxu0 0.0
    %1215 = vmatmul.mubr.f32.gmra.mrb[0].mxu0 %v425
    %v1216 = vpop.f32.mrb[0].mxu0
    %v1217 = vadd.f32 0.0, %v1216
    %v1218 = vpop.f32.mrb[0].mxu0
    %1219 = vmatprep.mubr.f32.mxu0 0.0
    %1220 = vmatmul.mubr.f32.gmra.mrb[0].mxu0 %v426
    %v1221 = vpop.f32.mrb[0].mxu0
    %v1222 = vadd.f32 0.0, %v1221
    %v1223 = vpop.f32.mrb[0].mxu0
    %1224 = vmatprep.mubr.f32.mxu0 0.0
    %1225 = vmatmul.mubr.f32.gmra.mrb[0].mxu0 %v427
    %v1226 = vpop.f32.mrb[0].mxu0
    %v1227 = vadd.f32 0.0, %v1226
    %v1228 = vpop.f32.mrb[0].mxu0
    %1229 = vmatprep.mubr.f32.mxu0 0.0
    %1230 = vmatmul.mubr.f32.gmra.mrb[0].mxu0 %v428
    %v1231 = vpop.f32.mrb[0].mxu0
    %v1232 = vadd.f32 0.0, %v1231
    %v1233 = vpop.f32.mrb[0].mxu0
    %1234 = vmatprep.mubr.f32.mxu0 0.0
    %1235 = vmatmul.mubr.f32.gmra.mrb[0].mxu0 %v429
    %v1236 = vpop.f32.mrb[0].mxu0
    %v1237 = vadd.f32 0.0, %v1236
    %v1238 = vpop.f32.mrb[0].mxu0
    %1239 = vmatprep.mubr.f32.mxu0 0.0
    %1240 = vmatmul.mubr.f32.gmra.mrb[0].mxu0 %v430
    %v1241 = vpop.f32.mrb[0].mxu0
    %v1242 = vadd.f32 0.0, %v1241
    %v1243 = vpop.f32.mrb[0].mxu0
    %1244 = vmatprep.mubr.f32.mxu0 0.0
    %1245 = vmatmul.mubr.f32.gmra.mrb[0].mxu0 %v431
    %v1246 = vpop.f32.mrb[0].mxu0
    %v1247 = vadd.f32 0.0, %v1246
    %v1248 = vpop.f32.mrb[0].mxu0
    %1249 = vmatprep.mubr.f32.mxu0 0.0
    %1250 = vmatmul.mubr.f32.gmra.mrb[0].mxu0 %v432
    %v1251 = vpop.f32.mrb[0].mxu0
    %v1252 = vadd.f32 0.0, %v1251
    %v1253 = vpop.f32.mrb[0].mxu0
    %1254 = vmatprep.mubr.f32.mxu0 0.0
    %1255 = vmatmul.mubr.f32.gmra.mrb[0].mxu0 %v433
    %v1256 = vpop.f32.mrb[0].mxu0
    %v1257 = vadd.f32 0.0, %v1256
    %v1258 = vpop.f32.mrb[0].mxu0
    %1259 = vmatprep.mubr.f32.mxu0 0.0
    %1260 = vmatmul.mubr.f32.gmra.mrb[0].mxu0 %v434
    %v1261 = vpop.f32.mrb[0].mxu0
    %v1262 = vadd.f32 0.0, %v1261
    %v1263 = vpop.f32.mrb[0].mxu0
    %1264 = vmatprep.mubr.f32.mxu0 0.0
    %1265 = vmatmul.mubr.f32.gmra.mrb[0].mxu0 %v435
    %v1266 = vpop.f32.mrb[0].mxu0
    %v1267 = vadd.f32 0.0, %v1266
    %v1268 = vpop.f32.mrb[0].mxu0
    %1269 = vmatprep.mubr.f32.mxu0 0.0
    %1270 = vmatmul.mubr.f32.gmra.mrb[0].mxu0 %v436
    %v1271 = vpop.f32.mrb[0].mxu0
    %v1272 = vadd.f32 0.0, %v1271
    %v1273 = vpop.f32.mrb[0].mxu0
    %1274 = vmatprep.mubr.f32.mxu0 0.0
    %1275 = vmatmul.mubr.f32.gmra.mrb[0].mxu0 %v437
    %v1276 = vpop.f32.mrb[0].mxu0
    %v1277 = vadd.f32 0.0, %v1276
    %v1278 = vpop.f32.mrb[0].mxu0
    %1279 = vmatprep.mubr.f32.mxu0 0.0
    %1280 = vmatmul.mubr.f32.gmra.mrb[0].mxu0 %v438
    %v1281 = vpop.f32.mrb[0].mxu0
    %v1282 = vadd.f32 0.0, %v1281
    %v1283 = vpop.f32.mrb[0].mxu0
    %1284 = vmatprep.mubr.f32.mxu0 0.0
    %1285 = vmatmul.mubr.f32.gmra.mrb[0].mxu0 %v439
    %v1286 = vpop.f32.mrb[0].mxu0
    %v1287 = vadd.f32 0.0, %v1286
    %v1288 = vpop.f32.mrb[0].mxu0
    %1289 = vmatprep.mubr.f32.mxu0 0.0
    %1290 = vmatmul.mubr.f32.gmra.mrb[0].mxu0 %v440
    %v1291 = vpop.f32.mrb[0].mxu0
    %v1292 = vadd.f32 0.0, %v1291
    %v1293 = vpop.f32.mrb[0].mxu0
    %1294 = vmatprep.mubr.f32.mxu0 0.0
    %1295 = vmatmul.mubr.f32.gmra.mrb[0].mxu0 %v441
    %v1296 = vpop.f32.mrb[0].mxu0
    %v1297 = vadd.f32 0.0, %v1296
    %v1298 = vpop.f32.mrb[0].mxu0
    %1299 = vmatprep.mubr.f32.mxu0 0.0
    %1300 = vmatmul.mubr.f32.gmra.mrb[0].mxu0 %v442
    %v1301 = vpop.f32.mrb[0].mxu0
    %v1302 = vadd.f32 0.0, %v1301
    %v1303 = vpop.f32.mrb[0].mxu0
    %1304 = vmatprep.mubr.f32.mxu0 0.0
    %1305 = vmatmul.mubr.f32.gmra.mrb[0].mxu0 %v443
    %v1306 = vpop.f32.mrb[0].mxu0
    %v1307 = vadd.f32 0.0, %v1306
    %v1308 = vpop.f32.mrb[0].mxu0
    %1309 = vmatprep.mubr.f32.mxu0 0.0
    %1310 = vmatmul.mubr.f32.gmra.mrb[0].mxu0 %v444
    %v1311 = vpop.f32.mrb[0].mxu0
    %v1312 = vadd.f32 0.0, %v1311
    %v1313 = vpop.f32.mrb[0].mxu0
    %1314 = vmatprep.mubr.f32.mxu0 0.0
    %1315 = vmatmul.mubr.f32.gmra.mrb[0].mxu0 %v445
    %v1316 = vpop.f32.mrb[0].mxu0
    %v1317 = vadd.f32 0.0, %v1316
    %v1318 = vpop.f32.mrb[0].mxu0
    %1319 = vmatprep.mubr.f32.mxu0 0.0
    %1320 = vmatmul.mubr.f32.gmra.mrb[0].mxu0 %v446
    %v1321 = vpop.f32.mrb[0].mxu0
    %v1322 = vadd.f32 0.0, %v1321
    %v1323 = vpop.f32.mrb[0].mxu0
    %1324 = vmatprep.mubr.f32.mxu0 0.0
    %1325 = vmatmul.mubr.f32.gmra.mrb[0].mxu0 %v447
    %v1326 = vpop.f32.mrb[0].mxu0
    %v1327 = vadd.f32 0.0, %v1326
    %v1328 = vpop.f32.mrb[0].mxu0
    %1329 = vmatprep.mubr.f32.mxu0 0.0
    %1330 = vmatmul.mubr.f32.gmra.mrb[0].mxu0 %v448
    %v1331 = vpop.f32.mrb[0].mxu0
    %v1332 = vadd.f32 0.0, %v1331
    %v1333 = vpop.f32.mrb[0].mxu0
    %1334 = vmatprep.mubr.f32.mxu0 0.0
    %1335 = vmatmul.mubr.f32.gmra.mrb[0].mxu0 %v449
    %v1336 = vpop.f32.mrb[0].mxu0
    %v1337 = vadd.f32 0.0, %v1336
    %v1338 = vpop.f32.mrb[0].mxu0
    %1339 = vmatprep.mubr.f32.mxu0 0.0
    %1340 = vmatmul.mubr.f32.gmra.mrb[0].mxu0 %v450
    %v1341 = vpop.f32.mrb[0].mxu0
    %v1342 = vadd.f32 0.0, %v1341
    %v1343 = vpop.f32.mrb[0].mxu0
    %1344 = vmatprep.mubr.f32.mxu0 0.0
    %1345 = vmatmul.mubr.f32.gmra.mrb[0].mxu0 %v451
    %v1346 = vpop.f32.mrb[0].mxu0
    %v1347 = vadd.f32 0.0, %v1346
    %v1348 = vpop.f32.mrb[0].mxu0
    %1349 = vmatprep.mubr.f32.mxu0 0.0
    %1350 = vmatmul.mubr.f32.gmra.mrb[0].mxu0 %v452
    %v1351 = vpop.f32.mrb[0].mxu0
    %v1352 = vadd.f32 0.0, %v1351
    %v1353 = vpop.f32.mrb[0].mxu0
    %1354 = vmatprep.mubr.f32.mxu0 0.0
    %1355 = vmatmul.mubr.f32.gmra.mrb[0].mxu0 %v453
    %v1356 = vpop.f32.mrb[0].mxu0
    %v1357 = vadd.f32 0.0, %v1356
    %v1358 = vpop.f32.mrb[0].mxu0
    %1359 = vmatprep.mubr.f32.mxu0 0.0
    %1360 = vmatmul.mubr.f32.gmra.mrb[0].mxu0 %v454
    %v1361 = vpop.f32.mrb[0].mxu0
    %v1362 = vadd.f32 0.0, %v1361
    %v1363 = vpop.f32.mrb[0].mxu0
    %1364 = vmatprep.mubr.f32.mxu0 0.0
    %1365 = vmatmul.mubr.f32.gmra.mrb[0].mxu0 %v455
    %v1366 = vpop.f32.mrb[0].mxu0
    %v1367 = vadd.f32 0.0, %v1366
    %v1368 = vpop.f32.mrb[0].mxu0
    %1369 = vmatprep.mubr.f32.mxu0 0.0
    %1370 = vmatmul.mubr.f32.gmra.mrb[0].mxu0 %v456
    %v1371 = vpop.f32.mrb[0].mxu0
    %v1372 = vadd.f32 0.0, %v1371
    %v1373 = vpop.f32.mrb[0].mxu0
    %1374 = vmatprep.mubr.f32.mxu0 0.0
    %1375 = vmatmul.mubr.f32.gmra.mrb[0].mxu0 %v457
    %v1376 = vpop.f32.mrb[0].mxu0
    %v1377 = vadd.f32 0.0, %v1376
    %v1378 = vpop.f32.mrb[0].mxu0
    %1379 = vmatprep.mubr.f32.mxu0 0.0
    %1380 = vmatmul.mubr.f32.gmra.mrb[0].mxu0 %v458
    %v1381 = vpop.f32.mrb[0].mxu0
    %v1382 = vadd.f32 0.0, %v1381
    %v1383 = vpop.f32.mrb[0].mxu0
    %1384 = vmatprep.mubr.f32.mxu0 0.0
    %1385 = vmatmul.mubr.f32.gmra.mrb[0].mxu0 %v459
    %v1386 = vpop.f32.mrb[0].mxu0
    %v1387 = vadd.f32 0.0, %v1386
    %v1388 = vpop.f32.mrb[0].mxu0
    %1389 = vmatprep.mubr.f32.mxu0 0.0
    %1390 = vmatmul.mubr.f32.gmra.mrb[0].mxu0 %v460
    %v1391 = vpop.f32.mrb[0].mxu0
    %v1392 = vadd.f32 0.0, %v1391
    %v1393 = vpop.f32.mrb[0].mxu0
    %1394 = vmatprep.mubr.f32.mxu0 0.0
    %1395 = vmatmul.mubr.f32.gmra.mrb[0].mxu0 %v461
    %v1396 = vpop.f32.mrb[0].mxu0
    %v1397 = vadd.f32 0.0, %v1396
    %v1398 = vpop.f32.mrb[0].mxu0
    %1399 = vmatprep.mubr.f32.mxu0 0.0
    %1400 = vmatmul.mubr.f32.gmra.mrb[0].mxu0 %v462
    %v1401 = vpop.f32.mrb[0].mxu0
    %v1402 = vadd.f32 0.0, %v1401
    %v1403 = vpop.f32.mrb[0].mxu0
    %1404 = vmatprep.mubr.f32.mxu0 0.0
    %1405 = vmatmul.mubr.f32.gmra.mrb[0].mxu0 %v463
    %v1406 = vpop.f32.mrb[0].mxu0
    %v1407 = vadd.f32 0.0, %v1406
    %v1408 = vpop.f32.mrb[0].mxu0
    %1409 = vmatprep.mubr.f32.mxu0 0.0
    %1410 = vmatmul.mubr.f32.gmra.mrb[0].mxu0 %v464
    %v1411 = vpop.f32.mrb[0].mxu0
    %v1412 = vadd.f32 0.0, %v1411
    %v1413 = vpop.f32.mrb[0].mxu0
    %1414 = vmatprep.mubr.f32.mxu0 0.0
    %1415 = vmatmul.mubr.f32.gmra.mrb[0].mxu0 %v465
    %v1416 = vpop.f32.mrb[0].mxu0
    %v1417 = vadd.f32 0.0, %v1416
    %v1418 = vpop.f32.mrb[0].mxu0
    %1419 = vmatprep.mubr.f32.mxu0 0.0
    %1420 = vmatmul.mubr.f32.gmra.mrb[0].mxu0 %v466
    %v1421 = vpop.f32.mrb[0].mxu0
    %v1422 = vadd.f32 0.0, %v1421
    %v1423 = vpop.f32.mrb[0].mxu0
    %1424 = vmatprep.mubr.f32.mxu0 0.0
    %1425 = vmatmul.mubr.f32.gmra.mrb[0].mxu0 %v467
    %v1426 = vpop.f32.mrb[0].mxu0
    %v1427 = vadd.f32 0.0, %v1426
    %v1428 = vpop.f32.mrb[0].mxu0
    %1429 = vmatprep.mubr.f32.mxu0 0.0
    %1430 = vmatmul.mubr.f32.gmra.mrb[0].mxu0 %v468
    %v1431 = vpop.f32.mrb[0].mxu0
    %v1432 = vadd.f32 0.0, %v1431
    %v1433 = vpop.f32.mrb[0].mxu0
    %1434 = vmatprep.mubr.f32.mxu0 0.0
    %1435 = vmatmul.mubr.f32.gmra.mrb[0].mxu0 %v469
    %v1436 = vpop.f32.mrb[0].mxu0
    %v1437 = vadd.f32 0.0, %v1436
    %v1438 = vpop.f32.mrb[0].mxu0
    %1439 = vmatprep.mubr.f32.mxu0 0.0
    %1440 = vmatmul.mubr.f32.gmra.mrb[0].mxu0 %v470
    %v1441 = vpop.f32.mrb[0].mxu0
    %v1442 = vadd.f32 0.0, %v1441
    %v1443 = vpop.f32.mrb[0].mxu0
    %1444 = vmatprep.mubr.f32.mxu0 0.0
    %1445 = vmatmul.mubr.f32.gmra.mrb[0].mxu0 %v471
    %v1446 = vpop.f32.mrb[0].mxu0
    %v1447 = vadd.f32 0.0, %v1446
    %v1448 = vpop.f32.mrb[0].mxu0
    %1449 = vmatprep.mubr.f32.mxu0 0.0
    %1450 = vmatmul.mubr.f32.gmra.mrb[0].mxu0 %v472
    %v1451 = vpop.f32.mrb[0].mxu0
    %v1452 = vadd.f32 0.0, %v1451
    %v1453 = vpop.f32.mrb[0].mxu0
    %1454 = vmatprep.mubr.f32.mxu0 0.0
    %1455 = vmatmul.mubr.f32.gmra.mrb[0].mxu0 %v473
    %v1456 = vpop.f32.mrb[0].mxu0
    %v1457 = vadd.f32 0.0, %v1456
    %v1458 = vpop.f32.mrb[0].mxu0
    %1459 = vmatprep.mubr.f32.mxu0 0.0
    %1460 = vmatmul.mubr.f32.gmra.mrb[0].mxu0 %v474
    %v1461 = vpop.f32.mrb[0].mxu0
    %v1462 = vadd.f32 0.0, %v1461
    %v1463 = vpop.f32.mrb[0].mxu0
    %1464 = vmatprep.mubr.f32.mxu0 0.0
    %1465 = vmatmul.mubr.f32.gmra.mrb[0].mxu0 %v475
    %v1466 = vpop.f32.mrb[0].mxu0
    %v1467 = vadd.f32 0.0, %v1466
    %v1468 = vpop.f32.mrb[0].mxu0
    %1469 = vmatprep.mubr.f32.mxu0 0.0
    %1470 = vmatmul.mubr.f32.gmra.mrb[0].mxu0 %v476
    %v1471 = vpop.f32.mrb[0].mxu0
    %v1472 = vadd.f32 0.0, %v1471
    %v1473 = vpop.f32.mrb[0].mxu0
    %1474 = vmatprep.mubr.f32.mxu0 0.0
    %1475 = vmatmul.mubr.f32.gmra.mrb[0].mxu0 %v477
    %v1476 = vpop.f32.mrb[0].mxu0
    %v1477 = vadd.f32 0.0, %v1476
    %v1478 = vpop.f32.mrb[0].mxu0
    %1479 = vmatprep.mubr.f32.mxu0 0.0
    %1480 = vmatmul.mubr.f32.gmra.mrb[0].mxu0 %v478
    %v1481 = vpop.f32.mrb[0].mxu0
    %v1482 = vadd.f32 0.0, %v1481
    %v1483 = vpop.f32.mrb[0].mxu0
    %1484 = vmatprep.mubr.f32.mxu0 0.0
    %1485 = vmatmul.mubr.f32.gmra.mrb[0].mxu0 %v479
    %v1486 = vpop.f32.mrb[0].mxu0
    %v1487 = vadd.f32 0.0, %v1486
    %v1488 = vpop.f32.mrb[0].mxu0
    %1489 = vmatprep.mubr.f32.mxu0 0.0
    %1490 = vmatmul.mubr.f32.gmra.mrb[0].mxu0 %v480
    %v1491 = vpop.f32.mrb[0].mxu0
    %v1492 = vadd.f32 0.0, %v1491
    %v1493 = vpop.f32.mrb[0].mxu0
    %1494 = vmatprep.mubr.f32.mxu0 0.0
    %1495 = vmatmul.mubr.f32.gmra.mrb[0].mxu0 %v481
    %v1496 = vpop.f32.mrb[0].mxu0
    %v1497 = vadd.f32 0.0, %v1496
    %v1498 = vpop.f32.mrb[0].mxu0
    %1499 = vmatprep.mubr.f32.mxu0 0.0
    %1500 = vmatmul.mubr.f32.gmra.mrb[0].mxu0 %v482
    %v1501 = vpop.f32.mrb[0].mxu0
    %v1502 = vadd.f32 0.0, %v1501
    %v1503 = vpop.f32.mrb[0].mxu0
    %1504 = vmatprep.mubr.f32.mxu0 0.0
    %1505 = vmatmul.mubr.f32.gmra.mrb[0].mxu0 %v483
    %v1506 = vpop.f32.mrb[0].mxu0
    %v1507 = vadd.f32 0.0, %v1506
    %v1508 = vpop.f32.mrb[0].mxu0
    %1509 = vmatprep.mubr.f32.mxu0 0.0
    %1510 = vmatmul.mubr.f32.gmra.mrb[0].mxu0 %v484
    %v1511 = vpop.f32.mrb[0].mxu0
    %v1512 = vadd.f32 0.0, %v1511
    %v1513 = vpop.f32.mrb[0].mxu0
    %1514 = vmatprep.mubr.f32.mxu0 0.0
    %1515 = vmatmul.mubr.f32.gmra.mrb[0].mxu0 %v485
    %v1516 = vpop.f32.mrb[0].mxu0
    %v1517 = vadd.f32 0.0, %v1516
    %v1518 = vpop.f32.mrb[0].mxu0
    %1519 = vmatprep.mubr.f32.mxu0 0.0
    %1520 = vmatmul.mubr.f32.gmra.mrb[0].mxu0 %v486
    %v1521 = vpop.f32.mrb[0].mxu0
    %v1522 = vadd.f32 0.0, %v1521
    %v1523 = vpop.f32.mrb[0].mxu0
    %1524 = vmatprep.mubr.f32.mxu0 0.0
    %1525 = vmatmul.mubr.f32.gmra.mrb[0].mxu0 %v487
    %v1526 = vpop.f32.mrb[0].mxu0
    %v1527 = vadd.f32 0.0, %v1526
    %v1528 = vpop.f32.mrb[0].mxu0
    %1529 = vmatprep.mubr.f32.mxu0 0.0
    %1530 = vmatmul.mubr.f32.gmra.mrb[0].mxu0 %v488
    %v1531 = vpop.f32.mrb[0].mxu0
    %v1532 = vadd.f32 0.0, %v1531
    %v1533 = vpop.f32.mrb[0].mxu0
    %1534 = vmatprep.mubr.f32.mxu0 0.0
    %1535 = vmatmul.mubr.f32.gmra.mrb[0].mxu0 %v489
    %v1536 = vpop.f32.mrb[0].mxu0
    %v1537 = vadd.f32 0.0, %v1536
    %v1538 = vpop.f32.mrb[0].mxu0
    %1539 = vmatprep.mubr.f32.mxu0 0.0
    %1540 = vmatmul.mubr.f32.gmra.mrb[0].mxu0 %v490
    %v1541 = vpop.f32.mrb[0].mxu0
    %v1542 = vadd.f32 0.0, %v1541
    %v1543 = vpop.f32.mrb[0].mxu0
    %1544 = vmatprep.mubr.f32.mxu0 0.0
    %1545 = vmatmul.mubr.f32.gmra.mrb[0].mxu0 %v491
    %v1546 = vpop.f32.mrb[0].mxu0
    %v1547 = vadd.f32 0.0, %v1546
    %v1548 = vpop.f32.mrb[0].mxu0
    %1549 = vmatprep.mubr.f32.mxu0 0.0
    %1550 = vmatmul.mubr.f32.gmra.mrb[0].mxu0 %v492
    %v1551 = vpop.f32.mrb[0].mxu0
    %v1552 = vadd.f32 0.0, %v1551
    %v1553 = vpop.f32.mrb[0].mxu0
    %1554 = vmatprep.mubr.f32.mxu0 0.0
    %1555 = vmatmul.mubr.f32.gmra.mrb[0].mxu0 %v493
    %v1556 = vpop.f32.mrb[0].mxu0
    %v1557 = vadd.f32 0.0, %v1556
    %v1558 = vpop.f32.mrb[0].mxu0
    %1559 = vmatprep.mubr.f32.mxu0 0.0
    %1560 = vmatmul.mubr.f32.gmra.mrb[0].mxu0 %v494
    %v1561 = vpop.f32.mrb[0].mxu0
    %v1562 = vadd.f32 0.0, %v1561
    %v1563 = vpop.f32.mrb[0].mxu0
    %1564 = vmatprep.mubr.f32.mxu0 0.0
    %1565 = vmatmul.mubr.f32.gmra.mrb[0].mxu0 %v495
    %v1566 = vpop.f32.mrb[0].mxu0
    %v1567 = vadd.f32 0.0, %v1566
    %v1568 = vpop.f32.mrb[0].mxu0
    %1569 = vmatprep.mubr.f32.mxu0 0.0
    %1570 = vmatmul.mubr.f32.gmra.mrb[0].mxu0 %v496
    %v1571 = vpop.f32.mrb[0].mxu0
    %v1572 = vadd.f32 0.0, %v1571
    %v1573 = vpop.f32.mrb[0].mxu0
    %1574 = vmatprep.mubr.f32.mxu0 0.0
    %1575 = vmatmul.mubr.f32.gmra.mrb[0].mxu0 %v497
    %v1576 = vpop.f32.mrb[0].mxu0
    %v1577 = vadd.f32 0.0, %v1576
    %v1578 = vpop.f32.mrb[0].mxu0
    %1579 = vmatprep.mubr.f32.mxu0 0.0
    %1580 = vmatmul.mubr.f32.gmra.mrb[0].mxu0 %v498
    %v1581 = vpop.f32.mrb[0].mxu0
    %v1582 = vadd.f32 0.0, %v1581
    %v1583 = vpop.f32.mrb[0].mxu0
    %1584 = vmatprep.mubr.f32.mxu0 0.0
    %1585 = vmatmul.mubr.f32.gmra.mrb[0].mxu0 %v499
    %v1586 = vpop.f32.mrb[0].mxu0
    %v1587 = vadd.f32 0.0, %v1586
    %v1588 = vpop.f32.mrb[0].mxu0
    %1589 = vmatprep.mubr.f32.mxu0 0.0
    %1590 = vmatmul.mubr.f32.gmra.mrb[0].mxu0 %v500
    %v1591 = vpop.f32.mrb[0].mxu0
    %v1592 = vadd.f32 0.0, %v1591
    %v1593 = vpop.f32.mrb[0].mxu0
    %1594 = vmatprep.mubr.f32.mxu0 0.0
    %1595 = vmatmul.mubr.f32.gmra.mrb[0].mxu0 %v501
    %v1596 = vpop.f32.mrb[0].mxu0
    %v1597 = vadd.f32 0.0, %v1596
    %v1598 = vpop.f32.mrb[0].mxu0
    %1599 = vmatprep.mubr.f32.mxu0 0.0
    %1600 = vmatmul.mubr.f32.gmra.mrb[0].mxu0 %v502
    %v1601 = vpop.f32.mrb[0].mxu0
    %v1602 = vadd.f32 0.0, %v1601
    %v1603 = vpop.f32.mrb[0].mxu0
    %1604 = vmatprep.mubr.f32.mxu0 0.0
    %1605 = vmatmul.mubr.f32.gmra.mrb[0].mxu0 %v503
    %v1606 = vpop.f32.mrb[0].mxu0
    %v1607 = vadd.f32 0.0, %v1606
    %v1608 = vpop.f32.mrb[0].mxu0
    %1609 = vmatprep.mubr.f32.mxu0 0.0
    %1610 = vmatmul.mubr.f32.gmra.mrb[0].mxu0 %v504
    %v1611 = vpop.f32.mrb[0].mxu0
    %v1612 = vadd.f32 0.0, %v1611
    %v1613 = vpop.f32.mrb[0].mxu0
    %1614 = vmatprep.mubr.f32.mxu0 0.0
    %1615 = vmatmul.mubr.f32.gmra.mrb[0].mxu0 %v505
    %v1616 = vpop.f32.mrb[0].mxu0
    %v1617 = vadd.f32 0.0, %v1616
    %v1618 = vpop.f32.mrb[0].mxu0
    %1619 = vmatprep.mubr.f32.mxu0 0.0
    %1620 = vmatmul.mubr.f32.gmra.mrb[0].mxu0 %v506
    %v1621 = vpop.f32.mrb[0].mxu0
    %v1622 = vadd.f32 0.0, %v1621
    %v1623 = vpop.f32.mrb[0].mxu0
    %1624 = vmatprep.mubr.f32.mxu0 0.0
    %1625 = vmatmul.mubr.f32.gmra.mrb[0].mxu0 %v507
    %v1626 = vpop.f32.mrb[0].mxu0
    %v1627 = vadd.f32 0.0, %v1626
    %v1628 = vpop.f32.mrb[0].mxu0
    %1629 = vmatprep.mubr.f32.mxu0 0.0
    %1630 = vmatmul.mubr.f32.gmra.mrb[0].mxu0 %v508
    %v1631 = vpop.f32.mrb[0].mxu0
    %v1632 = vadd.f32 0.0, %v1631
    %v1633 = vpop.f32.mrb[0].mxu0
    %1634 = vmatprep.mubr.f32.mxu0 0.0
    %1635 = vmatmul.mubr.f32.gmra.mrb[0].mxu0 %v509
    %v1636 = vpop.f32.mrb[0].mxu0
    %v1637 = vadd.f32 0.0, %v1636
    %v1638 = vpop.f32.mrb[0].mxu0
    %1639 = vmatprep.mubr.f32.mxu0 0.0
    %1640 = vmatmul.mubr.f32.gmra.mrb[0].mxu0 %v510
    %v1641 = vpop.f32.mrb[0].mxu0
    %v1642 = vadd.f32 0.0, %v1641
    %v1643 = vpop.f32.mrb[0].mxu0
    %1644 = vmatprep.mubr.f32.mxu0 0.0
    %1645 = vmatmul.mubr.f32.gmra.mrb[0].mxu0 %v511
    %v1646 = vpop.f32.mrb[0].mxu0
    %v1647 = vadd.f32 0.0, %v1646
    %v1648 = vpop.f32.mrb[0].mxu0
    %1649 = vmatprep.mubr.f32.mxu0 0.0
    %1650 = vmatmul.mubr.f32.gmra.mrb[0].mxu0 %v512
    %v1651 = vpop.f32.mrb[0].mxu0
    %v1652 = vadd.f32 0.0, %v1651
    %v1653 = vpop.f32.mrb[0].mxu0
    %1654 = vmatprep.mubr.f32.mxu0 0.0
    %1655 = vmatmul.mubr.f32.gmra.mrb[0].mxu0 %v513
    %v1656 = vpop.f32.mrb[0].mxu0
    %v1657 = vadd.f32 0.0, %v1656
    %v1658 = vpop.f32.mrb[0].mxu0
    %1659 = vmatprep.mubr.f32.mxu0 0.0
    %1660 = vmatmul.mubr.f32.gmra.mrb[0].mxu0 %v514
    %v1661 = vpop.f32.mrb[0].mxu0
    %v1662 = vadd.f32 0.0, %v1661
    %v1663 = vpop.f32.mrb[0].mxu0
    %1664 = vmatprep.mubr.f32.mxu0 0.0
    %1665 = vmatmul.mubr.f32.gmra.mrb[0].mxu0 %v515
    %v1666 = vpop.f32.mrb[0].mxu0
    %v1667 = vadd.f32 0.0, %v1666
    %v1668 = vpop.f32.mrb[0].mxu0
    %1669 = vmatprep.mubr.f32.mxu0 0.0
    %1670 = vmatmul.mubr.f32.gmra.mrb[0].mxu0 %v516
    %v1671 = vpop.f32.mrb[0].mxu0
    %v1672 = vadd.f32 0.0, %v1671
    %v1673 = vpop.f32.mrb[0].mxu0
    %1674 = vmatprep.mubr.f32.mxu0 0.0
    %1675 = vmatmul.mubr.f32.gmra.mrb[0].mxu0 %v517
    %v1676 = vpop.f32.mrb[0].mxu0
    %v1677 = vadd.f32 0.0, %v1676
    %v1678 = vpop.f32.mrb[0].mxu0
    %1679 = vmatprep.mubr.f32.mxu0 0.0
    %1680 = vmatmul.mubr.f32.gmra.mrb[0].mxu0 %v518
    %v1681 = vpop.f32.mrb[0].mxu0
    %v1682 = vadd.f32 0.0, %v1681
    %v1683 = vpop.f32.mrb[0].mxu0
    %1684 = vmatprep.mubr.f32.mxu0 0.0
    %1685 = vmatmul.mubr.f32.gmra.mrb[0].mxu0 %v519
    %v1686 = vpop.f32.mrb[0].mxu0
    %v1687 = vadd.f32 0.0, %v1686
    %v1688 = vpop.f32.mrb[0].mxu0
    %1689 = vmatprep.mubr.f32.mxu0 0.0
    %1690 = vmatmul.mubr.f32.gmra.mrb[0].mxu0 %v520
    %v1691 = vpop.f32.mrb[0].mxu0
    %v1692 = vadd.f32 0.0, %v1691
    %v1693 = vpop.f32.mrb[0].mxu0
    %1694 = vmatprep.mubr.f32.mxu0 0.0
    %1695 = vmatmul.mubr.f32.gmra.mrb[0].mxu0 %v521
    %v1696 = vpop.f32.mrb[0].mxu0
    %v1697 = vadd.f32 0.0, %v1696
    %v1698 = vpop.f32.mrb[0].mxu0
    %1699 = vmatprep.mubr.f32.mxu0 0.0
    %1700 = vmatmul.mubr.f32.gmra.mrb[0].mxu0 %v522
    %v1701 = vpop.f32.mrb[0].mxu0
    %v1702 = vadd.f32 0.0, %v1701
    %v1703 = vpop.f32.mrb[0].mxu0
    %1704 = vmatprep.mubr.f32.mxu0 0.0
    %1705 = vmatmul.mubr.f32.gmra.mrb[0].mxu0 %v523
    %v1706 = vpop.f32.mrb[0].mxu0
    %v1707 = vadd.f32 0.0, %v1706
    %v1708 = vpop.f32.mrb[0].mxu0
    %1709 = vmatprep.mubr.f32.mxu0 0.0
    %1710 = vmatmul.mubr.f32.gmra.mrb[0].mxu0 %v524
    %v1711 = vpop.f32.mrb[0].mxu0
    %v1712 = vadd.f32 0.0, %v1711
    %v1713 = vpop.f32.mrb[0].mxu0
    %1714 = vmatprep.mubr.f32.mxu0 0.0
    %1715 = vmatmul.mubr.f32.gmra.mrb[0].mxu0 %v525
    %v1716 = vpop.f32.mrb[0].mxu0
    %v1717 = vadd.f32 0.0, %v1716
    %v1718 = vpop.f32.mrb[0].mxu0
    %1719 = vmatprep.mubr.f32.mxu0 0.0
    %1720 = vmatmul.mubr.f32.gmra.mrb[0].mxu0 %v526
    %v1721 = vpop.f32.mrb[0].mxu0
    %v1722 = vadd.f32 0.0, %v1721
    %v1723 = vpop.f32.mrb[0].mxu0
    %1724 = vmatprep.mubr.f32.mxu0 0.0
    %1725 = vmatmul.mubr.f32.gmra.mrb[0].mxu0 %v527
    %v1726 = vpop.f32.mrb[0].mxu0
    %v1727 = vadd.f32 0.0, %v1726
    %v1728 = vpop.f32.mrb[0].mxu0
    %1729 = vmatprep.mubr.f32.mxu0 0.0
    %1730 = vmatmul.mubr.f32.gmra.mrb[0].mxu0 %v528
    %v1731 = vpop.f32.mrb[0].mxu0
    %v1732 = vadd.f32 0.0, %v1731
    %v1733 = vpop.f32.mrb[0].mxu0
    %1734 = vmatprep.mubr.f32.mxu0 0.0
    %1735 = vmatmul.mubr.f32.gmra.mrb[0].mxu0 %v529
    %v1736 = vpop.f32.mrb[0].mxu0
    %v1737 = vadd.f32 0.0, %v1736
    %v1738 = vpop.f32.mrb[0].mxu0
    %1739 = vmatprep.mubr.f32.mxu0 0.0
    %1740 = vmatmul.mubr.f32.gmra.mrb[0].mxu0 %v530
    %v1741 = vpop.f32.mrb[0].mxu0
    %v1742 = vadd.f32 0.0, %v1741
    %v1743 = vpop.f32.mrb[0].mxu0
    %1744 = vmatprep.mubr.f32.mxu0 0.0
    %1745 = vmatmul.mubr.f32.gmra.mrb[0].mxu0 %v531
    %v1746 = vpop.f32.mrb[0].mxu0
    %v1747 = vadd.f32 0.0, %v1746
    %v1748 = vpop.f32.mrb[0].mxu0
    %1749 = vmatprep.mubr.f32.mxu0 0.0
    %1750 = vmatmul.mubr.f32.gmra.mrb[0].mxu0 %v532
    %v1751 = vpop.f32.mrb[0].mxu0
    %v1752 = vadd.f32 0.0, %v1751
    %v1753 = vpop.f32.mrb[0].mxu0
    %1754 = vmatprep.mubr.f32.mxu0 0.0
    %1755 = vmatmul.mubr.f32.gmra.mrb[0].mxu0 %v533
    %v1756 = vpop.f32.mrb[0].mxu0
    %v1757 = vadd.f32 0.0, %v1756
    %v1758 = vpop.f32.mrb[0].mxu0
    %1759 = vmatprep.mubr.f32.mxu0 0.0
    %1760 = vmatmul.mubr.f32.gmra.mrb[0].mxu0 %v534
    %v1761 = vpop.f32.mrb[0].mxu0
    %v1762 = vadd.f32 0.0, %v1761
    %v1763 = vpop.f32.mrb[0].mxu0
    %1764 = vmatprep.mubr.f32.mxu0 0.0
    %1765 = vmatmul.mubr.f32.gmra.mrb[0].mxu0 %v535
    %v1766 = vpop.f32.mrb[0].mxu0
    %v1767 = vadd.f32 0.0, %v1766
    %v1768 = vpop.f32.mrb[0].mxu0
    %1769 = vmatprep.mubr.f32.mxu0 0.0
    %1770 = vmatmul.mubr.f32.gmra.mrb[0].mxu0 %v536
    %v1771 = vpop.f32.mrb[0].mxu0
    %v1772 = vadd.f32 0.0, %v1771
    %v1773 = vpop.f32.mrb[0].mxu0
    %1774 = vmatprep.mubr.f32.mxu0 0.0
    %1775 = vmatmul.mubr.f32.gmra.mrb[0].mxu0 %v537
    %v1776 = vpop.f32.mrb[0].mxu0
    %v1777 = vadd.f32 0.0, %v1776
    %v1778 = vpop.f32.mrb[0].mxu0
    %1779 = vmatprep.mubr.f32.mxu0 0.0
    %1780 = vmatmul.mubr.f32.gmra.mrb[0].mxu0 %v538
    %v1781 = vpop.f32.mrb[0].mxu0
    %v1782 = vadd.f32 0.0, %v1781
    %v1783 = vpop.f32.mrb[0].mxu0
    %1784 = vmatprep.mubr.f32.mxu0 0.0
    %1785 = vmatmul.mubr.f32.gmra.mrb[0].mxu0 %v539
    %v1786 = vpop.f32.mrb[0].mxu0
    %v1787 = vadd.f32 0.0, %v1786
    %v1788 = vpop.f32.mrb[0].mxu0
    %1789 = vmatprep.mubr.f32.mxu0 0.0
    %1790 = vmatmul.mubr.f32.gmra.mrb[0].mxu0 %v540
    %v1791 = vpop.f32.mrb[0].mxu0
    %v1792 = vadd.f32 0.0, %v1791
    %v1793 = vpop.f32.mrb[0].mxu0
    %1794 = vmatprep.mubr.f32.mxu0 0.0
    %1795 = vmatmul.mubr.f32.gmra.mrb[0].mxu0 %v541
    %v1796 = vpop.f32.mrb[0].mxu0
    %v1797 = vadd.f32 0.0, %v1796
    %v1798 = vpop.f32.mrb[0].mxu0
    %1799 = vmatprep.mubr.f32.mxu0 0.0
    %1800 = vmatmul.mubr.f32.gmra.mrb[0].mxu0 %v542
    %v1801 = vpop.f32.mrb[0].mxu0
    %v1802 = vadd.f32 0.0, %v1801
    %v1803 = vpop.f32.mrb[0].mxu0
    %1804 = vmatprep.mubr.f32.mxu0 0.0
    %1805 = vmatmul.mubr.f32.gmra.mrb[0].mxu0 %v543
    %v1806 = vpop.f32.mrb[0].mxu0
    %v1807 = vadd.f32 0.0, %v1806
    %v1808 = vpop.f32.mrb[0].mxu0
    %1809 = vmatprep.mubr.f32.mxu0 0.0
    %1810 = vmatmul.mubr.f32.gmra.mrb[0].mxu0 %v544
    %v1811 = vpop.f32.mrb[0].mxu0
    %v1812 = vadd.f32 0.0, %v1811
    %v1813 = vpop.f32.mrb[0].mxu0
    %1814 = vmatprep.mubr.f32.mxu0 0.0
    %1815 = vmatmul.mubr.f32.gmra.mrb[0].mxu0 %v545
    %v1816 = vpop.f32.mrb[0].mxu0
    %v1817 = vadd.f32 0.0, %v1816
    %v1818 = vpop.f32.mrb[0].mxu0
    %1819 = vmatprep.mubr.f32.mxu0 0.0
    %1820 = vmatmul.mubr.f32.gmra.mrb[0].mxu0 %v546
    %v1821 = vpop.f32.mrb[0].mxu0
    %v1822 = vadd.f32 0.0, %v1821
    %v1823 = vpop.f32.mrb[0].mxu0
    %1824 = vmatprep.mubr.f32.mxu0 0.0
    %1825 = vmatmul.mubr.f32.gmra.mrb[0].mxu0 %v547
    %v1826 = vpop.f32.mrb[0].mxu0
    %v1827 = vadd.f32 0.0, %v1826
    %v1828 = vpop.f32.mrb[0].mxu0
    %1829 = vmatprep.mubr.f32.mxu0 0.0
    %1830 = vmatmul.mubr.f32.gmra.mrb[0].mxu0 %v548
    %v1831 = vpop.f32.mrb[0].mxu0
    %v1832 = vadd.f32 0.0, %v1831
    %v1833 = vpop.f32.mrb[0].mxu0
    %1834 = vmatprep.mubr.f32.mxu0 0.0
    %1835 = vmatmul.mubr.f32.gmra.mrb[0].mxu0 %v549
    %v1836 = vpop.f32.mrb[0].mxu0
    %v1837 = vadd.f32 0.0, %v1836
    %v1838 = vpop.f32.mrb[0].mxu0
    %1839 = vmatprep.mubr.f32.mxu0 0.0
    %1840 = vmatmul.mubr.f32.gmra.mrb[0].mxu0 %v550
    %v1841 = vpop.f32.mrb[0].mxu0
    %v1842 = vadd.f32 0.0, %v1841
    %v1843 = vpop.f32.mrb[0].mxu0
    %1844 = vmatprep.mubr.f32.mxu0 0.0
    %1845 = vmatmul.mubr.f32.gmra.mrb[0].mxu0 %v551
    %v1846 = vpop.f32.mrb[0].mxu0
    %v1847 = vadd.f32 0.0, %v1846
    %v1848 = vpop.f32.mrb[0].mxu0
    %1849 = vmatprep.mubr.f32.mxu0 0.0
    %1850 = vmatmul.mubr.f32.gmra.mrb[0].mxu0 %v552
    %v1851 = vpop.f32.mrb[0].mxu0
    %v1852 = vadd.f32 0.0, %v1851
    %v1853 = vpop.f32.mrb[0].mxu0
    %1854 = vmatprep.mubr.f32.mxu0 0.0
    %1855 = vmatmul.mubr.f32.gmra.mrb[0].mxu0 %v553
    %v1856 = vpop.f32.mrb[0].mxu0
    %v1857 = vadd.f32 0.0, %v1856
    %v1858 = vpop.f32.mrb[0].mxu0
    %1859 = vmatprep.mubr.f32.mxu0 0.0
    %1860 = vmatmul.mubr.f32.gmra.mrb[0].mxu0 %v554
    %v1861 = vpop.f32.mrb[0].mxu0
    %v1862 = vadd.f32 0.0, %v1861
    %v1863 = vpop.f32.mrb[0].mxu0
    %1864 = vmatprep.mubr.f32.mxu0 0.0
    %1865 = vmatmul.mubr.f32.gmra.mrb[0].mxu0 %v555
    %v1866 = vpop.f32.mrb[0].mxu0
    %v1867 = vadd.f32 0.0, %v1866
    %v1868 = vpop.f32.mrb[0].mxu0
    %1869 = vmatprep.mubr.f32.mxu0 0.0
    %1870 = vmatmul.mubr.f32.gmra.mrb[0].mxu0 %v556
    %v1871 = vpop.f32.mrb[0].mxu0
    %v1872 = vadd.f32 0.0, %v1871
    %v1873 = vpop.f32.mrb[0].mxu0
    %1874 = vmatprep.mubr.f32.mxu0 0.0
    %1875 = vmatmul.mubr.f32.gmra.mrb[0].mxu0 %v557
    %v1876 = vpop.f32.mrb[0].mxu0
    %v1877 = vadd.f32 0.0, %v1876
    %v1878 = vpop.f32.mrb[0].mxu0
    %1879 = vmatprep.mubr.f32.mxu0 0.0
    %1880 = vmatmul.mubr.f32.gmra.mrb[0].mxu0 %v558
    %v1881 = vpop.f32.mrb[0].mxu0
    %v1882 = vadd.f32 0.0, %v1881
    %v1883 = vpop.f32.mrb[0].mxu0
    %1884 = vmatprep.mubr.f32.mxu0 0.0
    %1885 = vmatmul.mubr.f32.gmra.mrb[0].mxu0 %v559
    %v1886 = vpop.f32.mrb[0].mxu0
    %v1887 = vadd.f32 0.0, %v1886
    %v1888 = vpop.f32.mrb[0].mxu0
    %1889 = vmatprep.mubr.f32.mxu0 0.0
    %1890 = vmatmul.mubr.f32.gmra.mrb[0].mxu0 %v560
    %v1891 = vpop.f32.mrb[0].mxu0
    %v1892 = vadd.f32 0.0, %v1891
    %v1893 = vpop.f32.mrb[0].mxu0
    %1894 = vmatprep.mubr.f32.mxu0 0.0
    %1895 = vmatmul.mubr.f32.gmra.mrb[0].mxu0 %v561
    %v1896 = vpop.f32.mrb[0].mxu0
    %v1897 = vadd.f32 0.0, %v1896
    %v1898 = vpop.f32.mrb[0].mxu0
    %1899 = vmatprep.mubr.f32.mxu0 0.0
    %1900 = vmatmul.mubr.f32.gmra.mrb[0].mxu0 %v562
    %v1901 = vpop.f32.mrb[0].mxu0
    %v1902 = vadd.f32 0.0, %v1901
    %v1903 = vpop.f32.mrb[0].mxu0
    %1904 = vmatprep.mubr.f32.mxu0 0.0
    %1905 = vmatmul.mubr.f32.gmra.mrb[0].mxu0 %v563
    %v1906 = vpop.f32.mrb[0].mxu0
    %v1907 = vadd.f32 0.0, %v1906
    %v1908 = vpop.f32.mrb[0].mxu0
    %1909 = vmatprep.mubr.f32.mxu0 0.0
    %1910 = vmatmul.mubr.f32.gmra.mrb[0].mxu0 %v564
    %v1911 = vpop.f32.mrb[0].mxu0
    %v1912 = vadd.f32 0.0, %v1911
    %v1913 = vpop.f32.mrb[0].mxu0
    %1914 = vmatprep.mubr.f32.mxu0 0.0
    %1915 = vmatmul.mubr.f32.gmra.mrb[0].mxu0 %v565
    %v1916 = vpop.f32.mrb[0].mxu0
    %v1917 = vadd.f32 0.0, %v1916
    %v1918 = vpop.f32.mrb[0].mxu0
    %1919 = vmatprep.mubr.f32.mxu0 0.0
    %1920 = vmatmul.mubr.f32.gmra.mrb[0].mxu0 %v566
    %v1921 = vpop.f32.mrb[0].mxu0
    %v1922 = vadd.f32 0.0, %v1921
    %v1923 = vpop.f32.mrb[0].mxu0
    %1924 = vmatprep.mubr.f32.mxu0 0.0
    %1925 = vmatmul.mubr.f32.gmra.mrb[0].mxu0 %v567
    %v1926 = vpop.f32.mrb[0].mxu0
    %v1927 = vadd.f32 0.0, %v1926
    %v1928 = vpop.f32.mrb[0].mxu0
    %1929 = vmatprep.mubr.f32.mxu0 0.0
    %1930 = vmatmul.mubr.f32.gmra.mrb[0].mxu0 %v568
    %v1931 = vpop.f32.mrb[0].mxu0
    %v1932 = vadd.f32 0.0, %v1931
    %v1933 = vpop.f32.mrb[0].mxu0
    %1934 = vdwg.mxu0
    %v1935 = vsub.f32 %v652, 1.0
    %v1936 = vsub.f32 %v657, 1.0
    %v1937 = vsub.f32 %v662, 1.0
    %v1938 = vsub.f32 %v667, 1.0
    %v1939 = vsub.f32 %v672, 1.0
    %v1940 = vsub.f32 %v677, 1.0
    %v1941 = vsub.f32 %v682, 1.0
    %v1942 = vsub.f32 %v687, 1.0
    %v1943 = vsub.f32 %v692, 1.0
    %v1944 = vsub.f32 %v697, 1.0
    %v1945 = vsub.f32 %v702, 1.0
    %v1946 = vsub.f32 %v707, 1.0
    %v1947 = vsub.f32 %v712, 1.0
    %v1948 = vsub.f32 %v717, 1.0
    %v1949 = vsub.f32 %v722, 1.0
    %v1950 = vsub.f32 %v727, 1.0
    %v1951 = vsub.f32 %v732, 1.0
    %v1952 = vsub.f32 %v737, 1.0
    %v1953 = vsub.f32 %v742, 1.0
    %v1954 = vsub.f32 %v747, 1.0
    %v1955 = vsub.f32 %v752, 1.0
    %v1956 = vsub.f32 %v757, 1.0
    %v1957 = vsub.f32 %v762, 1.0
    %v1958 = vsub.f32 %v767, 1.0
    %v1959 = vsub.f32 %v772, 1.0
    %v1960 = vsub.f32 %v777, 1.0
    %v1961 = vsub.f32 %v782, 1.0
    %v1962 = vsub.f32 %v787, 1.0
    %v1963 = vsub.f32 %v792, 1.0
    %v1964 = vsub.f32 %v797, 1.0
    %v1965 = vsub.f32 %v802, 1.0
    %v1966 = vsub.f32 %v807, 1.0
    %v1967 = vsub.f32 %v812, 1.0
    %v1968 = vsub.f32 %v817, 1.0
    %v1969 = vsub.f32 %v822, 1.0
    %v1970 = vsub.f32 %v827, 1.0
    %v1971 = vsub.f32 %v832, 1.0
    %v1972 = vsub.f32 %v837, 1.0
    %v1973 = vsub.f32 %v842, 1.0
    %v1974 = vsub.f32 %v847, 1.0
    %v1975 = vsub.f32 %v852, 1.0
    %v1976 = vsub.f32 %v857, 1.0
    %v1977 = vsub.f32 %v862, 1.0
    %v1978 = vsub.f32 %v867, 1.0
    %v1979 = vsub.f32 %v872, 1.0
    %v1980 = vsub.f32 %v877, 1.0
    %v1981 = vsub.f32 %v882, 1.0
    %v1982 = vsub.f32 %v887, 1.0
    %v1983 = vsub.f32 %v892, 1.0
    %v1984 = vsub.f32 %v897, 1.0
    %v1985 = vsub.f32 %v902, 1.0
    %v1986 = vsub.f32 %v907, 1.0
    %v1987 = vsub.f32 %v912, 1.0
    %v1988 = vsub.f32 %v917, 1.0
    %v1989 = vsub.f32 %v922, 1.0
    %v1990 = vsub.f32 %v927, 1.0
    %v1991 = vsub.f32 %v932, 1.0
    %v1992 = vsub.f32 %v937, 1.0
    %v1993 = vsub.f32 %v942, 1.0
    %v1994 = vsub.f32 %v947, 1.0
    %v1995 = vsub.f32 %v952, 1.0
    %v1996 = vsub.f32 %v957, 1.0
    %v1997 = vsub.f32 %v962, 1.0
    %v1998 = vsub.f32 %v967, 1.0
    %v1999 = vsub.f32 %v972, 1.0
    %v2000 = vsub.f32 %v977, 1.0
    %v2001 = vsub.f32 %v982, 1.0
    %v2002 = vsub.f32 %v987, 1.0
    %v2003 = vsub.f32 %v992, 1.0
    %v2004 = vsub.f32 %v997, 1.0
    %v2005 = vsub.f32 %v1002, 1.0
    %v2006 = vsub.f32 %v1007, 1.0
    %v2007 = vsub.f32 %v1012, 1.0
    %v2008 = vsub.f32 %v1017, 1.0
    %v2009 = vsub.f32 %v1022, 1.0
    %v2010 = vsub.f32 %v1027, 1.0
    %v2011 = vsub.f32 %v1032, 1.0
    %v2012 = vsub.f32 %v1037, 1.0
    %v2013 = vsub.f32 %v1042, 1.0
    %v2014 = vsub.f32 %v1047, 1.0
    %v2015 = vsub.f32 %v1052, 1.0
    %v2016 = vsub.f32 %v1057, 1.0
    %v2017 = vsub.f32 %v1062, 1.0
    %v2018 = vsub.f32 %v1067, 1.0
    %v2019 = vsub.f32 %v1072, 1.0
    %v2020 = vsub.f32 %v1077, 1.0
    %v2021 = vsub.f32 %v1082, 1.0
    %v2022 = vsub.f32 %v1087, 1.0
    %v2023 = vsub.f32 %v1092, 1.0
    %v2024 = vsub.f32 %v1097, 1.0
    %v2025 = vsub.f32 %v1102, 1.0
    %v2026 = vsub.f32 %v1107, 1.0
    %v2027 = vsub.f32 %v1112, 1.0
    %v2028 = vsub.f32 %v1117, 1.0
    %v2029 = vsub.f32 %v1122, 1.0
    %v2030 = vsub.f32 %v1127, 1.0
    %v2031 = vsub.f32 %v1132, 1.0
    %v2032 = vsub.f32 %v1137, 1.0
    %v2033 = vsub.f32 %v1142, 1.0
    %v2034 = vsub.f32 %v1147, 1.0
    %v2035 = vsub.f32 %v1152, 1.0
    %v2036 = vsub.f32 %v1157, 1.0
    %v2037 = vsub.f32 %v1162, 1.0
    %v2038 = vsub.f32 %v1167, 1.0
    %v2039 = vsub.f32 %v1172, 1.0
    %v2040 = vsub.f32 %v1177, 1.0
    %v2041 = vsub.f32 %v1182, 1.0
    %v2042 = vsub.f32 %v1187, 1.0
    %v2043 = vsub.f32 %v1192, 1.0
    %v2044 = vsub.f32 %v1197, 1.0
    %v2045 = vsub.f32 %v1202, 1.0
    %v2046 = vsub.f32 %v1207, 1.0
    %v2047 = vsub.f32 %v1212, 1.0
    %v2048 = vsub.f32 %v1217, 1.0
    %v2049 = vsub.f32 %v1222, 1.0
    %v2050 = vsub.f32 %v1227, 1.0
    %v2051 = vsub.f32 %v1232, 1.0
    %v2052 = vsub.f32 %v1237, 1.0
    %v2053 = vsub.f32 %v1242, 1.0
    %v2054 = vsub.f32 %v1247, 1.0
    %v2055 = vsub.f32 %v1252, 1.0
    %v2056 = vsub.f32 %v1257, 1.0
    %v2057 = vsub.f32 %v1262, 1.0
    %v2058 = vsub.f32 %v1267, 1.0
    %v2059 = vsub.f32 %v1272, 1.0
    %v2060 = vsub.f32 %v1277, 1.0
    %v2061 = vsub.f32 %v1282, 1.0
    %v2062 = vsub.f32 %v1287, 1.0
    %v2063 = vsub.f32 %v1292, 1.0
    %v2064 = vsub.f32 %v1297, 1.0
    %v2065 = vsub.f32 %v1302, 1.0
    %v2066 = vsub.f32 %v1307, 1.0
    %v2067 = vsub.f32 %v1312, 1.0
    %v2068 = vsub.f32 %v1317, 1.0
    %v2069 = vsub.f32 %v1322, 1.0
    %v2070 = vsub.f32 %v1327, 1.0
    %v2071 = vsub.f32 %v1332, 1.0
    %v2072 = vsub.f32 %v1337, 1.0
    %v2073 = vsub.f32 %v1342, 1.0
    %v2074 = vsub.f32 %v1347, 1.0
    %v2075 = vsub.f32 %v1352, 1.0
    %v2076 = vsub.f32 %v1357, 1.0
    %v2077 = vsub.f32 %v1362, 1.0
    %v2078 = vsub.f32 %v1367, 1.0
    %v2079 = vsub.f32 %v1372, 1.0
    %v2080 = vsub.f32 %v1377, 1.0
    %v2081 = vsub.f32 %v1382, 1.0
    %v2082 = vsub.f32 %v1387, 1.0
    %v2083 = vsub.f32 %v1392, 1.0
    %v2084 = vsub.f32 %v1397, 1.0
    %v2085 = vsub.f32 %v1402, 1.0
    %v2086 = vsub.f32 %v1407, 1.0
    %v2087 = vsub.f32 %v1412, 1.0
    %v2088 = vsub.f32 %v1417, 1.0
    %v2089 = vsub.f32 %v1422, 1.0
    %v2090 = vsub.f32 %v1427, 1.0
    %v2091 = vsub.f32 %v1432, 1.0
    %v2092 = vsub.f32 %v1437, 1.0
    %v2093 = vsub.f32 %v1442, 1.0
    %v2094 = vsub.f32 %v1447, 1.0
    %v2095 = vsub.f32 %v1452, 1.0
    %v2096 = vsub.f32 %v1457, 1.0
    %v2097 = vsub.f32 %v1462, 1.0
    %v2098 = vsub.f32 %v1467, 1.0
    %v2099 = vsub.f32 %v1472, 1.0
    %v2100 = vsub.f32 %v1477, 1.0
    %v2101 = vsub.f32 %v1482, 1.0
    %v2102 = vsub.f32 %v1487, 1.0
    %v2103 = vsub.f32 %v1492, 1.0
    %v2104 = vsub.f32 %v1497, 1.0
    %v2105 = vsub.f32 %v1502, 1.0
    %v2106 = vsub.f32 %v1507, 1.0
    %v2107 = vsub.f32 %v1512, 1.0
    %v2108 = vsub.f32 %v1517, 1.0
    %v2109 = vsub.f32 %v1522, 1.0
    %v2110 = vsub.f32 %v1527, 1.0
    %v2111 = vsub.f32 %v1532, 1.0
    %v2112 = vsub.f32 %v1537, 1.0
    %v2113 = vsub.f32 %v1542, 1.0
    %v2114 = vsub.f32 %v1547, 1.0
    %v2115 = vsub.f32 %v1552, 1.0
    %v2116 = vsub.f32 %v1557, 1.0
    %v2117 = vsub.f32 %v1562, 1.0
    %v2118 = vsub.f32 %v1567, 1.0
    %v2119 = vsub.f32 %v1572, 1.0
    %v2120 = vsub.f32 %v1577, 1.0
    %v2121 = vsub.f32 %v1582, 1.0
    %v2122 = vsub.f32 %v1587, 1.0
    %v2123 = vsub.f32 %v1592, 1.0
    %v2124 = vsub.f32 %v1597, 1.0
    %v2125 = vsub.f32 %v1602, 1.0
    %v2126 = vsub.f32 %v1607, 1.0
    %v2127 = vsub.f32 %v1612, 1.0
    %v2128 = vsub.f32 %v1617, 1.0
    %v2129 = vsub.f32 %v1622, 1.0
    %v2130 = vsub.f32 %v1627, 1.0
    %v2131 = vsub.f32 %v1632, 1.0
    %v2132 = vsub.f32 %v1637, 1.0
    %v2133 = vsub.f32 %v1642, 1.0
    %v2134 = vsub.f32 %v1647, 1.0
    %v2135 = vsub.f32 %v1652, 1.0
    %v2136 = vsub.f32 %v1657, 1.0
    %v2137 = vsub.f32 %v1662, 1.0
    %v2138 = vsub.f32 %v1667, 1.0
    %v2139 = vsub.f32 %v1672, 1.0
    %v2140 = vsub.f32 %v1677, 1.0
    %v2141 = vsub.f32 %v1682, 1.0
    %v2142 = vsub.f32 %v1687, 1.0
    %v2143 = vsub.f32 %v1692, 1.0
    %v2144 = vsub.f32 %v1697, 1.0
    %v2145 = vsub.f32 %v1702, 1.0
    %v2146 = vsub.f32 %v1707, 1.0
    %v2147 = vsub.f32 %v1712, 1.0
    %v2148 = vsub.f32 %v1717, 1.0
    %v2149 = vsub.f32 %v1722, 1.0
    %v2150 = vsub.f32 %v1727, 1.0
    %v2151 = vsub.f32 %v1732, 1.0
    %v2152 = vsub.f32 %v1737, 1.0
    %v2153 = vsub.f32 %v1742, 1.0
    %v2154 = vsub.f32 %v1747, 1.0
    %v2155 = vsub.f32 %v1752, 1.0
    %v2156 = vsub.f32 %v1757, 1.0
    %v2157 = vsub.f32 %v1762, 1.0
    %v2158 = vsub.f32 %v1767, 1.0
    %v2159 = vsub.f32 %v1772, 1.0
    %v2160 = vsub.f32 %v1777, 1.0
    %v2161 = vsub.f32 %v1782, 1.0
    %v2162 = vsub.f32 %v1787, 1.0
    %v2163 = vsub.f32 %v1792, 1.0
    %v2164 = vsub.f32 %v1797, 1.0
    %v2165 = vsub.f32 %v1802, 1.0
    %v2166 = vsub.f32 %v1807, 1.0
    %v2167 = vsub.f32 %v1812, 1.0
    %v2168 = vsub.f32 %v1817, 1.0
    %v2169 = vsub.f32 %v1822, 1.0
    %v2170 = vsub.f32 %v1827, 1.0
    %v2171 = vsub.f32 %v1832, 1.0
    %v2172 = vsub.f32 %v1837, 1.0
    %v2173 = vsub.f32 %v1842, 1.0
    %v2174 = vsub.f32 %v1847, 1.0
    %v2175 = vsub.f32 %v1852, 1.0
    %v2176 = vsub.f32 %v1857, 1.0
    %v2177 = vsub.f32 %v1862, 1.0
    %v2178 = vsub.f32 %v1867, 1.0
    %v2179 = vsub.f32 %v1872, 1.0
    %v2180 = vsub.f32 %v1877, 1.0
    %v2181 = vsub.f32 %v1882, 1.0
    %v2182 = vsub.f32 %v1887, 1.0
    %v2183 = vsub.f32 %v1892, 1.0
    %v2184 = vsub.f32 %v1897, 1.0
    %v2185 = vsub.f32 %v1902, 1.0
    %v2186 = vsub.f32 %v1907, 1.0
    %v2187 = vsub.f32 %v1912, 1.0
    %v2188 = vsub.f32 %v1917, 1.0
    %v2189 = vsub.f32 %v1922, 1.0
    %v2190 = vsub.f32 %v1927, 1.0
    %v2191 = vsub.f32 %v1932, 1.0
    %v2192 = vmax.f32 %v1935, 0.0
    %v2193 = vmax.f32 %v1936, 0.0
    %v2194 = vmax.f32 %v1937, 0.0
    %v2195 = vmax.f32 %v1938, 0.0
    %v2196 = vmax.f32 %v1939, 0.0
    %v2197 = vmax.f32 %v1940, 0.0
    %v2198 = vmax.f32 %v1941, 0.0
    %v2199 = vmax.f32 %v1942, 0.0
    %v2200 = vmax.f32 %v1943, 0.0
    %v2201 = vmax.f32 %v1944, 0.0
    %v2202 = vmax.f32 %v1945, 0.0
    %v2203 = vmax.f32 %v1946, 0.0
    %v2204 = vmax.f32 %v1947, 0.0
    %v2205 = vmax.f32 %v1948, 0.0
    %v2206 = vmax.f32 %v1949, 0.0
    %v2207 = vmax.f32 %v1950, 0.0
    %v2208 = vmax.f32 %v1951, 0.0
    %v2209 = vmax.f32 %v1952, 0.0
    %v2210 = vmax.f32 %v1953, 0.0
    %v2211 = vmax.f32 %v1954, 0.0
    %v2212 = vmax.f32 %v1955, 0.0
    %v2213 = vmax.f32 %v1956, 0.0
    %v2214 = vmax.f32 %v1957, 0.0
    %v2215 = vmax.f32 %v1958, 0.0
    %v2216 = vmax.f32 %v1959, 0.0
    %v2217 = vmax.f32 %v1960, 0.0
    %v2218 = vmax.f32 %v1961, 0.0
    %v2219 = vmax.f32 %v1962, 0.0
    %v2220 = vmax.f32 %v1963, 0.0
    %v2221 = vmax.f32 %v1964, 0.0
    %v2222 = vmax.f32 %v1965, 0.0
    %v2223 = vmax.f32 %v1966, 0.0
    %v2224 = vmax.f32 %v1967, 0.0
    %v2225 = vmax.f32 %v1968, 0.0
    %v2226 = vmax.f32 %v1969, 0.0
    %v2227 = vmax.f32 %v1970, 0.0
    %v2228 = vmax.f32 %v1971, 0.0
    %v2229 = vmax.f32 %v1972, 0.0
    %v2230 = vmax.f32 %v1973, 0.0
    %v2231 = vmax.f32 %v1974, 0.0
    %v2232 = vmax.f32 %v1975, 0.0
    %v2233 = vmax.f32 %v1976, 0.0
    %v2234 = vmax.f32 %v1977, 0.0
    %v2235 = vmax.f32 %v1978, 0.0
    %v2236 = vmax.f32 %v1979, 0.0
    %v2237 = vmax.f32 %v1980, 0.0
    %v2238 = vmax.f32 %v1981, 0.0
    %v2239 = vmax.f32 %v1982, 0.0
    %v2240 = vmax.f32 %v1983, 0.0
    %v2241 = vmax.f32 %v1984, 0.0
    %v2242 = vmax.f32 %v1985, 0.0
    %v2243 = vmax.f32 %v1986, 0.0
    %v2244 = vmax.f32 %v1987, 0.0
    %v2245 = vmax.f32 %v1988, 0.0
    %v2246 = vmax.f32 %v1989, 0.0
    %v2247 = vmax.f32 %v1990, 0.0
    %v2248 = vmax.f32 %v1991, 0.0
    %v2249 = vmax.f32 %v1992, 0.0
    %v2250 = vmax.f32 %v1993, 0.0
    %v2251 = vmax.f32 %v1994, 0.0
    %v2252 = vmax.f32 %v1995, 0.0
    %v2253 = vmax.f32 %v1996, 0.0
    %v2254 = vmax.f32 %v1997, 0.0
    %v2255 = vmax.f32 %v1998, 0.0
    %v2256 = vmax.f32 %v1999, 0.0
    %v2257 = vmax.f32 %v2000, 0.0
    %v2258 = vmax.f32 %v2001, 0.0
    %v2259 = vmax.f32 %v2002, 0.0
    %v2260 = vmax.f32 %v2003, 0.0
    %v2261 = vmax.f32 %v2004, 0.0
    %v2262 = vmax.f32 %v2005, 0.0
    %v2263 = vmax.f32 %v2006, 0.0
    %v2264 = vmax.f32 %v2007, 0.0
    %v2265 = vmax.f32 %v2008, 0.0
    %v2266 = vmax.f32 %v2009, 0.0
    %v2267 = vmax.f32 %v2010, 0.0
    %v2268 = vmax.f32 %v2011, 0.0
    %v2269 = vmax.f32 %v2012, 0.0
    %v2270 = vmax.f32 %v2013, 0.0
    %v2271 = vmax.f32 %v2014, 0.0
    %v2272 = vmax.f32 %v2015, 0.0
    %v2273 = vmax.f32 %v2016, 0.0
    %v2274 = vmax.f32 %v2017, 0.0
    %v2275 = vmax.f32 %v2018, 0.0
    %v2276 = vmax.f32 %v2019, 0.0
    %v2277 = vmax.f32 %v2020, 0.0
    %v2278 = vmax.f32 %v2021, 0.0
    %v2279 = vmax.f32 %v2022, 0.0
    %v2280 = vmax.f32 %v2023, 0.0
    %v2281 = vmax.f32 %v2024, 0.0
    %v2282 = vmax.f32 %v2025, 0.0
    %v2283 = vmax.f32 %v2026, 0.0
    %v2284 = vmax.f32 %v2027, 0.0
    %v2285 = vmax.f32 %v2028, 0.0
    %v2286 = vmax.f32 %v2029, 0.0
    %v2287 = vmax.f32 %v2030, 0.0
    %v2288 = vmax.f32 %v2031, 0.0
    %v2289 = vmax.f32 %v2032, 0.0
    %v2290 = vmax.f32 %v2033, 0.0
    %v2291 = vmax.f32 %v2034, 0.0
    %v2292 = vmax.f32 %v2035, 0.0
    %v2293 = vmax.f32 %v2036, 0.0
    %v2294 = vmax.f32 %v2037, 0.0
    %v2295 = vmax.f32 %v2038, 0.0
    %v2296 = vmax.f32 %v2039, 0.0
    %v2297 = vmax.f32 %v2040, 0.0
    %v2298 = vmax.f32 %v2041, 0.0
    %v2299 = vmax.f32 %v2042, 0.0
    %v2300 = vmax.f32 %v2043, 0.0
    %v2301 = vmax.f32 %v2044, 0.0
    %v2302 = vmax.f32 %v2045, 0.0
    %v2303 = vmax.f32 %v2046, 0.0
    %v2304 = vmax.f32 %v2047, 0.0
    %v2305 = vmax.f32 %v2048, 0.0
    %v2306 = vmax.f32 %v2049, 0.0
    %v2307 = vmax.f32 %v2050, 0.0
    %v2308 = vmax.f32 %v2051, 0.0
    %v2309 = vmax.f32 %v2052, 0.0
    %v2310 = vmax.f32 %v2053, 0.0
    %v2311 = vmax.f32 %v2054, 0.0
    %v2312 = vmax.f32 %v2055, 0.0
    %v2313 = vmax.f32 %v2056, 0.0
    %v2314 = vmax.f32 %v2057, 0.0
    %v2315 = vmax.f32 %v2058, 0.0
    %v2316 = vmax.f32 %v2059, 0.0
    %v2317 = vmax.f32 %v2060, 0.0
    %v2318 = vmax.f32 %v2061, 0.0
    %v2319 = vmax.f32 %v2062, 0.0
    %v2320 = vmax.f32 %v2063, 0.0
    %v2321 = vmax.f32 %v2064, 0.0
    %v2322 = vmax.f32 %v2065, 0.0
    %v2323 = vmax.f32 %v2066, 0.0
    %v2324 = vmax.f32 %v2067, 0.0
    %v2325 = vmax.f32 %v2068, 0.0
    %v2326 = vmax.f32 %v2069, 0.0
    %v2327 = vmax.f32 %v2070, 0.0
    %v2328 = vmax.f32 %v2071, 0.0
    %v2329 = vmax.f32 %v2072, 0.0
    %v2330 = vmax.f32 %v2073, 0.0
    %v2331 = vmax.f32 %v2074, 0.0
    %v2332 = vmax.f32 %v2075, 0.0
    %v2333 = vmax.f32 %v2076, 0.0
    %v2334 = vmax.f32 %v2077, 0.0
    %v2335 = vmax.f32 %v2078, 0.0
    %v2336 = vmax.f32 %v2079, 0.0
    %v2337 = vmax.f32 %v2080, 0.0
    %v2338 = vmax.f32 %v2081, 0.0
    %v2339 = vmax.f32 %v2082, 0.0
    %v2340 = vmax.f32 %v2083, 0.0
    %v2341 = vmax.f32 %v2084, 0.0
    %v2342 = vmax.f32 %v2085, 0.0
    %v2343 = vmax.f32 %v2086, 0.0
    %v2344 = vmax.f32 %v2087, 0.0
    %v2345 = vmax.f32 %v2088, 0.0
    %v2346 = vmax.f32 %v2089, 0.0
    %v2347 = vmax.f32 %v2090, 0.0
    %v2348 = vmax.f32 %v2091, 0.0
    %v2349 = vmax.f32 %v2092, 0.0
    %v2350 = vmax.f32 %v2093, 0.0
    %v2351 = vmax.f32 %v2094, 0.0
    %v2352 = vmax.f32 %v2095, 0.0
    %v2353 = vmax.f32 %v2096, 0.0
    %v2354 = vmax.f32 %v2097, 0.0
    %v2355 = vmax.f32 %v2098, 0.0
    %v2356 = vmax.f32 %v2099, 0.0
    %v2357 = vmax.f32 %v2100, 0.0
    %v2358 = vmax.f32 %v2101, 0.0
    %v2359 = vmax.f32 %v2102, 0.0
    %v2360 = vmax.f32 %v2103, 0.0
    %v2361 = vmax.f32 %v2104, 0.0
    %v2362 = vmax.f32 %v2105, 0.0
    %v2363 = vmax.f32 %v2106, 0.0
    %v2364 = vmax.f32 %v2107, 0.0
    %v2365 = vmax.f32 %v2108, 0.0
    %v2366 = vmax.f32 %v2109, 0.0
    %v2367 = vmax.f32 %v2110, 0.0
    %v2368 = vmax.f32 %v2111, 0.0
    %v2369 = vmax.f32 %v2112, 0.0
    %v2370 = vmax.f32 %v2113, 0.0
    %v2371 = vmax.f32 %v2114, 0.0
    %v2372 = vmax.f32 %v2115, 0.0
    %v2373 = vmax.f32 %v2116, 0.0
    %v2374 = vmax.f32 %v2117, 0.0
    %v2375 = vmax.f32 %v2118, 0.0
    %v2376 = vmax.f32 %v2119, 0.0
    %v2377 = vmax.f32 %v2120, 0.0
    %v2378 = vmax.f32 %v2121, 0.0
    %v2379 = vmax.f32 %v2122, 0.0
    %v2380 = vmax.f32 %v2123, 0.0
    %v2381 = vmax.f32 %v2124, 0.0
    %v2382 = vmax.f32 %v2125, 0.0
    %v2383 = vmax.f32 %v2126, 0.0
    %v2384 = vmax.f32 %v2127, 0.0
    %v2385 = vmax.f32 %v2128, 0.0
    %v2386 = vmax.f32 %v2129, 0.0
    %v2387 = vmax.f32 %v2130, 0.0
    %v2388 = vmax.f32 %v2131, 0.0
    %v2389 = vmax.f32 %v2132, 0.0
    %v2390 = vmax.f32 %v2133, 0.0
    %v2391 = vmax.f32 %v2134, 0.0
    %v2392 = vmax.f32 %v2135, 0.0
    %v2393 = vmax.f32 %v2136, 0.0
    %v2394 = vmax.f32 %v2137, 0.0
    %v2395 = vmax.f32 %v2138, 0.0
    %v2396 = vmax.f32 %v2139, 0.0
    %v2397 = vmax.f32 %v2140, 0.0
    %v2398 = vmax.f32 %v2141, 0.0
    %v2399 = vmax.f32 %v2142, 0.0
    %v2400 = vmax.f32 %v2143, 0.0
    %v2401 = vmax.f32 %v2144, 0.0
    %v2402 = vmax.f32 %v2145, 0.0
    %v2403 = vmax.f32 %v2146, 0.0
    %v2404 = vmax.f32 %v2147, 0.0
    %v2405 = vmax.f32 %v2148, 0.0
    %v2406 = vmax.f32 %v2149, 0.0
    %v2407 = vmax.f32 %v2150, 0.0
    %v2408 = vmax.f32 %v2151, 0.0
    %v2409 = vmax.f32 %v2152, 0.0
    %v2410 = vmax.f32 %v2153, 0.0
    %v2411 = vmax.f32 %v2154, 0.0
    %v2412 = vmax.f32 %v2155, 0.0
    %v2413 = vmax.f32 %v2156, 0.0
    %v2414 = vmax.f32 %v2157, 0.0
    %v2415 = vmax.f32 %v2158, 0.0
    %v2416 = vmax.f32 %v2159, 0.0
    %v2417 = vmax.f32 %v2160, 0.0
    %v2418 = vmax.f32 %v2161, 0.0
    %v2419 = vmax.f32 %v2162, 0.0
    %v2420 = vmax.f32 %v2163, 0.0
    %v2421 = vmax.f32 %v2164, 0.0
    %v2422 = vmax.f32 %v2165, 0.0
    %v2423 = vmax.f32 %v2166, 0.0
    %v2424 = vmax.f32 %v2167, 0.0
    %v2425 = vmax.f32 %v2168, 0.0
    %v2426 = vmax.f32 %v2169, 0.0
    %v2427 = vmax.f32 %v2170, 0.0
    %v2428 = vmax.f32 %v2171, 0.0
    %v2429 = vmax.f32 %v2172, 0.0
    %v2430 = vmax.f32 %v2173, 0.0
    %v2431 = vmax.f32 %v2174, 0.0
    %v2432 = vmax.f32 %v2175, 0.0
    %v2433 = vmax.f32 %v2176, 0.0
    %v2434 = vmax.f32 %v2177, 0.0
    %v2435 = vmax.f32 %v2178, 0.0
    %v2436 = vmax.f32 %v2179, 0.0
    %v2437 = vmax.f32 %v2180, 0.0
    %v2438 = vmax.f32 %v2181, 0.0
    %v2439 = vmax.f32 %v2182, 0.0
    %v2440 = vmax.f32 %v2183, 0.0
    %v2441 = vmax.f32 %v2184, 0.0
    %v2442 = vmax.f32 %v2185, 0.0
    %v2443 = vmax.f32 %v2186, 0.0
    %v2444 = vmax.f32 %v2187, 0.0
    %v2445 = vmax.f32 %v2188, 0.0
    %v2446 = vmax.f32 %v2189, 0.0
    %v2447 = vmax.f32 %v2190, 0.0
    %v2448 = vmax.f32 %v2191, 0.0
    %s2449 = sadd.s32 0, 0
    %s2450 = sadd.s32 %s2449, 1
    %s2451 = smul.u32 %s2450, 2050
    %p2452 = scmp.le.s32.totalorder %s2451, 2050
    // Predicated region
    $region22: #{tpu_custom_call.1} parent=1 // pred_check
      %p2453 = pneg %p2452
    $region23: #{tpu_custom_call.1} parent=1 // pred_check_branch
      %2455 = sbr.rel (%p2453) target = $region25
    $region24: #{tpu_custom_call.1} parent=1 // pred_region
      %v2456 = vld [vmem:[#allocation7] sm:$0x1]
      %v2457 = vadd.f32 %v2192, %v2193
      %v2458 = vadd.f32 %v2457, %v2194
      %v2459 = vadd.f32 %v2458, %v2195
      %v2460 = vadd.f32 %v2459, %v2196
      %v2461 = vadd.f32 %v2460, %v2197
      %v2462 = vadd.f32 %v2461, %v2198
      %v2463 = vadd.f32 %v2462, %v2199
      %v2464 = vadd.f32 %v2463, %v2200
      %v2465 = vadd.f32 %v2464, %v2201
      %v2466 = vadd.f32 %v2465, %v2202
      %v2467 = vadd.f32 %v2466, %v2203
      %v2468 = vadd.f32 %v2467, %v2204
      %v2469 = vadd.f32 %v2468, %v2205
      %v2470 = vadd.f32 %v2469, %v2206
      %v2471 = vadd.f32 %v2470, %v2207
      %v2472 = vadd.f32 %v2471, %v2208
      %v2473 = vadd.f32 %v2472, %v2209
      %v2474 = vadd.f32 %v2473, %v2210
      %v2475 = vadd.f32 %v2474, %v2211
      %v2476 = vadd.f32 %v2475, %v2212
      %v2477 = vadd.f32 %v2476, %v2213
      %v2478 = vadd.f32 %v2477, %v2214
      %v2479 = vadd.f32 %v2478, %v2215
      %v2480 = vadd.f32 %v2479, %v2216
      %v2481 = vadd.f32 %v2480, %v2217
      %v2482 = vadd.f32 %v2481, %v2218
      %v2483 = vadd.f32 %v2482, %v2219
      %v2484 = vadd.f32 %v2483, %v2220
      %v2485 = vadd.f32 %v2484, %v2221
      %v2486 = vadd.f32 %v2485, %v2222
      %v2487 = vadd.f32 %v2486, %v2223
      %v2488 = vadd.f32 %v2487, %v2224
      %v2489 = vadd.f32 %v2488, %v2225
      %v2490 = vadd.f32 %v2489, %v2226
      %v2491 = vadd.f32 %v2490, %v2227
      %v2492 = vadd.f32 %v2491, %v2228
      %v2493 = vadd.f32 %v2492, %v2229
      %v2494 = vadd.f32 %v2493, %v2230
      %v2495 = vadd.f32 %v2494, %v2231
      %v2496 = vadd.f32 %v2495, %v2232
      %v2497 = vadd.f32 %v2496, %v2233
      %v2498 = vadd.f32 %v2497, %v2234
      %v2499 = vadd.f32 %v2498, %v2235
      %v2500 = vadd.f32 %v2499, %v2236
      %v2501 = vadd.f32 %v2500, %v2237
      %v2502 = vadd.f32 %v2501, %v2238
      %v2503 = vadd.f32 %v2502, %v2239
      %v2504 = vadd.f32 %v2503, %v2240
      %v2505 = vadd.f32 %v2504, %v2241
      %v2506 = vadd.f32 %v2505, %v2242
      %v2507 = vadd.f32 %v2506, %v2243
      %v2508 = vadd.f32 %v2507, %v2244
      %v2509 = vadd.f32 %v2508, %v2245
      %v2510 = vadd.f32 %v2509, %v2246
      %v2511 = vadd.f32 %v2510, %v2247
      %v2512 = vadd.f32 %v2511, %v2248
      %v2513 = vadd.f32 %v2512, %v2249
      %v2514 = vadd.f32 %v2513, %v2250
      %v2515 = vadd.f32 %v2514, %v2251
      %v2516 = vadd.f32 %v2515, %v2252
      %v2517 = vadd.f32 %v2516, %v2253
      %v2518 = vadd.f32 %v2517, %v2254
      %v2519 = vadd.f32 %v2518, %v2255
      %v2520 = vadd.f32 %v2519, %v2256
      %v2521 = vadd.f32 %v2520, %v2257
      %v2522 = vadd.f32 %v2521, %v2258
      %v2523 = vadd.f32 %v2522, %v2259
      %v2524 = vadd.f32 %v2523, %v2260
      %v2525 = vadd.f32 %v2524, %v2261
      %v2526 = vadd.f32 %v2525, %v2262
      %v2527 = vadd.f32 %v2526, %v2263
      %v2528 = vadd.f32 %v2527, %v2264
      %v2529 = vadd.f32 %v2528, %v2265
      %v2530 = vadd.f32 %v2529, %v2266
      %v2531 = vadd.f32 %v2530, %v2267
      %v2532 = vadd.f32 %v2531, %v2268
      %v2533 = vadd.f32 %v2532, %v2269
      %v2534 = vadd.f32 %v2533, %v2270
      %v2535 = vadd.f32 %v2534, %v2271
      %v2536 = vadd.f32 %v2535, %v2272
      %v2537 = vadd.f32 %v2536, %v2273
      %v2538 = vadd.f32 %v2537, %v2274
      %v2539 = vadd.f32 %v2538, %v2275
      %v2540 = vadd.f32 %v2539, %v2276
      %v2541 = vadd.f32 %v2540, %v2277
      %v2542 = vadd.f32 %v2541, %v2278
      %v2543 = vadd.f32 %v2542, %v2279
      %v2544 = vadd.f32 %v2543, %v2280
      %v2545 = vadd.f32 %v2544, %v2281
      %v2546 = vadd.f32 %v2545, %v2282
      %v2547 = vadd.f32 %v2546, %v2283
      %v2548 = vadd.f32 %v2547, %v2284
      %v2549 = vadd.f32 %v2548, %v2285
      %v2550 = vadd.f32 %v2549, %v2286
      %v2551 = vadd.f32 %v2550, %v2287
      %v2552 = vadd.f32 %v2551, %v2288
      %v2553 = vadd.f32 %v2552, %v2289
      %v2554 = vadd.f32 %v2553, %v2290
      %v2555 = vadd.f32 %v2554, %v2291
      %v2556 = vadd.f32 %v2555, %v2292
      %v2557 = vadd.f32 %v2556, %v2293
      %v2558 = vadd.f32 %v2557, %v2294
      %v2559 = vadd.f32 %v2558, %v2295
      %v2560 = vadd.f32 %v2559, %v2296
      %v2561 = vadd.f32 %v2560, %v2297
      %v2562 = vadd.f32 %v2561, %v2298
      %v2563 = vadd.f32 %v2562, %v2299
      %v2564 = vadd.f32 %v2563, %v2300
      %v2565 = vadd.f32 %v2564, %v2301
      %v2566 = vadd.f32 %v2565, %v2302
      %v2567 = vadd.f32 %v2566, %v2303
      %v2568 = vadd.f32 %v2567, %v2304
      %v2569 = vadd.f32 %v2568, %v2305
      %v2570 = vadd.f32 %v2569, %v2306
      %v2571 = vadd.f32 %v2570, %v2307
      %v2572 = vadd.f32 %v2571, %v2308
      %v2573 = vadd.f32 %v2572, %v2309
      %v2574 = vadd.f32 %v2573, %v2310
      %v2575 = vadd.f32 %v2574, %v2311
      %v2576 = vadd.f32 %v2575, %v2312
      %v2577 = vadd.f32 %v2576, %v2313
      %v2578 = vadd.f32 %v2577, %v2314
      %v2579 = vadd.f32 %v2578, %v2315
      %v2580 = vadd.f32 %v2579, %v2316
      %v2581 = vadd.f32 %v2580, %v2317
      %v2582 = vadd.f32 %v2581, %v2318
      %v2583 = vadd.f32 %v2582, %v2319
      %v2584 = vadd.f32 %v2583, %v2320
      %v2585 = vadd.f32 %v2584, %v2321
      %v2586 = vadd.f32 %v2585, %v2322
      %v2587 = vadd.f32 %v2586, %v2323
      %v2588 = vadd.f32 %v2587, %v2324
      %v2589 = vadd.f32 %v2588, %v2325
      %v2590 = vadd.f32 %v2589, %v2326
      %v2591 = vadd.f32 %v2590, %v2327
      %v2592 = vadd.f32 %v2591, %v2328
      %v2593 = vadd.f32 %v2592, %v2329
      %v2594 = vadd.f32 %v2593, %v2330
      %v2595 = vadd.f32 %v2594, %v2331
      %v2596 = vadd.f32 %v2595, %v2332
      %v2597 = vadd.f32 %v2596, %v2333
      %v2598 = vadd.f32 %v2597, %v2334
      %v2599 = vadd.f32 %v2598, %v2335
      %v2600 = vadd.f32 %v2599, %v2336
      %v2601 = vadd.f32 %v2600, %v2337
      %v2602 = vadd.f32 %v2601, %v2338
      %v2603 = vadd.f32 %v2602, %v2339
      %v2604 = vadd.f32 %v2603, %v2340
      %v2605 = vadd.f32 %v2604, %v2341
      %v2606 = vadd.f32 %v2605, %v2342
      %v2607 = vadd.f32 %v2606, %v2343
      %v2608 = vadd.f32 %v2607, %v2344
      %v2609 = vadd.f32 %v2608, %v2345
      %v2610 = vadd.f32 %v2609, %v2346
      %v2611 = vadd.f32 %v2610, %v2347
      %v2612 = vadd.f32 %v2611, %v2348
      %v2613 = vadd.f32 %v2612, %v2349
      %v2614 = vadd.f32 %v2613, %v2350
      %v2615 = vadd.f32 %v2614, %v2351
      %v2616 = vadd.f32 %v2615, %v2352
      %v2617 = vadd.f32 %v2616, %v2353
      %v2618 = vadd.f32 %v2617, %v2354
      %v2619 = vadd.f32 %v2618, %v2355
      %v2620 = vadd.f32 %v2619, %v2356
      %v2621 = vadd.f32 %v2620, %v2357
      %v2622 = vadd.f32 %v2621, %v2358
      %v2623 = vadd.f32 %v2622, %v2359
      %v2624 = vadd.f32 %v2623, %v2360
      %v2625 = vadd.f32 %v2624, %v2361
      %v2626 = vadd.f32 %v2625, %v2362
      %v2627 = vadd.f32 %v2626, %v2363
      %v2628 = vadd.f32 %v2627, %v2364
      %v2629 = vadd.f32 %v2628, %v2365
      %v2630 = vadd.f32 %v2629, %v2366
      %v2631 = vadd.f32 %v2630, %v2367
      %v2632 = vadd.f32 %v2631, %v2368
      %v2633 = vadd.f32 %v2632, %v2369
      %v2634 = vadd.f32 %v2633, %v2370
      %v2635 = vadd.f32 %v2634, %v2371
      %v2636 = vadd.f32 %v2635, %v2372
      %v2637 = vadd.f32 %v2636, %v2373
      %v2638 = vadd.f32 %v2637, %v2374
      %v2639 = vadd.f32 %v2638, %v2375
      %v2640 = vadd.f32 %v2639, %v2376
      %v2641 = vadd.f32 %v2640, %v2377
      %v2642 = vadd.f32 %v2641, %v2378
      %v2643 = vadd.f32 %v2642, %v2379
      %v2644 = vadd.f32 %v2643, %v2380
      %v2645 = vadd.f32 %v2644, %v2381
      %v2646 = vadd.f32 %v2645, %v2382
      %v2647 = vadd.f32 %v2646, %v2383
      %v2648 = vadd.f32 %v2647, %v2384
      %v2649 = vadd.f32 %v2648, %v2385
      %v2650 = vadd.f32 %v2649, %v2386
      %v2651 = vadd.f32 %v2650, %v2387
      %v2652 = vadd.f32 %v2651, %v2388
      %v2653 = vadd.f32 %v2652, %v2389
      %v2654 = vadd.f32 %v2653, %v2390
      %v2655 = vadd.f32 %v2654, %v2391
      %v2656 = vadd.f32 %v2655, %v2392
      %v2657 = vadd.f32 %v2656, %v2393
      %v2658 = vadd.f32 %v2657, %v2394
      %v2659 = vadd.f32 %v2658, %v2395
      %v2660 = vadd.f32 %v2659, %v2396
      %v2661 = vadd.f32 %v2660, %v2397
      %v2662 = vadd.f32 %v2661, %v2398
      %v2663 = vadd.f32 %v2662, %v2399
      %v2664 = vadd.f32 %v2663, %v2400
      %v2665 = vadd.f32 %v2664, %v2401
      %v2666 = vadd.f32 %v2665, %v2402
      %v2667 = vadd.f32 %v2666, %v2403
      %v2668 = vadd.f32 %v2667, %v2404
      %v2669 = vadd.f32 %v2668, %v2405
      %v2670 = vadd.f32 %v2669, %v2406
      %v2671 = vadd.f32 %v2670, %v2407
      %v2672 = vadd.f32 %v2671, %v2408
      %v2673 = vadd.f32 %v2672, %v2409
      %v2674 = vadd.f32 %v2673, %v2410
      %v2675 = vadd.f32 %v2674, %v2411
      %v2676 = vadd.f32 %v2675, %v2412
      %v2677 = vadd.f32 %v2676, %v2413
      %v2678 = vadd.f32 %v2677, %v2414
      %v2679 = vadd.f32 %v2678, %v2415
      %v2680 = vadd.f32 %v2679, %v2416
      %v2681 = vadd.f32 %v2680, %v2417
      %v2682 = vadd.f32 %v2681, %v2418
      %v2683 = vadd.f32 %v2682, %v2419
      %v2684 = vadd.f32 %v2683, %v2420
      %v2685 = vadd.f32 %v2684, %v2421
      %v2686 = vadd.f32 %v2685, %v2422
      %v2687 = vadd.f32 %v2686, %v2423
      %v2688 = vadd.f32 %v2687, %v2424
      %v2689 = vadd.f32 %v2688, %v2425
      %v2690 = vadd.f32 %v2689, %v2426
      %v2691 = vadd.f32 %v2690, %v2427
      %v2692 = vadd.f32 %v2691, %v2428
      %v2693 = vadd.f32 %v2692, %v2429
      %v2694 = vadd.f32 %v2693, %v2430
      %v2695 = vadd.f32 %v2694, %v2431
      %v2696 = vadd.f32 %v2695, %v2432
      %v2697 = vadd.f32 %v2696, %v2433
      %v2698 = vadd.f32 %v2697, %v2434
      %v2699 = vadd.f32 %v2698, %v2435
      %v2700 = vadd.f32 %v2699, %v2436
      %v2701 = vadd.f32 %v2700, %v2437
      %v2702 = vadd.f32 %v2701, %v2438
      %v2703 = vadd.f32 %v2702, %v2439
      %v2704 = vadd.f32 %v2703, %v2440
      %v2705 = vadd.f32 %v2704, %v2441
      %v2706 = vadd.f32 %v2705, %v2442
      %v2707 = vadd.f32 %v2706, %v2443
      %v2708 = vadd.f32 %v2707, %v2444
      %v2709 = vadd.f32 %v2708, %v2445
      %v2710 = vadd.f32 %v2709, %v2446
      %v2711 = vadd.f32 %v2710, %v2447
      %vm2712 = vcmask 1041408
      %v2713 = vsel %vm2712, %v2448, 0.0
      %v2714 = vadd.f32 %v2711, %v2713
      %v2715 = vrot.slane %v2714, 4
      %v2716 = vadd.f32 %v2714, %v2715
      %v2717 = vrot.slane %v2716, 2
      %v2718 = vadd.f32 %v2716, %v2717
      %v2719 = vrot.slane %v2718, 1
      %v2720 = vadd.f32 %v2718, %v2719
      %v2721 = vadd.f32 %v2456, %v2720
      %2722 = vst [vmem:[#allocation7] sm:$0x1] %v2721
    $region25: #{tpu_custom_call.1} parent=1 // pred_fallthru
      _
    %p2723 = scmp.gt.s32.totalorder %s2451, 2050
    // Predicated region
    $region26: #{tpu_custom_call.1} parent=1 // pred_check
      %p2724 = pneg %p2723
    $region27: #{tpu_custom_call.1} parent=1 // pred_check_branch
      %2726 = sbr.rel (%p2724) target = $region29
    $region28: #{tpu_custom_call.1} parent=1 // pred_region
      %s2727 = smul.u32 %s2449, 2050
      %v2728 = vlaneseq
      %v2729 = vshrl.u32 %v2728, 7
      %v2730 = vadd.s32 %v2729, 8
      %v2731 = vadd.s32 %v2729, 16
      %v2732 = vadd.s32 %v2729, 24
      %v2733 = vadd.s32 %v2729, 32
      %v2734 = vadd.s32 %v2729, 40
      %v2735 = vadd.s32 %v2729, 48
      %v2736 = vadd.s32 %v2729, 56
      %v2737 = vadd.s32 %v2729, 64
      %v2738 = vadd.s32 %v2729, 72
      %v2739 = vadd.s32 %v2729, 80
      %v2740 = vadd.s32 %v2729, 88
      %v2741 = vadd.s32 %v2729, 96
      %v2742 = vadd.s32 %v2729, 104
      %v2743 = vadd.s32 %v2729, 112
      %v2744 = vadd.s32 %v2729, 120
      %v2745 = vadd.s32 %v2729, 128
      %v2746 = vadd.s32 %v2729, 136
      %v2747 = vadd.s32 %v2729, 144
      %v2748 = vadd.s32 %v2729, 152
      %v2749 = vadd.s32 %v2729, 160
      %v2750 = vadd.s32 %v2729, 168
      %v2751 = vadd.s32 %v2729, 176
      %v2752 = vadd.s32 %v2729, 184
      %v2753 = vadd.s32 %v2729, 192
      %v2754 = vadd.s32 %v2729, 200
      %v2755 = vadd.s32 %v2729, 208
      %v2756 = vadd.s32 %v2729, 216
      %v2757 = vadd.s32 %v2729, 224
      %v2758 = vadd.s32 %v2729, 232
      %v2759 = vadd.s32 %v2729, 240
      %v2760 = vadd.s32 %v2729, 248
      %v2761 = vadd.s32 %v2729, 256
      %v2762 = vadd.s32 %v2729, 264
      %v2763 = vadd.s32 %v2729, 272
      %v2764 = vadd.s32 %v2729, 280
      %v2765 = vadd.s32 %v2729, 288
      %v2766 = vadd.s32 %v2729, 296
      %v2767 = vadd.s32 %v2729, 304
      %v2768 = vadd.s32 %v2729, 312
      %v2769 = vadd.s32 %v2729, 320
      %v2770 = vadd.s32 %v2729, 328
      %v2771 = vadd.s32 %v2729, 336
      %v2772 = vadd.s32 %v2729, 344
      %v2773 = vadd.s32 %v2729, 352
      %v2774 = vadd.s32 %v2729, 360
      %v2775 = vadd.s32 %v2729, 368
      %v2776 = vadd.s32 %v2729, 376
      %v2777 = vadd.s32 %v2729, 384
      %v2778 = vadd.s32 %v2729, 392
      %v2779 = vadd.s32 %v2729, 400
      %v2780 = vadd.s32 %v2729, 408
      %v2781 = vadd.s32 %v2729, 416
      %v2782 = vadd.s32 %v2729, 424
      %v2783 = vadd.s32 %v2729, 432
      %v2784 = vadd.s32 %v2729, 440
      %v2785 = vadd.s32 %v2729, 448
      %v2786 = vadd.s32 %v2729, 456
      %v2787 = vadd.s32 %v2729, 464
      %v2788 = vadd.s32 %v2729, 472
      %v2789 = vadd.s32 %v2729, 480
      %v2790 = vadd.s32 %v2729, 488
      %v2791 = vadd.s32 %v2729, 496
      %v2792 = vadd.s32 %v2729, 504
      %v2793 = vadd.s32 %v2729, 512
      %v2794 = vadd.s32 %v2729, 520
      %v2795 = vadd.s32 %v2729, 528
      %v2796 = vadd.s32 %v2729, 536
      %v2797 = vadd.s32 %v2729, 544
      %v2798 = vadd.s32 %v2729, 552
      %v2799 = vadd.s32 %v2729, 560
      %v2800 = vadd.s32 %v2729, 568
      %v2801 = vadd.s32 %v2729, 576
      %v2802 = vadd.s32 %v2729, 584
      %v2803 = vadd.s32 %v2729, 592
      %v2804 = vadd.s32 %v2729, 600
      %v2805 = vadd.s32 %v2729, 608
      %v2806 = vadd.s32 %v2729, 616
      %v2807 = vadd.s32 %v2729, 624
      %v2808 = vadd.s32 %v2729, 632
      %v2809 = vadd.s32 %v2729, 640
      %v2810 = vadd.s32 %v2729, 648
      %v2811 = vadd.s32 %v2729, 656
      %v2812 = vadd.s32 %v2729, 664
      %v2813 = vadd.s32 %v2729, 672
      %v2814 = vadd.s32 %v2729, 680
      %v2815 = vadd.s32 %v2729, 688
      %v2816 = vadd.s32 %v2729, 696
      %v2817 = vadd.s32 %v2729, 704
      %v2818 = vadd.s32 %v2729, 712
      %v2819 = vadd.s32 %v2729, 720
      %v2820 = vadd.s32 %v2729, 728
      %v2821 = vadd.s32 %v2729, 736
      %v2822 = vadd.s32 %v2729, 744
      %v2823 = vadd.s32 %v2729, 752
      %v2824 = vadd.s32 %v2729, 760
      %v2825 = vadd.s32 %v2729, 768
      %v2826 = vadd.s32 %v2729, 776
      %v2827 = vadd.s32 %v2729, 784
      %v2828 = vadd.s32 %v2729, 792
      %v2829 = vadd.s32 %v2729, 800
      %v2830 = vadd.s32 %v2729, 808
      %v2831 = vadd.s32 %v2729, 816
      %v2832 = vadd.s32 %v2729, 824
      %v2833 = vadd.s32 %v2729, 832
      %v2834 = vadd.s32 %v2729, 840
      %v2835 = vadd.s32 %v2729, 848
      %v2836 = vadd.s32 %v2729, 856
      %v2837 = vadd.s32 %v2729, 864
      %v2838 = vadd.s32 %v2729, 872
      %v2839 = vadd.s32 %v2729, 880
      %v2840 = vadd.s32 %v2729, 888
      %v2841 = vadd.s32 %v2729, 896
      %v2842 = vadd.s32 %v2729, 904
      %v2843 = vadd.s32 %v2729, 912
      %v2844 = vadd.s32 %v2729, 920
      %v2845 = vadd.s32 %v2729, 928
      %v2846 = vadd.s32 %v2729, 936
      %v2847 = vadd.s32 %v2729, 944
      %v2848 = vadd.s32 %v2729, 952
      %v2849 = vadd.s32 %v2729, 960
      %v2850 = vadd.s32 %v2729, 968
      %v2851 = vadd.s32 %v2729, 976
      %v2852 = vadd.s32 %v2729, 984
      %v2853 = vadd.s32 %v2729, 992
      %v2854 = vadd.s32 %v2729, 1000
      %v2855 = vadd.s32 %v2729, 1008
      %v2856 = vadd.s32 %v2729, 1016
      %v2857 = vadd.s32 %v2729, 1024
      %v2858 = vadd.s32 %v2729, 1032
      %v2859 = vadd.s32 %v2729, 1040
      %v2860 = vadd.s32 %v2729, 1048
      %v2861 = vadd.s32 %v2729, 1056
      %v2862 = vadd.s32 %v2729, 1064
      %v2863 = vadd.s32 %v2729, 1072
      %v2864 = vadd.s32 %v2729, 1080
      %v2865 = vadd.s32 %v2729, 1088
      %v2866 = vadd.s32 %v2729, 1096
      %v2867 = vadd.s32 %v2729, 1104
      %v2868 = vadd.s32 %v2729, 1112
      %v2869 = vadd.s32 %v2729, 1120
      %v2870 = vadd.s32 %v2729, 1128
      %v2871 = vadd.s32 %v2729, 1136
      %v2872 = vadd.s32 %v2729, 1144
      %v2873 = vadd.s32 %v2729, 1152
      %v2874 = vadd.s32 %v2729, 1160
      %v2875 = vadd.s32 %v2729, 1168
      %v2876 = vadd.s32 %v2729, 1176
      %v2877 = vadd.s32 %v2729, 1184
      %v2878 = vadd.s32 %v2729, 1192
      %v2879 = vadd.s32 %v2729, 1200
      %v2880 = vadd.s32 %v2729, 1208
      %v2881 = vadd.s32 %v2729, 1216
      %v2882 = vadd.s32 %v2729, 1224
      %v2883 = vadd.s32 %v2729, 1232
      %v2884 = vadd.s32 %v2729, 1240
      %v2885 = vadd.s32 %v2729, 1248
      %v2886 = vadd.s32 %v2729, 1256
      %v2887 = vadd.s32 %v2729, 1264
      %v2888 = vadd.s32 %v2729, 1272
      %v2889 = vadd.s32 %v2729, 1280
      %v2890 = vadd.s32 %v2729, 1288
      %v2891 = vadd.s32 %v2729, 1296
      %v2892 = vadd.s32 %v2729, 1304
      %v2893 = vadd.s32 %v2729, 1312
      %v2894 = vadd.s32 %v2729, 1320
      %v2895 = vadd.s32 %v2729, 1328
      %v2896 = vadd.s32 %v2729, 1336
      %v2897 = vadd.s32 %v2729, 1344
      %v2898 = vadd.s32 %v2729, 1352
      %v2899 = vadd.s32 %v2729, 1360
      %v2900 = vadd.s32 %v2729, 1368
      %v2901 = vadd.s32 %v2729, 1376
      %v2902 = vadd.s32 %v2729, 1384
      %v2903 = vadd.s32 %v2729, 1392
      %v2904 = vadd.s32 %v2729, 1400
      %v2905 = vadd.s32 %v2729, 1408
      %v2906 = vadd.s32 %v2729, 1416
      %v2907 = vadd.s32 %v2729, 1424
      %v2908 = vadd.s32 %v2729, 1432
      %v2909 = vadd.s32 %v2729, 1440
      %v2910 = vadd.s32 %v2729, 1448
      %v2911 = vadd.s32 %v2729, 1456
      %v2912 = vadd.s32 %v2729, 1464
      %v2913 = vadd.s32 %v2729, 1472
      %v2914 = vadd.s32 %v2729, 1480
      %v2915 = vadd.s32 %v2729, 1488
      %v2916 = vadd.s32 %v2729, 1496
      %v2917 = vadd.s32 %v2729, 1504
      %v2918 = vadd.s32 %v2729, 1512
      %v2919 = vadd.s32 %v2729, 1520
      %v2920 = vadd.s32 %v2729, 1528
      %v2921 = vadd.s32 %v2729, 1536
      %v2922 = vadd.s32 %v2729, 1544
      %v2923 = vadd.s32 %v2729, 1552
      %v2924 = vadd.s32 %v2729, 1560
      %v2925 = vadd.s32 %v2729, 1568
      %v2926 = vadd.s32 %v2729, 1576
      %v2927 = vadd.s32 %v2729, 1584
      %v2928 = vadd.s32 %v2729, 1592
      %v2929 = vadd.s32 %v2729, 1600
      %v2930 = vadd.s32 %v2729, 1608
      %v2931 = vadd.s32 %v2729, 1616
      %v2932 = vadd.s32 %v2729, 1624
      %v2933 = vadd.s32 %v2729, 1632
      %v2934 = vadd.s32 %v2729, 1640
      %v2935 = vadd.s32 %v2729, 1648
      %v2936 = vadd.s32 %v2729, 1656
      %v2937 = vadd.s32 %v2729, 1664
      %v2938 = vadd.s32 %v2729, 1672
      %v2939 = vadd.s32 %v2729, 1680
      %v2940 = vadd.s32 %v2729, 1688
      %v2941 = vadd.s32 %v2729, 1696
      %v2942 = vadd.s32 %v2729, 1704
      %v2943 = vadd.s32 %v2729, 1712
      %v2944 = vadd.s32 %v2729, 1720
      %v2945 = vadd.s32 %v2729, 1728
      %v2946 = vadd.s32 %v2729, 1736
      %v2947 = vadd.s32 %v2729, 1744
      %v2948 = vadd.s32 %v2729, 1752
      %v2949 = vadd.s32 %v2729, 1760
      %v2950 = vadd.s32 %v2729, 1768
      %v2951 = vadd.s32 %v2729, 1776
      %v2952 = vadd.s32 %v2729, 1784
      %v2953 = vadd.s32 %v2729, 1792
      %v2954 = vadd.s32 %v2729, 1800
      %v2955 = vadd.s32 %v2729, 1808
      %v2956 = vadd.s32 %v2729, 1816
      %v2957 = vadd.s32 %v2729, 1824
      %v2958 = vadd.s32 %v2729, 1832
      %v2959 = vadd.s32 %v2729, 1840
      %v2960 = vadd.s32 %v2729, 1848
      %v2961 = vadd.s32 %v2729, 1856
      %v2962 = vadd.s32 %v2729, 1864
      %v2963 = vadd.s32 %v2729, 1872
      %v2964 = vadd.s32 %v2729, 1880
      %v2965 = vadd.s32 %v2729, 1888
      %v2966 = vadd.s32 %v2729, 1896
      %v2967 = vadd.s32 %v2729, 1904
      %v2968 = vadd.s32 %v2729, 1912
      %v2969 = vadd.s32 %v2729, 1920
      %v2970 = vadd.s32 %v2729, 1928
      %v2971 = vadd.s32 %v2729, 1936
      %v2972 = vadd.s32 %v2729, 1944
      %v2973 = vadd.s32 %v2729, 1952
      %v2974 = vadd.s32 %v2729, 1960
      %v2975 = vadd.s32 %v2729, 1968
      %v2976 = vadd.s32 %v2729, 1976
      %v2977 = vadd.s32 %v2729, 1984
      %v2978 = vadd.s32 %v2729, 1992
      %v2979 = vadd.s32 %v2729, 2000
      %v2980 = vadd.s32 %v2729, 2008
      %v2981 = vadd.s32 %v2729, 2016
      %v2982 = vadd.s32 %v2729, 2024
      %v2983 = vadd.s32 %v2729, 2032
      %v2984 = vadd.s32 %v2729, 2040
      %v2985 = vadd.s32 %v2729, 2048
      %v2986 = vstv %s2727
      %v2987 = vadd.s32 %v2729, %v2986
      %v2988 = vadd.s32 %v2730, %v2986
      %v2989 = vadd.s32 %v2731, %v2986
      %v2990 = vadd.s32 %v2732, %v2986
      %v2991 = vadd.s32 %v2733, %v2986
      %v2992 = vadd.s32 %v2734, %v2986
      %v2993 = vadd.s32 %v2735, %v2986
      %v2994 = vadd.s32 %v2736, %v2986
      %v2995 = vadd.s32 %v2737, %v2986
      %v2996 = vadd.s32 %v2738, %v2986
      %v2997 = vadd.s32 %v2739, %v2986
      %v2998 = vadd.s32 %v2740, %v2986
      %v2999 = vadd.s32 %v2741, %v2986
      %v3000 = vadd.s32 %v2742, %v2986
      %v3001 = vadd.s32 %v2743, %v2986
      %v3002 = vadd.s32 %v2744, %v2986
      %v3003 = vadd.s32 %v2745, %v2986
      %v3004 = vadd.s32 %v2746, %v2986
      %v3005 = vadd.s32 %v2747, %v2986
      %v3006 = vadd.s32 %v2748, %v2986
      %v3007 = vadd.s32 %v2749, %v2986
      %v3008 = vadd.s32 %v2750, %v2986
      %v3009 = vadd.s32 %v2751, %v2986
      %v3010 = vadd.s32 %v2752, %v2986
      %v3011 = vadd.s32 %v2753, %v2986
      %v3012 = vadd.s32 %v2754, %v2986
      %v3013 = vadd.s32 %v2755, %v2986
      %v3014 = vadd.s32 %v2756, %v2986
      %v3015 = vadd.s32 %v2757, %v2986
      %v3016 = vadd.s32 %v2758, %v2986
      %v3017 = vadd.s32 %v2759, %v2986
      %v3018 = vadd.s32 %v2760, %v2986
      %v3019 = vadd.s32 %v2761, %v2986
      %v3020 = vadd.s32 %v2762, %v2986
      %v3021 = vadd.s32 %v2763, %v2986
      %v3022 = vadd.s32 %v2764, %v2986
      %v3023 = vadd.s32 %v2765, %v2986
      %v3024 = vadd.s32 %v2766, %v2986
      %v3025 = vadd.s32 %v2767, %v2986
      %v3026 = vadd.s32 %v2768, %v2986
      %v3027 = vadd.s32 %v2769, %v2986
      %v3028 = vadd.s32 %v2770, %v2986
      %v3029 = vadd.s32 %v2771, %v2986
      %v3030 = vadd.s32 %v2772, %v2986
      %v3031 = vadd.s32 %v2773, %v2986
      %v3032 = vadd.s32 %v2774, %v2986
      %v3033 = vadd.s32 %v2775, %v2986
      %v3034 = vadd.s32 %v2776, %v2986
      %v3035 = vadd.s32 %v2777, %v2986
      %v3036 = vadd.s32 %v2778, %v2986
      %v3037 = vadd.s32 %v2779, %v2986
      %v3038 = vadd.s32 %v2780, %v2986
      %v3039 = vadd.s32 %v2781, %v2986
      %v3040 = vadd.s32 %v2782, %v2986
      %v3041 = vadd.s32 %v2783, %v2986
      %v3042 = vadd.s32 %v2784, %v2986
      %v3043 = vadd.s32 %v2785, %v2986
      %v3044 = vadd.s32 %v2786, %v2986
      %v3045 = vadd.s32 %v2787, %v2986
      %v3046 = vadd.s32 %v2788, %v2986
      %v3047 = vadd.s32 %v2789, %v2986
      %v3048 = vadd.s32 %v2790, %v2986
      %v3049 = vadd.s32 %v2791, %v2986
      %v3050 = vadd.s32 %v2792, %v2986
      %v3051 = vadd.s32 %v2793, %v2986
      %v3052 = vadd.s32 %v2794, %v2986
      %v3053 = vadd.s32 %v2795, %v2986
      %v3054 = vadd.s32 %v2796, %v2986
      %v3055 = vadd.s32 %v2797, %v2986
      %v3056 = vadd.s32 %v2798, %v2986
      %v3057 = vadd.s32 %v2799, %v2986
      %v3058 = vadd.s32 %v2800, %v2986
      %v3059 = vadd.s32 %v2801, %v2986
      %v3060 = vadd.s32 %v2802, %v2986
      %v3061 = vadd.s32 %v2803, %v2986
      %v3062 = vadd.s32 %v2804, %v2986
      %v3063 = vadd.s32 %v2805, %v2986
      %v3064 = vadd.s32 %v2806, %v2986
      %v3065 = vadd.s32 %v2807, %v2986
      %v3066 = vadd.s32 %v2808, %v2986
      %v3067 = vadd.s32 %v2809, %v2986
      %v3068 = vadd.s32 %v2810, %v2986
      %v3069 = vadd.s32 %v2811, %v2986
      %v3070 = vadd.s32 %v2812, %v2986
      %v3071 = vadd.s32 %v2813, %v2986
      %v3072 = vadd.s32 %v2814, %v2986
      %v3073 = vadd.s32 %v2815, %v2986
      %v3074 = vadd.s32 %v2816, %v2986
      %v3075 = vadd.s32 %v2817, %v2986
      %v3076 = vadd.s32 %v2818, %v2986
      %v3077 = vadd.s32 %v2819, %v2986
      %v3078 = vadd.s32 %v2820, %v2986
      %v3079 = vadd.s32 %v2821, %v2986
      %v3080 = vadd.s32 %v2822, %v2986
      %v3081 = vadd.s32 %v2823, %v2986
      %v3082 = vadd.s32 %v2824, %v2986
      %v3083 = vadd.s32 %v2825, %v2986
      %v3084 = vadd.s32 %v2826, %v2986
      %v3085 = vadd.s32 %v2827, %v2986
      %v3086 = vadd.s32 %v2828, %v2986
      %v3087 = vadd.s32 %v2829, %v2986
      %v3088 = vadd.s32 %v2830, %v2986
      %v3089 = vadd.s32 %v2831, %v2986
      %v3090 = vadd.s32 %v2832, %v2986
      %v3091 = vadd.s32 %v2833, %v2986
      %v3092 = vadd.s32 %v2834, %v2986
      %v3093 = vadd.s32 %v2835, %v2986
      %v3094 = vadd.s32 %v2836, %v2986
      %v3095 = vadd.s32 %v2837, %v2986
      %v3096 = vadd.s32 %v2838, %v2986
      %v3097 = vadd.s32 %v2839, %v2986
      %v3098 = vadd.s32 %v2840, %v2986
      %v3099 = vadd.s32 %v2841, %v2986
      %v3100 = vadd.s32 %v2842, %v2986
      %v3101 = vadd.s32 %v2843, %v2986
      %v3102 = vadd.s32 %v2844, %v2986
      %v3103 = vadd.s32 %v2845, %v2986
      %v3104 = vadd.s32 %v2846, %v2986
      %v3105 = vadd.s32 %v2847, %v2986
      %v3106 = vadd.s32 %v2848, %v2986
      %v3107 = vadd.s32 %v2849, %v2986
      %v3108 = vadd.s32 %v2850, %v2986
      %v3109 = vadd.s32 %v2851, %v2986
      %v3110 = vadd.s32 %v2852, %v2986
      %v3111 = vadd.s32 %v2853, %v2986
      %v3112 = vadd.s32 %v2854, %v2986
      %v3113 = vadd.s32 %v2855, %v2986
      %v3114 = vadd.s32 %v2856, %v2986
      %v3115 = vadd.s32 %v2857, %v2986
      %v3116 = vadd.s32 %v2858, %v2986
      %v3117 = vadd.s32 %v2859, %v2986
      %v3118 = vadd.s32 %v2860, %v2986
      %v3119 = vadd.s32 %v2861, %v2986
      %v3120 = vadd.s32 %v2862, %v2986
      %v3121 = vadd.s32 %v2863, %v2986
      %v3122 = vadd.s32 %v2864, %v2986
      %v3123 = vadd.s32 %v2865, %v2986
      %v3124 = vadd.s32 %v2866, %v2986
      %v3125 = vadd.s32 %v2867, %v2986
      %v3126 = vadd.s32 %v2868, %v2986
      %v3127 = vadd.s32 %v2869, %v2986
      %v3128 = vadd.s32 %v2870, %v2986
      %v3129 = vadd.s32 %v2871, %v2986
      %v3130 = vadd.s32 %v2872, %v2986
      %v3131 = vadd.s32 %v2873, %v2986
      %v3132 = vadd.s32 %v2874, %v2986
      %v3133 = vadd.s32 %v2875, %v2986
      %v3134 = vadd.s32 %v2876, %v2986
      %v3135 = vadd.s32 %v2877, %v2986
      %v3136 = vadd.s32 %v2878, %v2986
      %v3137 = vadd.s32 %v2879, %v2986
      %v3138 = vadd.s32 %v2880, %v2986
      %v3139 = vadd.s32 %v2881, %v2986
      %v3140 = vadd.s32 %v2882, %v2986
      %v3141 = vadd.s32 %v2883, %v2986
      %v3142 = vadd.s32 %v2884, %v2986
      %v3143 = vadd.s32 %v2885, %v2986
      %v3144 = vadd.s32 %v2886, %v2986
      %v3145 = vadd.s32 %v2887, %v2986
      %v3146 = vadd.s32 %v2888, %v2986
      %v3147 = vadd.s32 %v2889, %v2986
      %v3148 = vadd.s32 %v2890, %v2986
      %v3149 = vadd.s32 %v2891, %v2986
      %v3150 = vadd.s32 %v2892, %v2986
      %v3151 = vadd.s32 %v2893, %v2986
      %v3152 = vadd.s32 %v2894, %v2986
      %v3153 = vadd.s32 %v2895, %v2986
      %v3154 = vadd.s32 %v2896, %v2986
      %v3155 = vadd.s32 %v2897, %v2986
      %v3156 = vadd.s32 %v2898, %v2986
      %v3157 = vadd.s32 %v2899, %v2986
      %v3158 = vadd.s32 %v2900, %v2986
      %v3159 = vadd.s32 %v2901, %v2986
      %v3160 = vadd.s32 %v2902, %v2986
      %v3161 = vadd.s32 %v2903, %v2986
      %v3162 = vadd.s32 %v2904, %v2986
      %v3163 = vadd.s32 %v2905, %v2986
      %v3164 = vadd.s32 %v2906, %v2986
      %v3165 = vadd.s32 %v2907, %v2986
      %v3166 = vadd.s32 %v2908, %v2986
      %v3167 = vadd.s32 %v2909, %v2986
      %v3168 = vadd.s32 %v2910, %v2986
      %v3169 = vadd.s32 %v2911, %v2986
      %v3170 = vadd.s32 %v2912, %v2986
      %v3171 = vadd.s32 %v2913, %v2986
      %v3172 = vadd.s32 %v2914, %v2986
      %v3173 = vadd.s32 %v2915, %v2986
      %v3174 = vadd.s32 %v2916, %v2986
      %v3175 = vadd.s32 %v2917, %v2986
      %v3176 = vadd.s32 %v2918, %v2986
      %v3177 = vadd.s32 %v2919, %v2986
      %v3178 = vadd.s32 %v2920, %v2986
      %v3179 = vadd.s32 %v2921, %v2986
      %v3180 = vadd.s32 %v2922, %v2986
      %v3181 = vadd.s32 %v2923, %v2986
      %v3182 = vadd.s32 %v2924, %v2986
      %v3183 = vadd.s32 %v2925, %v2986
      %v3184 = vadd.s32 %v2926, %v2986
      %v3185 = vadd.s32 %v2927, %v2986
      %v3186 = vadd.s32 %v2928, %v2986
      %v3187 = vadd.s32 %v2929, %v2986
      %v3188 = vadd.s32 %v2930, %v2986
      %v3189 = vadd.s32 %v2931, %v2986
      %v3190 = vadd.s32 %v2932, %v2986
      %v3191 = vadd.s32 %v2933, %v2986
      %v3192 = vadd.s32 %v2934, %v2986
      %v3193 = vadd.s32 %v2935, %v2986
      %v3194 = vadd.s32 %v2936, %v2986
      %v3195 = vadd.s32 %v2937, %v2986
      %v3196 = vadd.s32 %v2938, %v2986
      %v3197 = vadd.s32 %v2939, %v2986
      %v3198 = vadd.s32 %v2940, %v2986
      %v3199 = vadd.s32 %v2941, %v2986
      %v3200 = vadd.s32 %v2942, %v2986
      %v3201 = vadd.s32 %v2943, %v2986
      %v3202 = vadd.s32 %v2944, %v2986
      %v3203 = vadd.s32 %v2945, %v2986
      %v3204 = vadd.s32 %v2946, %v2986
      %v3205 = vadd.s32 %v2947, %v2986
      %v3206 = vadd.s32 %v2948, %v2986
      %v3207 = vadd.s32 %v2949, %v2986
      %v3208 = vadd.s32 %v2950, %v2986
      %v3209 = vadd.s32 %v2951, %v2986
      %v3210 = vadd.s32 %v2952, %v2986
      %v3211 = vadd.s32 %v2953, %v2986
      %v3212 = vadd.s32 %v2954, %v2986
      %v3213 = vadd.s32 %v2955, %v2986
      %v3214 = vadd.s32 %v2956, %v2986
      %v3215 = vadd.s32 %v2957, %v2986
      %v3216 = vadd.s32 %v2958, %v2986
      %v3217 = vadd.s32 %v2959, %v2986
      %v3218 = vadd.s32 %v2960, %v2986
      %v3219 = vadd.s32 %v2961, %v2986
      %v3220 = vadd.s32 %v2962, %v2986
      %v3221 = vadd.s32 %v2963, %v2986
      %v3222 = vadd.s32 %v2964, %v2986
      %v3223 = vadd.s32 %v2965, %v2986
      %v3224 = vadd.s32 %v2966, %v2986
      %v3225 = vadd.s32 %v2967, %v2986
      %v3226 = vadd.s32 %v2968, %v2986
      %v3227 = vadd.s32 %v2969, %v2986
      %v3228 = vadd.s32 %v2970, %v2986
      %v3229 = vadd.s32 %v2971, %v2986
      %v3230 = vadd.s32 %v2972, %v2986
      %v3231 = vadd.s32 %v2973, %v2986
      %v3232 = vadd.s32 %v2974, %v2986
      %v3233 = vadd.s32 %v2975, %v2986
      %v3234 = vadd.s32 %v2976, %v2986
      %v3235 = vadd.s32 %v2977, %v2986
      %v3236 = vadd.s32 %v2978, %v2986
      %v3237 = vadd.s32 %v2979, %v2986
      %v3238 = vadd.s32 %v2980, %v2986
      %v3239 = vadd.s32 %v2981, %v2986
      %v3240 = vadd.s32 %v2982, %v2986
      %v3241 = vadd.s32 %v2983, %v2986
      %v3242 = vadd.s32 %v2984, %v2986
      %v3243 = vadd.s32 %v2985, %v2986
      %vm3244 = vcmp.lt.s32.totalorder %v2987, 2050
      %vm3245 = vcmp.lt.s32.totalorder %v2988, 2050
      %vm3246 = vcmp.lt.s32.totalorder %v2989, 2050
      %vm3247 = vcmp.lt.s32.totalorder %v2990, 2050
      %vm3248 = vcmp.lt.s32.totalorder %v2991, 2050
      %vm3249 = vcmp.lt.s32.totalorder %v2992, 2050
      %vm3250 = vcmp.lt.s32.totalorder %v2993, 2050
      %vm3251 = vcmp.lt.s32.totalorder %v2994, 2050
      %vm3252 = vcmp.lt.s32.totalorder %v2995, 2050
      %vm3253 = vcmp.lt.s32.totalorder %v2996, 2050
      %vm3254 = vcmp.lt.s32.totalorder %v2997, 2050
      %vm3255 = vcmp.lt.s32.totalorder %v2998, 2050
      %vm3256 = vcmp.lt.s32.totalorder %v2999, 2050
      %vm3257 = vcmp.lt.s32.totalorder %v3000, 2050
      %vm3258 = vcmp.lt.s32.totalorder %v3001, 2050
      %vm3259 = vcmp.lt.s32.totalorder %v3002, 2050
      %vm3260 = vcmp.lt.s32.totalorder %v3003, 2050
      %vm3261 = vcmp.lt.s32.totalorder %v3004, 2050
      %vm3262 = vcmp.lt.s32.totalorder %v3005, 2050
      %vm3263 = vcmp.lt.s32.totalorder %v3006, 2050
      %vm3264 = vcmp.lt.s32.totalorder %v3007, 2050
      %vm3265 = vcmp.lt.s32.totalorder %v3008, 2050
      %vm3266 = vcmp.lt.s32.totalorder %v3009, 2050
      %vm3267 = vcmp.lt.s32.totalorder %v3010, 2050
      %vm3268 = vcmp.lt.s32.totalorder %v3011, 2050
      %vm3269 = vcmp.lt.s32.totalorder %v3012, 2050
      %vm3270 = vcmp.lt.s32.totalorder %v3013, 2050
      %vm3271 = vcmp.lt.s32.totalorder %v3014, 2050
      %vm3272 = vcmp.lt.s32.totalorder %v3015, 2050
      %vm3273 = vcmp.lt.s32.totalorder %v3016, 2050
      %vm3274 = vcmp.lt.s32.totalorder %v3017, 2050
      %vm3275 = vcmp.lt.s32.totalorder %v3018, 2050
      %vm3276 = vcmp.lt.s32.totalorder %v3019, 2050
      %vm3277 = vcmp.lt.s32.totalorder %v3020, 2050
      %vm3278 = vcmp.lt.s32.totalorder %v3021, 2050
      %vm3279 = vcmp.lt.s32.totalorder %v3022, 2050
      %vm3280 = vcmp.lt.s32.totalorder %v3023, 2050
      %vm3281 = vcmp.lt.s32.totalorder %v3024, 2050
      %vm3282 = vcmp.lt.s32.totalorder %v3025, 2050
      %vm3283 = vcmp.lt.s32.totalorder %v3026, 2050
      %vm3284 = vcmp.lt.s32.totalorder %v3027, 2050
      %vm3285 = vcmp.lt.s32.totalorder %v3028, 2050
      %vm3286 = vcmp.lt.s32.totalorder %v3029, 2050
      %vm3287 = vcmp.lt.s32.totalorder %v3030, 2050
      %vm3288 = vcmp.lt.s32.totalorder %v3031, 2050
      %vm3289 = vcmp.lt.s32.totalorder %v3032, 2050
      %vm3290 = vcmp.lt.s32.totalorder %v3033, 2050
      %vm3291 = vcmp.lt.s32.totalorder %v3034, 2050
      %vm3292 = vcmp.lt.s32.totalorder %v3035, 2050
      %vm3293 = vcmp.lt.s32.totalorder %v3036, 2050
      %vm3294 = vcmp.lt.s32.totalorder %v3037, 2050
      %vm3295 = vcmp.lt.s32.totalorder %v3038, 2050
      %vm3296 = vcmp.lt.s32.totalorder %v3039, 2050
      %vm3297 = vcmp.lt.s32.totalorder %v3040, 2050
      %vm3298 = vcmp.lt.s32.totalorder %v3041, 2050
      %vm3299 = vcmp.lt.s32.totalorder %v3042, 2050
      %vm3300 = vcmp.lt.s32.totalorder %v3043, 2050
      %vm3301 = vcmp.lt.s32.totalorder %v3044, 2050
      %vm3302 = vcmp.lt.s32.totalorder %v3045, 2050
      %vm3303 = vcmp.lt.s32.totalorder %v3046, 2050
      %vm3304 = vcmp.lt.s32.totalorder %v3047, 2050
      %vm3305 = vcmp.lt.s32.totalorder %v3048, 2050
      %vm3306 = vcmp.lt.s32.totalorder %v3049, 2050
      %vm3307 = vcmp.lt.s32.totalorder %v3050, 2050
      %vm3308 = vcmp.lt.s32.totalorder %v3051, 2050
      %vm3309 = vcmp.lt.s32.totalorder %v3052, 2050
      %vm3310 = vcmp.lt.s32.totalorder %v3053, 2050
      %vm3311 = vcmp.lt.s32.totalorder %v3054, 2050
      %vm3312 = vcmp.lt.s32.totalorder %v3055, 2050
      %vm3313 = vcmp.lt.s32.totalorder %v3056, 2050
      %vm3314 = vcmp.lt.s32.totalorder %v3057, 2050
      %vm3315 = vcmp.lt.s32.totalorder %v3058, 2050
      %vm3316 = vcmp.lt.s32.totalorder %v3059, 2050
      %vm3317 = vcmp.lt.s32.totalorder %v3060, 2050
      %vm3318 = vcmp.lt.s32.totalorder %v3061, 2050
      %vm3319 = vcmp.lt.s32.totalorder %v3062, 2050
      %vm3320 = vcmp.lt.s32.totalorder %v3063, 2050
      %vm3321 = vcmp.lt.s32.totalorder %v3064, 2050
      %vm3322 = vcmp.lt.s32.totalorder %v3065, 2050
      %vm3323 = vcmp.lt.s32.totalorder %v3066, 2050
      %vm3324 = vcmp.lt.s32.totalorder %v3067, 2050
      %vm3325 = vcmp.lt.s32.totalorder %v3068, 2050
      %vm3326 = vcmp.lt.s32.totalorder %v3069, 2050
      %vm3327 = vcmp.lt.s32.totalorder %v3070, 2050
      %vm3328 = vcmp.lt.s32.totalorder %v3071, 2050
      %vm3329 = vcmp.lt.s32.totalorder %v3072, 2050
      %vm3330 = vcmp.lt.s32.totalorder %v3073, 2050
      %vm3331 = vcmp.lt.s32.totalorder %v3074, 2050
      %vm3332 = vcmp.lt.s32.totalorder %v3075, 2050
      %vm3333 = vcmp.lt.s32.totalorder %v3076, 2050
      %vm3334 = vcmp.lt.s32.totalorder %v3077, 2050
      %vm3335 = vcmp.lt.s32.totalorder %v3078, 2050
      %vm3336 = vcmp.lt.s32.totalorder %v3079, 2050
      %vm3337 = vcmp.lt.s32.totalorder %v3080, 2050
      %vm3338 = vcmp.lt.s32.totalorder %v3081, 2050
      %vm3339 = vcmp.lt.s32.totalorder %v3082, 2050
      %vm3340 = vcmp.lt.s32.totalorder %v3083, 2050
      %vm3341 = vcmp.lt.s32.totalorder %v3084, 2050
      %vm3342 = vcmp.lt.s32.totalorder %v3085, 2050
      %vm3343 = vcmp.lt.s32.totalorder %v3086, 2050
      %vm3344 = vcmp.lt.s32.totalorder %v3087, 2050
      %vm3345 = vcmp.lt.s32.totalorder %v3088, 2050
      %vm3346 = vcmp.lt.s32.totalorder %v3089, 2050
      %vm3347 = vcmp.lt.s32.totalorder %v3090, 2050
      %vm3348 = vcmp.lt.s32.totalorder %v3091, 2050
      %vm3349 = vcmp.lt.s32.totalorder %v3092, 2050
      %vm3350 = vcmp.lt.s32.totalorder %v3093, 2050
      %vm3351 = vcmp.lt.s32.totalorder %v3094, 2050
      %vm3352 = vcmp.lt.s32.totalorder %v3095, 2050
      %vm3353 = vcmp.lt.s32.totalorder %v3096, 2050
      %vm3354 = vcmp.lt.s32.totalorder %v3097, 2050
      %vm3355 = vcmp.lt.s32.totalorder %v3098, 2050
      %vm3356 = vcmp.lt.s32.totalorder %v3099, 2050
      %vm3357 = vcmp.lt.s32.totalorder %v3100, 2050
      %vm3358 = vcmp.lt.s32.totalorder %v3101, 2050
      %vm3359 = vcmp.lt.s32.totalorder %v3102, 2050
      %vm3360 = vcmp.lt.s32.totalorder %v3103, 2050
      %vm3361 = vcmp.lt.s32.totalorder %v3104, 2050
      %vm3362 = vcmp.lt.s32.totalorder %v3105, 2050
      %vm3363 = vcmp.lt.s32.totalorder %v3106, 2050
      %vm3364 = vcmp.lt.s32.totalorder %v3107, 2050
      %vm3365 = vcmp.lt.s32.totalorder %v3108, 2050
      %vm3366 = vcmp.lt.s32.totalorder %v3109, 2050
      %vm3367 = vcmp.lt.s32.totalorder %v3110, 2050
      %vm3368 = vcmp.lt.s32.totalorder %v3111, 2050
      %vm3369 = vcmp.lt.s32.totalorder %v3112, 2050
      %vm3370 = vcmp.lt.s32.totalorder %v3113, 2050
      %vm3371 = vcmp.lt.s32.totalorder %v3114, 2050
      %vm3372 = vcmp.lt.s32.totalorder %v3115, 2050
      %vm3373 = vcmp.lt.s32.totalorder %v3116, 2050
      %vm3374 = vcmp.lt.s32.totalorder %v3117, 2050
      %vm3375 = vcmp.lt.s32.totalorder %v3118, 2050
      %vm3376 = vcmp.lt.s32.totalorder %v3119, 2050
      %vm3377 = vcmp.lt.s32.totalorder %v3120, 2050
      %vm3378 = vcmp.lt.s32.totalorder %v3121, 2050
      %vm3379 = vcmp.lt.s32.totalorder %v3122, 2050
      %vm3380 = vcmp.lt.s32.totalorder %v3123, 2050
      %vm3381 = vcmp.lt.s32.totalorder %v3124, 2050
      %vm3382 = vcmp.lt.s32.totalorder %v3125, 2050
      %vm3383 = vcmp.lt.s32.totalorder %v3126, 2050
      %vm3384 = vcmp.lt.s32.totalorder %v3127, 2050
      %vm3385 = vcmp.lt.s32.totalorder %v3128, 2050
      %vm3386 = vcmp.lt.s32.totalorder %v3129, 2050
      %vm3387 = vcmp.lt.s32.totalorder %v3130, 2050
      %vm3388 = vcmp.lt.s32.totalorder %v3131, 2050
      %vm3389 = vcmp.lt.s32.totalorder %v3132, 2050
      %vm3390 = vcmp.lt.s32.totalorder %v3133, 2050
      %vm3391 = vcmp.lt.s32.totalorder %v3134, 2050
      %vm3392 = vcmp.lt.s32.totalorder %v3135, 2050
      %vm3393 = vcmp.lt.s32.totalorder %v3136, 2050
      %vm3394 = vcmp.lt.s32.totalorder %v3137, 2050
      %vm3395 = vcmp.lt.s32.totalorder %v3138, 2050
      %vm3396 = vcmp.lt.s32.totalorder %v3139, 2050
      %vm3397 = vcmp.lt.s32.totalorder %v3140, 2050
      %vm3398 = vcmp.lt.s32.totalorder %v3141, 2050
      %vm3399 = vcmp.lt.s32.totalorder %v3142, 2050
      %vm3400 = vcmp.lt.s32.totalorder %v3143, 2050
      %vm3401 = vcmp.lt.s32.totalorder %v3144, 2050
      %vm3402 = vcmp.lt.s32.totalorder %v3145, 2050
      %vm3403 = vcmp.lt.s32.totalorder %v3146, 2050
      %vm3404 = vcmp.lt.s32.totalorder %v3147, 2050
      %vm3405 = vcmp.lt.s32.totalorder %v3148, 2050
      %vm3406 = vcmp.lt.s32.totalorder %v3149, 2050
      %vm3407 = vcmp.lt.s32.totalorder %v3150, 2050
      %vm3408 = vcmp.lt.s32.totalorder %v3151, 2050
      %vm3409 = vcmp.lt.s32.totalorder %v3152, 2050
      %vm3410 = vcmp.lt.s32.totalorder %v3153, 2050
      %vm3411 = vcmp.lt.s32.totalorder %v3154, 2050
      %vm3412 = vcmp.lt.s32.totalorder %v3155, 2050
      %vm3413 = vcmp.lt.s32.totalorder %v3156, 2050
      %vm3414 = vcmp.lt.s32.totalorder %v3157, 2050
      %vm3415 = vcmp.lt.s32.totalorder %v3158, 2050
      %vm3416 = vcmp.lt.s32.totalorder %v3159, 2050
      %vm3417 = vcmp.lt.s32.totalorder %v3160, 2050
      %vm3418 = vcmp.lt.s32.totalorder %v3161, 2050
      %vm3419 = vcmp.lt.s32.totalorder %v3162, 2050
      %vm3420 = vcmp.lt.s32.totalorder %v3163, 2050
      %vm3421 = vcmp.lt.s32.totalorder %v3164, 2050
      %vm3422 = vcmp.lt.s32.totalorder %v3165, 2050
      %vm3423 = vcmp.lt.s32.totalorder %v3166, 2050
      %vm3424 = vcmp.lt.s32.totalorder %v3167, 2050
      %vm3425 = vcmp.lt.s32.totalorder %v3168, 2050
      %vm3426 = vcmp.lt.s32.totalorder %v3169, 2050
      %vm3427 = vcmp.lt.s32.totalorder %v3170, 2050
      %vm3428 = vcmp.lt.s32.totalorder %v3171, 2050
      %vm3429 = vcmp.lt.s32.totalorder %v3172, 2050
      %vm3430 = vcmp.lt.s32.totalorder %v3173, 2050
      %vm3431 = vcmp.lt.s32.totalorder %v3174, 2050
      %vm3432 = vcmp.lt.s32.totalorder %v3175, 2050
      %vm3433 = vcmp.lt.s32.totalorder %v3176, 2050
      %vm3434 = vcmp.lt.s32.totalorder %v3177, 2050
      %vm3435 = vcmp.lt.s32.totalorder %v3178, 2050
      %vm3436 = vcmp.lt.s32.totalorder %v3179, 2050
      %vm3437 = vcmp.lt.s32.totalorder %v3180, 2050
      %vm3438 = vcmp.lt.s32.totalorder %v3181, 2050
      %vm3439 = vcmp.lt.s32.totalorder %v3182, 2050
      %vm3440 = vcmp.lt.s32.totalorder %v3183, 2050
      %vm3441 = vcmp.lt.s32.totalorder %v3184, 2050
      %vm3442 = vcmp.lt.s32.totalorder %v3185, 2050
      %vm3443 = vcmp.lt.s32.totalorder %v3186, 2050
      %vm3444 = vcmp.lt.s32.totalorder %v3187, 2050
      %vm3445 = vcmp.lt.s32.totalorder %v3188, 2050
      %vm3446 = vcmp.lt.s32.totalorder %v3189, 2050
      %vm3447 = vcmp.lt.s32.totalorder %v3190, 2050
      %vm3448 = vcmp.lt.s32.totalorder %v3191, 2050
      %vm3449 = vcmp.lt.s32.totalorder %v3192, 2050
      %vm3450 = vcmp.lt.s32.totalorder %v3193, 2050
      %vm3451 = vcmp.lt.s32.totalorder %v3194, 2050
      %vm3452 = vcmp.lt.s32.totalorder %v3195, 2050
      %vm3453 = vcmp.lt.s32.totalorder %v3196, 2050
      %vm3454 = vcmp.lt.s32.totalorder %v3197, 2050
      %vm3455 = vcmp.lt.s32.totalorder %v3198, 2050
      %vm3456 = vcmp.lt.s32.totalorder %v3199, 2050
      %vm3457 = vcmp.lt.s32.totalorder %v3200, 2050
      %vm3458 = vcmp.lt.s32.totalorder %v3201, 2050
      %vm3459 = vcmp.lt.s32.totalorder %v3202, 2050
      %vm3460 = vcmp.lt.s32.totalorder %v3203, 2050
      %vm3461 = vcmp.lt.s32.totalorder %v3204, 2050
      %vm3462 = vcmp.lt.s32.totalorder %v3205, 2050
      %vm3463 = vcmp.lt.s32.totalorder %v3206, 2050
      %vm3464 = vcmp.lt.s32.totalorder %v3207, 2050
      %vm3465 = vcmp.lt.s32.totalorder %v3208, 2050
      %vm3466 = vcmp.lt.s32.totalorder %v3209, 2050
      %vm3467 = vcmp.lt.s32.totalorder %v3210, 2050
      %vm3468 = vcmp.lt.s32.totalorder %v3211, 2050
      %vm3469 = vcmp.lt.s32.totalorder %v3212, 2050
      %vm3470 = vcmp.lt.s32.totalorder %v3213, 2050
      %vm3471 = vcmp.lt.s32.totalorder %v3214, 2050
      %vm3472 = vcmp.lt.s32.totalorder %v3215, 2050
      %vm3473 = vcmp.lt.s32.totalorder %v3216, 2050
      %vm3474 = vcmp.lt.s32.totalorder %v3217, 2050
      %vm3475 = vcmp.lt.s32.totalorder %v3218, 2050
      %vm3476 = vcmp.lt.s32.totalorder %v3219, 2050
      %vm3477 = vcmp.lt.s32.totalorder %v3220, 2050
      %vm3478 = vcmp.lt.s32.totalorder %v3221, 2050
      %vm3479 = vcmp.lt.s32.totalorder %v3222, 2050
      %vm3480 = vcmp.lt.s32.totalorder %v3223, 2050
      %vm3481 = vcmp.lt.s32.totalorder %v3224, 2050
      %vm3482 = vcmp.lt.s32.totalorder %v3225, 2050
      %vm3483 = vcmp.lt.s32.totalorder %v3226, 2050
      %vm3484 = vcmp.lt.s32.totalorder %v3227, 2050
      %vm3485 = vcmp.lt.s32.totalorder %v3228, 2050
      %vm3486 = vcmp.lt.s32.totalorder %v3229, 2050
      %vm3487 = vcmp.lt.s32.totalorder %v3230, 2050
      %vm3488 = vcmp.lt.s32.totalorder %v3231, 2050
      %vm3489 = vcmp.lt.s32.totalorder %v3232, 2050
      %vm3490 = vcmp.lt.s32.totalorder %v3233, 2050
      %vm3491 = vcmp.lt.s32.totalorder %v3234, 2050
      %vm3492 = vcmp.lt.s32.totalorder %v3235, 2050
      %vm3493 = vcmp.lt.s32.totalorder %v3236, 2050
      %vm3494 = vcmp.lt.s32.totalorder %v3237, 2050
      %vm3495 = vcmp.lt.s32.totalorder %v3238, 2050
      %vm3496 = vcmp.lt.s32.totalorder %v3239, 2050
      %vm3497 = vcmp.lt.s32.totalorder %v3240, 2050
      %vm3498 = vcmp.lt.s32.totalorder %v3241, 2050
      %vm3499 = vcmp.lt.s32.totalorder %v3242, 2050
      %vm3500 = vcmp.lt.s32.totalorder %v3243, 2050
      %v3501 = vsel %vm3244, %v2192, 0.0
      %v3502 = vsel %vm3245, %v2193, 0.0
      %v3503 = vsel %vm3246, %v2194, 0.0
      %v3504 = vsel %vm3247, %v2195, 0.0
      %v3505 = vsel %vm3248, %v2196, 0.0
      %v3506 = vsel %vm3249, %v2197, 0.0
      %v3507 = vsel %vm3250, %v2198, 0.0
      %v3508 = vsel %vm3251, %v2199, 0.0
      %v3509 = vsel %vm3252, %v2200, 0.0
      %v3510 = vsel %vm3253, %v2201, 0.0
      %v3511 = vsel %vm3254, %v2202, 0.0
      %v3512 = vsel %vm3255, %v2203, 0.0
      %v3513 = vsel %vm3256, %v2204, 0.0
      %v3514 = vsel %vm3257, %v2205, 0.0
      %v3515 = vsel %vm3258, %v2206, 0.0
      %v3516 = vsel %vm3259, %v2207, 0.0
      %v3517 = vsel %vm3260, %v2208, 0.0
      %v3518 = vsel %vm3261, %v2209, 0.0
      %v3519 = vsel %vm3262, %v2210, 0.0
      %v3520 = vsel %vm3263, %v2211, 0.0
      %v3521 = vsel %vm3264, %v2212, 0.0
      %v3522 = vsel %vm3265, %v2213, 0.0
      %v3523 = vsel %vm3266, %v2214, 0.0
      %v3524 = vsel %vm3267, %v2215, 0.0
      %v3525 = vsel %vm3268, %v2216, 0.0
      %v3526 = vsel %vm3269, %v2217, 0.0
      %v3527 = vsel %vm3270, %v2218, 0.0
      %v3528 = vsel %vm3271, %v2219, 0.0
      %v3529 = vsel %vm3272, %v2220, 0.0
      %v3530 = vsel %vm3273, %v2221, 0.0
      %v3531 = vsel %vm3274, %v2222, 0.0
      %v3532 = vsel %vm3275, %v2223, 0.0
      %v3533 = vsel %vm3276, %v2224, 0.0
      %v3534 = vsel %vm3277, %v2225, 0.0
      %v3535 = vsel %vm3278, %v2226, 0.0
      %v3536 = vsel %vm3279, %v2227, 0.0
      %v3537 = vsel %vm3280, %v2228, 0.0
      %v3538 = vsel %vm3281, %v2229, 0.0
      %v3539 = vsel %vm3282, %v2230, 0.0
      %v3540 = vsel %vm3283, %v2231, 0.0
      %v3541 = vsel %vm3284, %v2232, 0.0
      %v3542 = vsel %vm3285, %v2233, 0.0
      %v3543 = vsel %vm3286, %v2234, 0.0
      %v3544 = vsel %vm3287, %v2235, 0.0
      %v3545 = vsel %vm3288, %v2236, 0.0
      %v3546 = vsel %vm3289, %v2237, 0.0
      %v3547 = vsel %vm3290, %v2238, 0.0
      %v3548 = vsel %vm3291, %v2239, 0.0
      %v3549 = vsel %vm3292, %v2240, 0.0
      %v3550 = vsel %vm3293, %v2241, 0.0
      %v3551 = vsel %vm3294, %v2242, 0.0
      %v3552 = vsel %vm3295, %v2243, 0.0
      %v3553 = vsel %vm3296, %v2244, 0.0
      %v3554 = vsel %vm3297, %v2245, 0.0
      %v3555 = vsel %vm3298, %v2246, 0.0
      %v3556 = vsel %vm3299, %v2247, 0.0
      %v3557 = vsel %vm3300, %v2248, 0.0
      %v3558 = vsel %vm3301, %v2249, 0.0
      %v3559 = vsel %vm3302, %v2250, 0.0
      %v3560 = vsel %vm3303, %v2251, 0.0
      %v3561 = vsel %vm3304, %v2252, 0.0
      %v3562 = vsel %vm3305, %v2253, 0.0
      %v3563 = vsel %vm3306, %v2254, 0.0
      %v3564 = vsel %vm3307, %v2255, 0.0
      %v3565 = vsel %vm3308, %v2256, 0.0
      %v3566 = vsel %vm3309, %v2257, 0.0
      %v3567 = vsel %vm3310, %v2258, 0.0
      %v3568 = vsel %vm3311, %v2259, 0.0
      %v3569 = vsel %vm3312, %v2260, 0.0
      %v3570 = vsel %vm3313, %v2261, 0.0
      %v3571 = vsel %vm3314, %v2262, 0.0
      %v3572 = vsel %vm3315, %v2263, 0.0
      %v3573 = vsel %vm3316, %v2264, 0.0
      %v3574 = vsel %vm3317, %v2265, 0.0
      %v3575 = vsel %vm3318, %v2266, 0.0
      %v3576 = vsel %vm3319, %v2267, 0.0
      %v3577 = vsel %vm3320, %v2268, 0.0
      %v3578 = vsel %vm3321, %v2269, 0.0
      %v3579 = vsel %vm3322, %v2270, 0.0
      %v3580 = vsel %vm3323, %v2271, 0.0
      %v3581 = vsel %vm3324, %v2272, 0.0
      %v3582 = vsel %vm3325, %v2273, 0.0
      %v3583 = vsel %vm3326, %v2274, 0.0
      %v3584 = vsel %vm3327, %v2275, 0.0
      %v3585 = vsel %vm3328, %v2276, 0.0
      %v3586 = vsel %vm3329, %v2277, 0.0
      %v3587 = vsel %vm3330, %v2278, 0.0
      %v3588 = vsel %vm3331, %v2279, 0.0
      %v3589 = vsel %vm3332, %v2280, 0.0
      %v3590 = vsel %vm3333, %v2281, 0.0
      %v3591 = vsel %vm3334, %v2282, 0.0
      %v3592 = vsel %vm3335, %v2283, 0.0
      %v3593 = vsel %vm3336, %v2284, 0.0
      %v3594 = vsel %vm3337, %v2285, 0.0
      %v3595 = vsel %vm3338, %v2286, 0.0
      %v3596 = vsel %vm3339, %v2287, 0.0
      %v3597 = vsel %vm3340, %v2288, 0.0
      %v3598 = vsel %vm3341, %v2289, 0.0
      %v3599 = vsel %vm3342, %v2290, 0.0
      %v3600 = vsel %vm3343, %v2291, 0.0
      %v3601 = vsel %vm3344, %v2292, 0.0
      %v3602 = vsel %vm3345, %v2293, 0.0
      %v3603 = vsel %vm3346, %v2294, 0.0
      %v3604 = vsel %vm3347, %v2295, 0.0
      %v3605 = vsel %vm3348, %v2296, 0.0
      %v3606 = vsel %vm3349, %v2297, 0.0
      %v3607 = vsel %vm3350, %v2298, 0.0
      %v3608 = vsel %vm3351, %v2299, 0.0
      %v3609 = vsel %vm3352, %v2300, 0.0
      %v3610 = vsel %vm3353, %v2301, 0.0
      %v3611 = vsel %vm3354, %v2302, 0.0
      %v3612 = vsel %vm3355, %v2303, 0.0
      %v3613 = vsel %vm3356, %v2304, 0.0
      %v3614 = vsel %vm3357, %v2305, 0.0
      %v3615 = vsel %vm3358, %v2306, 0.0
      %v3616 = vsel %vm3359, %v2307, 0.0
      %v3617 = vsel %vm3360, %v2308, 0.0
      %v3618 = vsel %vm3361, %v2309, 0.0
      %v3619 = vsel %vm3362, %v2310, 0.0
      %v3620 = vsel %vm3363, %v2311, 0.0
      %v3621 = vsel %vm3364, %v2312, 0.0
      %v3622 = vsel %vm3365, %v2313, 0.0
      %v3623 = vsel %vm3366, %v2314, 0.0
      %v3624 = vsel %vm3367, %v2315, 0.0
      %v3625 = vsel %vm3368, %v2316, 0.0
      %v3626 = vsel %vm3369, %v2317, 0.0
      %v3627 = vsel %vm3370, %v2318, 0.0
      %v3628 = vsel %vm3371, %v2319, 0.0
      %v3629 = vsel %vm3372, %v2320, 0.0
      %v3630 = vsel %vm3373, %v2321, 0.0
      %v3631 = vsel %vm3374, %v2322, 0.0
      %v3632 = vsel %vm3375, %v2323, 0.0
      %v3633 = vsel %vm3376, %v2324, 0.0
      %v3634 = vsel %vm3377, %v2325, 0.0
      %v3635 = vsel %vm3378, %v2326, 0.0
      %v3636 = vsel %vm3379, %v2327, 0.0
      %v3637 = vsel %vm3380, %v2328, 0.0
      %v3638 = vsel %vm3381, %v2329, 0.0
      %v3639 = vsel %vm3382, %v2330, 0.0
      %v3640 = vsel %vm3383, %v2331, 0.0
      %v3641 = vsel %vm3384, %v2332, 0.0
      %v3642 = vsel %vm3385, %v2333, 0.0
      %v3643 = vsel %vm3386, %v2334, 0.0
      %v3644 = vsel %vm3387, %v2335, 0.0
      %v3645 = vsel %vm3388, %v2336, 0.0
      %v3646 = vsel %vm3389, %v2337, 0.0
      %v3647 = vsel %vm3390, %v2338, 0.0
      %v3648 = vsel %vm3391, %v2339, 0.0
      %v3649 = vsel %vm3392, %v2340, 0.0
      %v3650 = vsel %vm3393, %v2341, 0.0
      %v3651 = vsel %vm3394, %v2342, 0.0
      %v3652 = vsel %vm3395, %v2343, 0.0
      %v3653 = vsel %vm3396, %v2344, 0.0
      %v3654 = vsel %vm3397, %v2345, 0.0
      %v3655 = vsel %vm3398, %v2346, 0.0
      %v3656 = vsel %vm3399, %v2347, 0.0
      %v3657 = vsel %vm3400, %v2348, 0.0
      %v3658 = vsel %vm3401, %v2349, 0.0
      %v3659 = vsel %vm3402, %v2350, 0.0
      %v3660 = vsel %vm3403, %v2351, 0.0
      %v3661 = vsel %vm3404, %v2352, 0.0
      %v3662 = vsel %vm3405, %v2353, 0.0
      %v3663 = vsel %vm3406, %v2354, 0.0
      %v3664 = vsel %vm3407, %v2355, 0.0
      %v3665 = vsel %vm3408, %v2356, 0.0
      %v3666 = vsel %vm3409, %v2357, 0.0
      %v3667 = vsel %vm3410, %v2358, 0.0
      %v3668 = vsel %vm3411, %v2359, 0.0
      %v3669 = vsel %vm3412, %v2360, 0.0
      %v3670 = vsel %vm3413, %v2361, 0.0
      %v3671 = vsel %vm3414, %v2362, 0.0
      %v3672 = vsel %vm3415, %v2363, 0.0
      %v3673 = vsel %vm3416, %v2364, 0.0
      %v3674 = vsel %vm3417, %v2365, 0.0
      %v3675 = vsel %vm3418, %v2366, 0.0
      %v3676 = vsel %vm3419, %v2367, 0.0
      %v3677 = vsel %vm3420, %v2368, 0.0
      %v3678 = vsel %vm3421, %v2369, 0.0
      %v3679 = vsel %vm3422, %v2370, 0.0
      %v3680 = vsel %vm3423, %v2371, 0.0
      %v3681 = vsel %vm3424, %v2372, 0.0
      %v3682 = vsel %vm3425, %v2373, 0.0
      %v3683 = vsel %vm3426, %v2374, 0.0
      %v3684 = vsel %vm3427, %v2375, 0.0
      %v3685 = vsel %vm3428, %v2376, 0.0
      %v3686 = vsel %vm3429, %v2377, 0.0
      %v3687 = vsel %vm3430, %v2378, 0.0
      %v3688 = vsel %vm3431, %v2379, 0.0
      %v3689 = vsel %vm3432, %v2380, 0.0
      %v3690 = vsel %vm3433, %v2381, 0.0
      %v3691 = vsel %vm3434, %v2382, 0.0
      %v3692 = vsel %vm3435, %v2383, 0.0
      %v3693 = vsel %vm3436, %v2384, 0.0
      %v3694 = vsel %vm3437, %v2385, 0.0
      %v3695 = vsel %vm3438, %v2386, 0.0
      %v3696 = vsel %vm3439, %v2387, 0.0
      %v3697 = vsel %vm3440, %v2388, 0.0
      %v3698 = vsel %vm3441, %v2389, 0.0
      %v3699 = vsel %vm3442, %v2390, 0.0
      %v3700 = vsel %vm3443, %v2391, 0.0
      %v3701 = vsel %vm3444, %v2392, 0.0
      %v3702 = vsel %vm3445, %v2393, 0.0
      %v3703 = vsel %vm3446, %v2394, 0.0
      %v3704 = vsel %vm3447, %v2395, 0.0
      %v3705 = vsel %vm3448, %v2396, 0.0
      %v3706 = vsel %vm3449, %v2397, 0.0
      %v3707 = vsel %vm3450, %v2398, 0.0
      %v3708 = vsel %vm3451, %v2399, 0.0
      %v3709 = vsel %vm3452, %v2400, 0.0
      %v3710 = vsel %vm3453, %v2401, 0.0
      %v3711 = vsel %vm3454, %v2402, 0.0
      %v3712 = vsel %vm3455, %v2403, 0.0
      %v3713 = vsel %vm3456, %v2404, 0.0
      %v3714 = vsel %vm3457, %v2405, 0.0
      %v3715 = vsel %vm3458, %v2406, 0.0
      %v3716 = vsel %vm3459, %v2407, 0.0
      %v3717 = vsel %vm3460, %v2408, 0.0
      %v3718 = vsel %vm3461, %v2409, 0.0
      %v3719 = vsel %vm3462, %v2410, 0.0
      %v3720 = vsel %vm3463, %v2411, 0.0
      %v3721 = vsel %vm3464, %v2412, 0.0
      %v3722 = vsel %vm3465, %v2413, 0.0
      %v3723 = vsel %vm3466, %v2414, 0.0
      %v3724 = vsel %vm3467, %v2415, 0.0
      %v3725 = vsel %vm3468, %v2416, 0.0
      %v3726 = vsel %vm3469, %v2417, 0.0
      %v3727 = vsel %vm3470, %v2418, 0.0
      %v3728 = vsel %vm3471, %v2419, 0.0
      %v3729 = vsel %vm3472, %v2420, 0.0
      %v3730 = vsel %vm3473, %v2421, 0.0
      %v3731 = vsel %vm3474, %v2422, 0.0
      %v3732 = vsel %vm3475, %v2423, 0.0
      %v3733 = vsel %vm3476, %v2424, 0.0
      %v3734 = vsel %vm3477, %v2425, 0.0
      %v3735 = vsel %vm3478, %v2426, 0.0
      %v3736 = vsel %vm3479, %v2427, 0.0
      %v3737 = vsel %vm3480, %v2428, 0.0
      %v3738 = vsel %vm3481, %v2429, 0.0
      %v3739 = vsel %vm3482, %v2430, 0.0
      %v3740 = vsel %vm3483, %v2431, 0.0
      %v3741 = vsel %vm3484, %v2432, 0.0
      %v3742 = vsel %vm3485, %v2433, 0.0
      %v3743 = vsel %vm3486, %v2434, 0.0
      %v3744 = vsel %vm3487, %v2435, 0.0
      %v3745 = vsel %vm3488, %v2436, 0.0
      %v3746 = vsel %vm3489, %v2437, 0.0
      %v3747 = vsel %vm3490, %v2438, 0.0
      %v3748 = vsel %vm3491, %v2439, 0.0
      %v3749 = vsel %vm3492, %v2440, 0.0
      %v3750 = vsel %vm3493, %v2441, 0.0
      %v3751 = vsel %vm3494, %v2442, 0.0
      %v3752 = vsel %vm3495, %v2443, 0.0
      %v3753 = vsel %vm3496, %v2444, 0.0
      %v3754 = vsel %vm3497, %v2445, 0.0
      %v3755 = vsel %vm3498, %v2446, 0.0
      %v3756 = vsel %vm3499, %v2447, 0.0
      %v3757 = vsel %vm3500, %v2448, 0.0
      %v3758 = vld [vmem:[#allocation7] sm:$0x1]
      %v3759 = vadd.f32 %v3501, %v3502
      %v3760 = vadd.f32 %v3759, %v3503
      %v3761 = vadd.f32 %v3760, %v3504
      %v3762 = vadd.f32 %v3761, %v3505
      %v3763 = vadd.f32 %v3762, %v3506
      %v3764 = vadd.f32 %v3763, %v3507
      %v3765 = vadd.f32 %v3764, %v3508
      %v3766 = vadd.f32 %v3765, %v3509
      %v3767 = vadd.f32 %v3766, %v3510
      %v3768 = vadd.f32 %v3767, %v3511
      %v3769 = vadd.f32 %v3768, %v3512
      %v3770 = vadd.f32 %v3769, %v3513
      %v3771 = vadd.f32 %v3770, %v3514
      %v3772 = vadd.f32 %v3771, %v3515
      %v3773 = vadd.f32 %v3772, %v3516
      %v3774 = vadd.f32 %v3773, %v3517
      %v3775 = vadd.f32 %v3774, %v3518
      %v3776 = vadd.f32 %v3775, %v3519
      %v3777 = vadd.f32 %v3776, %v3520
      %v3778 = vadd.f32 %v3777, %v3521
      %v3779 = vadd.f32 %v3778, %v3522
      %v3780 = vadd.f32 %v3779, %v3523
      %v3781 = vadd.f32 %v3780, %v3524
      %v3782 = vadd.f32 %v3781, %v3525
      %v3783 = vadd.f32 %v3782, %v3526
      %v3784 = vadd.f32 %v3783, %v3527
      %v3785 = vadd.f32 %v3784, %v3528
      %v3786 = vadd.f32 %v3785, %v3529
      %v3787 = vadd.f32 %v3786, %v3530
      %v3788 = vadd.f32 %v3787, %v3531
      %v3789 = vadd.f32 %v3788, %v3532
      %v3790 = vadd.f32 %v3789, %v3533
      %v3791 = vadd.f32 %v3790, %v3534
      %v3792 = vadd.f32 %v3791, %v3535
      %v3793 = vadd.f32 %v3792, %v3536
      %v3794 = vadd.f32 %v3793, %v3537
      %v3795 = vadd.f32 %v3794, %v3538
      %v3796 = vadd.f32 %v3795, %v3539
      %v3797 = vadd.f32 %v3796, %v3540
      %v3798 = vadd.f32 %v3797, %v3541
      %v3799 = vadd.f32 %v3798, %v3542
      %v3800 = vadd.f32 %v3799, %v3543
      %v3801 = vadd.f32 %v3800, %v3544
      %v3802 = vadd.f32 %v3801, %v3545
      %v3803 = vadd.f32 %v3802, %v3546
      %v3804 = vadd.f32 %v3803, %v3547
      %v3805 = vadd.f32 %v3804, %v3548
      %v3806 = vadd.f32 %v3805, %v3549
      %v3807 = vadd.f32 %v3806, %v3550
      %v3808 = vadd.f32 %v3807, %v3551
      %v3809 = vadd.f32 %v3808, %v3552
      %v3810 = vadd.f32 %v3809, %v3553
      %v3811 = vadd.f32 %v3810, %v3554
      %v3812 = vadd.f32 %v3811, %v3555
      %v3813 = vadd.f32 %v3812, %v3556
      %v3814 = vadd.f32 %v3813, %v3557
      %v3815 = vadd.f32 %v3814, %v3558
      %v3816 = vadd.f32 %v3815, %v3559
      %v3817 = vadd.f32 %v3816, %v3560
      %v3818 = vadd.f32 %v3817, %v3561
      %v3819 = vadd.f32 %v3818, %v3562
      %v3820 = vadd.f32 %v3819, %v3563
      %v3821 = vadd.f32 %v3820, %v3564
      %v3822 = vadd.f32 %v3821, %v3565
      %v3823 = vadd.f32 %v3822, %v3566
      %v3824 = vadd.f32 %v3823, %v3567
      %v3825 = vadd.f32 %v3824, %v3568
      %v3826 = vadd.f32 %v3825, %v3569
      %v3827 = vadd.f32 %v3826, %v3570
      %v3828 = vadd.f32 %v3827, %v3571
      %v3829 = vadd.f32 %v3828, %v3572
      %v3830 = vadd.f32 %v3829, %v3573
      %v3831 = vadd.f32 %v3830, %v3574
      %v3832 = vadd.f32 %v3831, %v3575
      %v3833 = vadd.f32 %v3832, %v3576
      %v3834 = vadd.f32 %v3833, %v3577
      %v3835 = vadd.f32 %v3834, %v3578
      %v3836 = vadd.f32 %v3835, %v3579
      %v3837 = vadd.f32 %v3836, %v3580
      %v3838 = vadd.f32 %v3837, %v3581
      %v3839 = vadd.f32 %v3838, %v3582
      %v3840 = vadd.f32 %v3839, %v3583
      %v3841 = vadd.f32 %v3840, %v3584
      %v3842 = vadd.f32 %v3841, %v3585
      %v3843 = vadd.f32 %v3842, %v3586
      %v3844 = vadd.f32 %v3843, %v3587
      %v3845 = vadd.f32 %v3844, %v3588
      %v3846 = vadd.f32 %v3845, %v3589
      %v3847 = vadd.f32 %v3846, %v3590
      %v3848 = vadd.f32 %v3847, %v3591
      %v3849 = vadd.f32 %v3848, %v3592
      %v3850 = vadd.f32 %v3849, %v3593
      %v3851 = vadd.f32 %v3850, %v3594
      %v3852 = vadd.f32 %v3851, %v3595
      %v3853 = vadd.f32 %v3852, %v3596
      %v3854 = vadd.f32 %v3853, %v3597
      %v3855 = vadd.f32 %v3854, %v3598
      %v3856 = vadd.f32 %v3855, %v3599
      %v3857 = vadd.f32 %v3856, %v3600
      %v3858 = vadd.f32 %v3857, %v3601
      %v3859 = vadd.f32 %v3858, %v3602
      %v3860 = vadd.f32 %v3859, %v3603
      %v3861 = vadd.f32 %v3860, %v3604
      %v3862 = vadd.f32 %v3861, %v3605
      %v3863 = vadd.f32 %v3862, %v3606
      %v3864 = vadd.f32 %v3863, %v3607
      %v3865 = vadd.f32 %v3864, %v3608
      %v3866 = vadd.f32 %v3865, %v3609
      %v3867 = vadd.f32 %v3866, %v3610
      %v3868 = vadd.f32 %v3867, %v3611
      %v3869 = vadd.f32 %v3868, %v3612
      %v3870 = vadd.f32 %v3869, %v3613
      %v3871 = vadd.f32 %v3870, %v3614
      %v3872 = vadd.f32 %v3871, %v3615
      %v3873 = vadd.f32 %v3872, %v3616
      %v3874 = vadd.f32 %v3873, %v3617
      %v3875 = vadd.f32 %v3874, %v3618
      %v3876 = vadd.f32 %v3875, %v3619
      %v3877 = vadd.f32 %v3876, %v3620
      %v3878 = vadd.f32 %v3877, %v3621
      %v3879 = vadd.f32 %v3878, %v3622
      %v3880 = vadd.f32 %v3879, %v3623
      %v3881 = vadd.f32 %v3880, %v3624
      %v3882 = vadd.f32 %v3881, %v3625
      %v3883 = vadd.f32 %v3882, %v3626
      %v3884 = vadd.f32 %v3883, %v3627
      %v3885 = vadd.f32 %v3884, %v3628
      %v3886 = vadd.f32 %v3885, %v3629
      %v3887 = vadd.f32 %v3886, %v3630
      %v3888 = vadd.f32 %v3887, %v3631
      %v3889 = vadd.f32 %v3888, %v3632
      %v3890 = vadd.f32 %v3889, %v3633
      %v3891 = vadd.f32 %v3890, %v3634
      %v3892 = vadd.f32 %v3891, %v3635
      %v3893 = vadd.f32 %v3892, %v3636
      %v3894 = vadd.f32 %v3893, %v3637
      %v3895 = vadd.f32 %v3894, %v3638
      %v3896 = vadd.f32 %v3895, %v3639
      %v3897 = vadd.f32 %v3896, %v3640
      %v3898 = vadd.f32 %v3897, %v3641
      %v3899 = vadd.f32 %v3898, %v3642
      %v3900 = vadd.f32 %v3899, %v3643
      %v3901 = vadd.f32 %v3900, %v3644
      %v3902 = vadd.f32 %v3901, %v3645
      %v3903 = vadd.f32 %v3902, %v3646
      %v3904 = vadd.f32 %v3903, %v3647
      %v3905 = vadd.f32 %v3904, %v3648
      %v3906 = vadd.f32 %v3905, %v3649
      %v3907 = vadd.f32 %v3906, %v3650
      %v3908 = vadd.f32 %v3907, %v3651
      %v3909 = vadd.f32 %v3908, %v3652
      %v3910 = vadd.f32 %v3909, %v3653
      %v3911 = vadd.f32 %v3910, %v3654
      %v3912 = vadd.f32 %v3911, %v3655
      %v3913 = vadd.f32 %v3912, %v3656
      %v3914 = vadd.f32 %v3913, %v3657
      %v3915 = vadd.f32 %v3914, %v3658
      %v3916 = vadd.f32 %v3915, %v3659
      %v3917 = vadd.f32 %v3916, %v3660
      %v3918 = vadd.f32 %v3917, %v3661
      %v3919 = vadd.f32 %v3918, %v3662
      %v3920 = vadd.f32 %v3919, %v3663
      %v3921 = vadd.f32 %v3920, %v3664
      %v3922 = vadd.f32 %v3921, %v3665
      %v3923 = vadd.f32 %v3922, %v3666
      %v3924 = vadd.f32 %v3923, %v3667
      %v3925 = vadd.f32 %v3924, %v3668
      %v3926 = vadd.f32 %v3925, %v3669
      %v3927 = vadd.f32 %v3926, %v3670
      %v3928 = vadd.f32 %v3927, %v3671
      %v3929 = vadd.f32 %v3928, %v3672
      %v3930 = vadd.f32 %v3929, %v3673
      %v3931 = vadd.f32 %v3930, %v3674
      %v3932 = vadd.f32 %v3931, %v3675
      %v3933 = vadd.f32 %v3932, %v3676
      %v3934 = vadd.f32 %v3933, %v3677
      %v3935 = vadd.f32 %v3934, %v3678
      %v3936 = vadd.f32 %v3935, %v3679
      %v3937 = vadd.f32 %v3936, %v3680
      %v3938 = vadd.f32 %v3937, %v3681
      %v3939 = vadd.f32 %v3938, %v3682
      %v3940 = vadd.f32 %v3939, %v3683
      %v3941 = vadd.f32 %v3940, %v3684
      %v3942 = vadd.f32 %v3941, %v3685
      %v3943 = vadd.f32 %v3942, %v3686
      %v3944 = vadd.f32 %v3943, %v3687
      %v3945 = vadd.f32 %v3944, %v3688
      %v3946 = vadd.f32 %v3945, %v3689
      %v3947 = vadd.f32 %v3946, %v3690
      %v3948 = vadd.f32 %v3947, %v3691
      %v3949 = vadd.f32 %v3948, %v3692
      %v3950 = vadd.f32 %v3949, %v3693
      %v3951 = vadd.f32 %v3950, %v3694
      %v3952 = vadd.f32 %v3951, %v3695
      %v3953 = vadd.f32 %v3952, %v3696
      %v3954 = vadd.f32 %v3953, %v3697
      %v3955 = vadd.f32 %v3954, %v3698
      %v3956 = vadd.f32 %v3955, %v3699
      %v3957 = vadd.f32 %v3956, %v3700
      %v3958 = vadd.f32 %v3957, %v3701
      %v3959 = vadd.f32 %v3958, %v3702
      %v3960 = vadd.f32 %v3959, %v3703
      %v3961 = vadd.f32 %v3960, %v3704
      %v3962 = vadd.f32 %v3961, %v3705
      %v3963 = vadd.f32 %v3962, %v3706
      %v3964 = vadd.f32 %v3963, %v3707
      %v3965 = vadd.f32 %v3964, %v3708
      %v3966 = vadd.f32 %v3965, %v3709
      %v3967 = vadd.f32 %v3966, %v3710
      %v3968 = vadd.f32 %v3967, %v3711
      %v3969 = vadd.f32 %v3968, %v3712
      %v3970 = vadd.f32 %v3969, %v3713
      %v3971 = vadd.f32 %v3970, %v3714
      %v3972 = vadd.f32 %v3971, %v3715
      %v3973 = vadd.f32 %v3972, %v3716
      %v3974 = vadd.f32 %v3973, %v3717
      %v3975 = vadd.f32 %v3974, %v3718
      %v3976 = vadd.f32 %v3975, %v3719
      %v3977 = vadd.f32 %v3976, %v3720
      %v3978 = vadd.f32 %v3977, %v3721
      %v3979 = vadd.f32 %v3978, %v3722
      %v3980 = vadd.f32 %v3979, %v3723
      %v3981 = vadd.f32 %v3980, %v3724
      %v3982 = vadd.f32 %v3981, %v3725
      %v3983 = vadd.f32 %v3982, %v3726
      %v3984 = vadd.f32 %v3983, %v3727
      %v3985 = vadd.f32 %v3984, %v3728
      %v3986 = vadd.f32 %v3985, %v3729
      %v3987 = vadd.f32 %v3986, %v3730
      %v3988 = vadd.f32 %v3987, %v3731
      %v3989 = vadd.f32 %v3988, %v3732
      %v3990 = vadd.f32 %v3989, %v3733
      %v3991 = vadd.f32 %v3990, %v3734
      %v3992 = vadd.f32 %v3991, %v3735
      %v3993 = vadd.f32 %v3992, %v3736
      %v3994 = vadd.f32 %v3993, %v3737
      %v3995 = vadd.f32 %v3994, %v3738
      %v3996 = vadd.f32 %v3995, %v3739
      %v3997 = vadd.f32 %v3996, %v3740
      %v3998 = vadd.f32 %v3997, %v3741
      %v3999 = vadd.f32 %v3998, %v3742
      %v4000 = vadd.f32 %v3999, %v3743
      %v4001 = vadd.f32 %v4000, %v3744
      %v4002 = vadd.f32 %v4001, %v3745
      %v4003 = vadd.f32 %v4002, %v3746
      %v4004 = vadd.f32 %v4003, %v3747
      %v4005 = vadd.f32 %v4004, %v3748
      %v4006 = vadd.f32 %v4005, %v3749
      %v4007 = vadd.f32 %v4006, %v3750
      %v4008 = vadd.f32 %v4007, %v3751
      %v4009 = vadd.f32 %v4008, %v3752
      %v4010 = vadd.f32 %v4009, %v3753
      %v4011 = vadd.f32 %v4010, %v3754
      %v4012 = vadd.f32 %v4011, %v3755
      %v4013 = vadd.f32 %v4012, %v3756
      %vm4014 = vcmask 1041408
      %v4015 = vsel %vm4014, %v3757, 0.0
      %v4016 = vadd.f32 %v4013, %v4015
      %v4017 = vrot.slane %v4016, 4
      %v4018 = vadd.f32 %v4016, %v4017
      %v4019 = vrot.slane %v4018, 2
      %v4020 = vadd.f32 %v4018, %v4019
      %v4021 = vrot.slane %v4020, 1
      %v4022 = vadd.f32 %v4020, %v4021
      %v4023 = vadd.f32 %v3758, %v4022
      %4024 = vst [vmem:[#allocation7] sm:$0x1] %v4023
    $region29: #{tpu_custom_call.1} parent=1 // pred_fallthru
      _
    // Predicated region
    $region30: #{tpu_custom_call.1} parent=1 // pred_check
      _
    $region31: #{tpu_custom_call.1} parent=1 // pred_check_branch
      %4026 = sbr.rel (0) target = $region33
    $region32: #{tpu_custom_call.1} parent=1 // pred_region
      %s4028 = ssub.s32 16, 16
      %4029 = vsyncadd [#allocation4], %s4028
      %s4031 = sshll.u32 [#allocation7], 4
      %s4032 = int_to_ptr.vmem [resolvable:$true] %s4031
      %4034 = dma.vmem_to_hbm [thread:$0]  %s4032, 16, %s2, [#allocation4]
    $region33: #{tpu_custom_call.1} parent=1 // pred_fallthru
      _
    // Predicated region
    $region34: #{tpu_custom_call.1} parent=1 // pred_check
      _
    $region35: #{tpu_custom_call.1} parent=1 // pred_check_branch
      %4036 = sbr.rel (0) target = $region37
    $region36: #{tpu_custom_call.1} parent=1 // pred_region
      %4037 = dma.done [#allocation4], 16
    $region37: #{tpu_custom_call.1} parent=1 // pred_fallthru
      _
    %4038 = vsyncpa [#allocation3], 1
    %4039 = vsyncpa [#allocation6], 1
    %4040 = vsyncpa [#allocation4], 1

</llo_original>
